<compile_context>
chip_gen: v6e
topology: v6e:2x2x1
jax: 0.10.0
libtpu: 0.0.40
codegen_flags: <defaults>
</compile_context>

<pallas_src>
import functools

import jax
import jax.numpy as jnp
from jax import lax
from jax.experimental import pallas as pl
from jax.experimental.pallas import tpu as pltpu

BATCH = 2
CHANNELS = 4
HEIGHT = 16
WIDTH = 16
FLAT = CHANNELS * HEIGHT * WIDTH          # 1024 -> lane-dense (8 * 128)


def _n_output_tiles(N):
    """2 output tiles on v7x (2 TensorCores / chip), 1 elsewhere (v5e/v6e)."""
    try:
        kind = jax.devices()[0].device_kind.lower()
    except Exception:
        kind = ""
    tiles = 2 if "v7" in kind else 1
    if tiles > 1 and N % (tiles * 128) != 0:
        tiles = 1
    return tiles


# ---------------------------------------------------------------------------
# Fused kernel: pre-conditioning + synthetic network + post-conditioning.
#   x_in = (x * c_in) in bf16   ->   h = x_in @ W  (MXU, f32 acc)
#   F_x  = h + c_noise * b      ->   D_x = x + c_out * F_x   (c_skip = 1)
# ---------------------------------------------------------------------------
def _vp_fused_kernel(beta_d, beta_min, M,
                     x_full_ref, x_tile_ref, sigma_ref, w_ref, b_ref, dx_ref):
    s = sigma_ref[...]                                   # (B, 1) f32
    c_in = lax.rsqrt(s * s + 1.0)                        # EUP rsqrt (free slot)
    c_out = -s
    c_noise = (M - 1) * ((jnp.sqrt(beta_min * beta_min
                                   + 2.0 * beta_d * jnp.log1p(s * s))
                          - beta_min) / beta_d)

    x_in = (x_full_ref[...] * c_in).astype(jnp.bfloat16)  # (B, F) bf16 operand
    h = jnp.dot(x_in, w_ref[...],
                preferred_element_type=jnp.float32)       # (B, tn) on MXU
    fx = h + c_noise * b_ref[...]                         # (B,1)*(1,tn) bcast
    dx_ref[...] = x_tile_ref[...] + c_out * fx            # c_skip = 1


def vp_fused_forward(params, x_flat, sigma_col, *, beta_d, beta_min, M):
    B, F = x_flat.shape
    N = params['w'].shape[1]
    n_tiles = _n_output_tiles(N)
    tn = N // n_tiles                                     # 1024 or 512 (lane-dense)

    kernel = functools.partial(_vp_fused_kernel, float(beta_d),
                               float(beta_min), int(M))

    flops = int(2 * B * F * N + 6 * B * N + 8 * B)
    bytes_accessed = int(x_flat.size * 4 + sigma_col.size * 4
                         + params['w'].size * 2 + params['b'].size * 4
                         + B * N * 4)

    # Double-buffered VMEM footprint (padded to (8,128) tiles) + slack, instead
    # of a blanket 32 MiB reservation.
    pad_rows = max(8, B)
    vmem_bytes = 2 * (F * tn * 2            # weight tile (bf16)
                      + 8 * tn * 4          # bias tile
                      + pad_rows * F * 4    # resident x (matmul operand)
                      + pad_rows * tn * 4   # x skip tile
                      + 8 * 128 * 4         # sigma
                      + pad_rows * tn * 4)  # output tile
    vmem_limit = int(vmem_bytes + (4 << 20))

    return pl.pallas_call(
        kernel,
        out_shape=jax.ShapeDtypeStruct((B, N), jnp.float32),
        grid=(n_tiles,),
        in_specs=[
            pl.BlockSpec((B, F), lambda j: (0, 0)),    # x resident (matmul K)
            pl.BlockSpec((B, tn), lambda j: (0, j)),   # x N-tiled (skip path)
            pl.BlockSpec((B, 1), lambda j: (0, 0)),    # sigma resident
            pl.BlockSpec((F, tn), lambda j: (0, j)),   # stream weight tiles
            pl.BlockSpec((1, tn), lambda j: (0, j)),   # stream bias tiles
        ],
        out_specs=pl.BlockSpec((B, tn), lambda j: (0, j)),
        compiler_params=pltpu.CompilerParams(
            dimension_semantics=("parallel",),         # v7x: both TCs get a tile
            vmem_limit_bytes=vmem_limit),
        cost_estimate=pl.CostEstimate(flops=flops, transcendentals=4 * B,
                                      bytes_accessed=bytes_accessed),
    )(x_flat, x_flat, sigma_col, params['w'], params['b'])


# ---------------------------------------------------------------------------
# Synthetic deterministic stand-in for the external `network`.
# ---------------------------------------------------------------------------
class SyntheticNetwork:
    """F_x = (c_in*x) @ W + c_noise[:, None] * b  (bf16 MXU operands, f32 acc)."""

    def __init__(self, w, b):
        self.params = {'w': w, 'b': b}

    def __call__(self, x_in, c_noise, conditioning=None, **unused_kwargs):
        # TODO(synk): conditioning (label_dim > 0) is accepted but unused by
        # this synthetic stand-in; the real external network is not translatable.
        h = jnp.dot(jnp.asarray(x_in, jnp.bfloat16), self.params['w'],
                    preferred_element_type=jnp.float32)
        return h + jnp.asarray(c_noise, jnp.float32).reshape(-1, 1) * self.params['b']


# ---------------------------------------------------------------------------
# VPPrecond in JAX -- same control flow as the PyTorch module.
# ---------------------------------------------------------------------------
class VPPrecond:
    def __init__(self, network, label_dim=0, beta_d=19.9, beta_min=0.1,
                 M=1000, epsilon_t=1e-05):
        self.label_dim = label_dim
        self.beta_d = float(beta_d)
        self.beta_min = float(beta_min)
        self.M = int(M)
        self.epsilon_t = float(epsilon_t)
        self.sigma_min = float(self.sigma(epsilon_t))
        self.sigma_max = float(self.sigma(1.0))
        self.network = network

    def sigma(self, t):
        t = jnp.asarray(t, jnp.float32)
        return jnp.sqrt(jnp.exp(0.5 * self.beta_d * t * t + self.beta_min * t) - 1.0)

    def sigma_inv(self, sigma):
        sigma = jnp.asarray(sigma, jnp.float32)
        return (jnp.sqrt(self.beta_min ** 2
                         + 2.0 * self.beta_d * jnp.log1p(sigma * sigma))
                - self.beta_min) / self.beta_d

    def round_sigma(self, sigma):
        return jnp.asarray(sigma)

    def forward(self, x, sigma, conditioning=None, force_fp32=False, **network_kwargs):
        # NOTE: force_fp32 is accepted but unused -- the reference PyTorch
        # forward also never consumes it.
        x = jnp.asarray(x, jnp.float32)
        B, C, H, W = x.shape
        # Explicitly broadcast sigma to length B so coefficient rows always
        # match the batch (handles scalar sigma without silent downstream bcast).
        sigma_col = jnp.broadcast_to(
            jnp.asarray(sigma, jnp.float32).reshape(-1), (B,)).reshape(B, 1)

        if self.label_dim == 0:
            conditioning = None
        elif conditioning is None:
            conditioning = jnp.zeros((1, self.label_dim), jnp.float32)
        else:
            conditioning = jnp.asarray(conditioning, jnp.float32).reshape(-1, self.label_dim)

        x_flat = x.reshape(B, C * H * W)                  # lane-dense layout

        if isinstance(self.network, SyntheticNetwork) and self.label_dim == 0:
            # Fully fused single-kernel path (pre + network + post in one call).
            D_flat = vp_fused_forward(self.network.params, x_flat, sigma_col,
                                      beta_d=self.beta_d, beta_min=self.beta_min,
                                      M=self.M)
        else:
            # Real external network: keep the ~16 KiB pre/post math in plain jnp
            # so XLA fuses it with neighbouring ops (a pallas_call here would be
            # pure launch overhead); hand the network a bf16 x_in.
            c_in = lax.rsqrt(sigma_col * sigma_col + 1.0)
            c_out = -sigma_col
            c_noise = (self.M - 1) * self.sigma_inv(sigma_col)
            x_in = (x_flat * c_in).astype(jnp.bfloat16)
            F_x = self.network(x_in, c_noise.reshape(-1),
                               conditioning=conditioning, **network_kwargs)
            F_x = jnp.asarray(F_x, jnp.float32).reshape(B, -1)
            D_flat = x_flat + c_out * F_x

        return D_flat.reshape(B, C, H, W)


if __name__ == "__main__":
    key = jax.random.PRNGKey(0)
    kx, ks, kw, kb = jax.random.split(key, 4)

    x = jax.random.normal(kx, (BATCH, CHANNELS, HEIGHT, WIDTH), jnp.float32)
    sigma = jax.random.uniform(ks, (BATCH,), jnp.float32, 0.2, 2.0)

    w = (jax.random.normal(kw, (FLAT, FLAT), jnp.float32) * 0.02
         ).astype(jnp.bfloat16)                           # bf16 weights (MXU)
    b = jax.random.normal(kb, (1, FLAT), jnp.float32) * 0.02

    precond = VPPrecond(network=SyntheticNetwork(w, b))
    D_x = precond.forward(x, sigma)
    jax.block_until_ready(D_x)

    # Plain-JAX reference (same bf16 matmul operands, f32 accumulation).
    s2 = sigma.reshape(-1, 1)
    c_in_r = lax.rsqrt(s2 * s2 + 1.0)
    c_out_r = -s2
    c_noise_r = (precond.M - 1) * (
        (jnp.sqrt(precond.beta_min ** 2
                  + 2.0 * precond.beta_d * jnp.log1p(s2 * s2))
         - precond.beta_min) / precond.beta_d)
    x_flat_r = x.reshape(BATCH, FLAT)
    x_in_r = (x_flat_r * c_in_r).astype(jnp.bfloat16)
    h_r = jnp.dot(x_in_r, w, preferred_element_type=jnp.float32)
    fx_r = h_r + c_noise_r * b
    dx_r = (x_flat_r + c_out_r * fx_r).reshape(x.shape)

    assert D_x.shape == x.shape
    assert D_x.dtype == jnp.float32
    err = float(jnp.max(jnp.abs(D_x - dx_r)))
    assert jnp.allclose(D_x, dx_r, atol=1e-2, rtol=1e-2), err

    print("KERNEL_OK")
</pallas_src>

<mosaic_0001>
module attributes {stable_mosaic.version = 11 : i64} {
  func.func @_vp_fused_kernel(%arg0: i32, %arg1: memref<2x1024xf32, #tpu.memory_space<vmem>>, %arg2: memref<2x1024xf32, #tpu.memory_space<vmem>>, %arg3: memref<2x1xf32, #tpu.memory_space<vmem>>, %arg4: memref<1024x1024xbf16, #tpu.memory_space<vmem>>, %arg5: memref<1x1024xf32, #tpu.memory_space<vmem>>, %arg6: memref<2x1024xf32, #tpu.memory_space<vmem>>) attributes {dimension_semantics = [#tpu.dimension_semantics<parallel>], iteration_bounds = array<i64: 1>, scalar_prefetch = 0 : i64, scratch_operands = 0 : i64, tpu.core_type = #tpu.core_type<tc>, window_params = [{pipeline_mode = #tpu.pipeline_mode<synchronous>, transform_indices = @transform_0, window_bounds = array<i64: 2, 1024>}, {transform_indices = @transform_1, window_bounds = array<i64: 2, 1024>}, {pipeline_mode = #tpu.pipeline_mode<synchronous>, transform_indices = @transform_2, window_bounds = array<i64: 2, 1>}, {transform_indices = @transform_3, window_bounds = array<i64: 1024, 1024>}, {transform_indices = @transform_4, window_bounds = array<i64: 1, 1024>}, {transform_indices = @transform_5, window_bounds = array<i64: 2, 1024>}]} {
    %c0 = arith.constant 0 : index
    %c0_0 = arith.constant 0 : index
    %0 = vector.load %arg3[%c0, %c0_0] : memref<2x1xf32, #tpu.memory_space<vmem>>, vector<2x1xf32>
    %1 = arith.mulf %0, %0 : vector<2x1xf32>
    %cst = arith.constant 1.000000e+00 : f32
    %2 = vector.broadcast %cst : f32 to vector<2x1xf32>
    %3 = arith.addf %1, %2 : vector<2x1xf32>
    %4 = math.rsqrt %3 : vector<2x1xf32>
    %cst_1 = arith.constant 0.000000e+00 : f32
    %5 = vector.broadcast %cst_1 : f32 to vector<2x1xf32>
    %6 = arith.subf %5, %0 : vector<2x1xf32>
    %7 = arith.mulf %0, %0 : vector<2x1xf32>
    %8 = math.log1p %7 : vector<2x1xf32>
    %cst_2 = arith.constant 3.980000e+01 : f32
    %9 = vector.broadcast %cst_2 : f32 to vector<2x1xf32>
    %10 = arith.mulf %9, %8 : vector<2x1xf32>
    %cst_3 = arith.constant 0.00999999977 : f32
    %11 = vector.broadcast %cst_3 : f32 to vector<2x1xf32>
    %12 = arith.addf %11, %10 : vector<2x1xf32>
    %13 = math.sqrt %12 : vector<2x1xf32>
    %cst_4 = arith.constant 1.000000e-01 : f32
    %14 = vector.broadcast %cst_4 : f32 to vector<2x1xf32>
    %15 = arith.subf %13, %14 : vector<2x1xf32>
    %cst_5 = arith.constant 1.990000e+01 : f32
    %16 = vector.broadcast %cst_5 : f32 to vector<2x1xf32>
    %17 = arith.divf %15, %16 : vector<2x1xf32>
    %cst_6 = arith.constant 9.990000e+02 : f32
    %18 = vector.broadcast %cst_6 : f32 to vector<2x1xf32>
    %19 = arith.mulf %18, %17 : vector<2x1xf32>
    %c0_7 = arith.constant 0 : index
    %c0_8 = arith.constant 0 : index
    %20 = vector.load %arg1[%c0_7, %c0_8] : memref<2x1024xf32, #tpu.memory_space<vmem>>, vector<2x1024xf32>
    %21 = vector.broadcast %4 : vector<2x1xf32> to vector<2x1024xf32>
    %22 = arith.mulf %20, %21 : vector<2x1024xf32>
    %23 = arith.truncf %22 : vector<2x1024xf32> to vector<2x1024xbf16>
    %c0_9 = arith.constant 0 : index
    %c0_10 = arith.constant 0 : index
    %24 = vector.load %arg4[%c0_9, %c0_10] : memref<1024x1024xbf16, #tpu.memory_space<vmem>>, vector<1024x1024xbf16>
    %cst_11 = arith.constant dense<0.000000e+00> : vector<2x1024xf32>
    %25 = tpu.matmul %23, %24, %cst_11 {dimension_numbers = #tpu.dot_dimension_numbers<[1], [0], [0], [1], [0, 0, 1, 1], [], []>} : vector<2x1024xbf16>, vector<1024x1024xbf16>, vector<2x1024xf32> -> vector<2x1024xf32>
    %c0_12 = arith.constant 0 : index
    %c0_13 = arith.constant 0 : index
    %26 = vector.load %arg5[%c0_12, %c0_13] : memref<1x1024xf32, #tpu.memory_space<vmem>>, vector<1x1024xf32>
    %27 = vector.broadcast %19 : vector<2x1xf32> to vector<2x1024xf32>
    %28 = vector.broadcast %26 : vector<1x1024xf32> to vector<2x1024xf32>
    %29 = arith.mulf %27, %28 : vector<2x1024xf32>
    %30 = arith.addf %25, %29 : vector<2x1024xf32>
    %c0_14 = arith.constant 0 : index
    %c0_15 = arith.constant 0 : index
    %31 = vector.load %arg2[%c0_14, %c0_15] : memref<2x1024xf32, #tpu.memory_space<vmem>>, vector<2x1024xf32>
    %32 = vector.broadcast %6 : vector<2x1xf32> to vector<2x1024xf32>
    %33 = arith.mulf %32, %30 : vector<2x1024xf32>
    %34 = arith.addf %31, %33 : vector<2x1024xf32>
    %c0_16 = arith.constant 0 : index
    %c0_17 = arith.constant 0 : index
    %35 = vector.load %arg6[%c0_16, %c0_17] : memref<2x1024xf32, #tpu.memory_space<vmem>>, vector<2x1024xf32>
    tpu.vector_store %arg6[%c0_16, %c0_17], %34 {strides = array<i32>} : memref<2x1024xf32, #tpu.memory_space<vmem>>, vector<2x1024xf32>,
    return
  }
  func.func @transform_0(%arg0: i32) -> (i32, i32) {
    %c0_i32 = arith.constant 0 : i32
    %c0_i32_0 = arith.constant 0 : i32
    %c0_i32_1 = arith.constant 0 : i32
    return %c0_i32, %c0_i32_0 : i32, i32
  }
  func.func @transform_1(%arg0: i32) -> (i32, i32) {
    %c0_i32 = arith.constant 0 : i32
    %c0_i32_0 = arith.constant 0 : i32
    return %c0_i32, %arg0 : i32, i32
  }
  func.func @transform_2(%arg0: i32) -> (i32, i32) {
    %c0_i32 = arith.constant 0 : i32
    %c0_i32_0 = arith.constant 0 : i32
    %c0_i32_1 = arith.constant 0 : i32
    return %c0_i32, %c0_i32_0 : i32, i32
  }
  func.func @transform_3(%arg0: i32) -> (i32, i32) {
    %c0_i32 = arith.constant 0 : i32
    %c0_i32_0 = arith.constant 0 : i32
    return %c0_i32, %arg0 : i32, i32
  }
  func.func @transform_4(%arg0: i32) -> (i32, i32) {
    %c0_i32 = arith.constant 0 : i32
    %c0_i32_0 = arith.constant 0 : i32
    return %c0_i32, %arg0 : i32, i32
  }
  func.func @transform_5(%arg0: i32) -> (i32, i32) {
    %c0_i32 = arith.constant 0 : i32
    %c0_i32_0 = arith.constant 0 : i32
    return %c0_i32, %arg0 : i32, i32
  }
}

</mosaic_0001>

<llo_original>
// kernel: tpu_custom_call.1
$region0: #{tpu_custom_call.1}
  #allocation0 [shape = 'u32[]', space=smem, size = 0x4, offset = 0x4, fixed_abs, tag = 'smem constant byte address 0x4 - core index']
  #allocation1 [shape = 'u32[144,128]{1,0:T(1,128)}', space=vmem, size = 0x12000, scoped, tag = 'internal scratch']
  %s0 = inlined_call_operand.hbm [shape: f32[2,1024], index: 0, kind: input, shape index: {}]
  %s1 = inlined_call_operand.hbm [shape: f32[2,1024], index: 1, kind: input, shape index: {}]
  %s2 = inlined_call_operand.vmem [shape: f32[2,1], index: 2, kind: input, shape index: {}]
  %s3 = inlined_call_operand.hbm [shape: bf16[1024,1024], index: 3, kind: input, shape index: {}]
  %s4 = inlined_call_operand.hbm [shape: f32[1,1024], index: 4, kind: input, shape index: {}]
  %s5 = inlined_call_operand.hbm [shape: f32[2,1024], index: 5, kind: output, shape index: {}]
  %s6 = sld [smem:[#allocation0]]
  $region46: #{tpu_custom_call.1} parent=0
    _
  %s8 = ssub.s32 1, %s6
  %s9 = scalar_select 0, %s8, %s6
  $region1: #{tpu_custom_call.1} parent=0
    #allocation2 [shape = 'u8[8192]{0}', space=vmem, size = 0x2000, scoped, tag = 'input window, operand 0, single buffered']
    #allocation3 [shape = 's32[1]{0}', space=sflag, size = 0x4, scoped, tag = 'scoped memory for tpu_custom_call.1']
    #allocation4 [shape = 's32[1]{0}', space=sflag, size = 0x4, scoped, tag = 'scoped memory for tpu_custom_call.1']
    #allocation5 [shape = 'u8[8192]{0}', space=vmem, size = 0x2000, scoped, tag = 'input window, operand 1, single buffered']
    #allocation6 [shape = 's32[1]{0}', space=sflag, size = 0x4, scoped, tag = 'scoped memory for tpu_custom_call.1']
    #allocation7 [shape = 'u8[2097152]{0}', space=vmem, size = 0x200000, scoped, tag = 'input window, operand 3, single buffered']
    #allocation8 [shape = 'u8[4096]{0}', space=vmem, size = 0x1000, scoped, tag = 'input window, operand 4, single buffered']
    #allocation9 [shape = 's32[1]{0}', space=sflag, size = 0x4, scoped, tag = 'scoped memory for tpu_custom_call.1']
    #allocation10 [shape = 'u8[8192]{0}', space=vmem, size = 0x2000, scoped, tag = 'output window, operand 0, single buffered']
    %10 = vsyncpa [#allocation3], 0
    %11 = vsyncpa [#allocation6], 0
    %12 = vsyncpa [#allocation9], 0
    %13 = vsyncpa [#allocation4], 0
    // Predicated region
    $region2: #{tpu_custom_call.1} parent=1 // pred_check
      _
    $region3: #{tpu_custom_call.1} parent=1 // pred_check_branch
      %15 = sbr.rel (0) target = $region5
    $region4: #{tpu_custom_call.1} parent=1 // pred_region
      %s17 = ssub.s32 256, 256
      %18 = vsyncadd [#allocation3], %s17
      %s20 = sshll.u32 [#allocation2], 4
      %s21 = int_to_ptr.vmem [resolvable:$true] %s20
      %23 = dma.hbm_to_vmem [thread:$0]  %s0, 256, %s21, [#allocation3]
    $region5: #{tpu_custom_call.1} parent=1 // pred_fallthru
      _
    // Predicated region
    $region6: #{tpu_custom_call.1} parent=1 // pred_check
      _
    $region7: #{tpu_custom_call.1} parent=1 // pred_check_branch
      %25 = sbr.rel (0) target = $region9
    $region8: #{tpu_custom_call.1} parent=1 // pred_region
      %s27 = ssub.s32 256, 256
      %28 = vsyncadd [#allocation6], %s27
      %s30 = sshll.u32 [#allocation5], 4
      %s31 = int_to_ptr.vmem [resolvable:$true] %s30
      %33 = dma.hbm_to_vmem [thread:$0]  %s1, 256, %s31, [#allocation6]
    $region9: #{tpu_custom_call.1} parent=1 // pred_fallthru
      _
    // Predicated region
    $region10: #{tpu_custom_call.1} parent=1 // pred_check
      _
    $region11: #{tpu_custom_call.1} parent=1 // pred_check_branch
      %35 = sbr.rel (0) target = $region13
    $region12: #{tpu_custom_call.1} parent=1 // pred_region
      _
    $region13: #{tpu_custom_call.1} parent=1 // pred_fallthru
      _
    // Predicated region
    $region14: #{tpu_custom_call.1} parent=1 // pred_check
      _
    $region15: #{tpu_custom_call.1} parent=1 // pred_check_branch
      %37 = sbr.rel (0) target = $region17
    $region16: #{tpu_custom_call.1} parent=1 // pred_region
      %s39 = ssub.s32 65536, 65536
      %40 = vsyncadd [#allocation6], %s39
      %s41 = sshll.u32 [#allocation7], 4
      %s42 = int_to_ptr.vmem [resolvable:$true] %s41
      %47 = dma.hbm_to_vmem [thread:$0]  %s3, 65536, %s42, [#allocation6], 512, 512, 32
    $region17: #{tpu_custom_call.1} parent=1 // pred_fallthru
      _
    // Predicated region
    $region18: #{tpu_custom_call.1} parent=1 // pred_check
      _
    $region19: #{tpu_custom_call.1} parent=1 // pred_check_branch
      %49 = sbr.rel (0) target = $region21
    $region20: #{tpu_custom_call.1} parent=1 // pred_region
      %s51 = ssub.s32 128, 128
      %52 = vsyncadd [#allocation9], %s51
      %s54 = sshll.u32 [#allocation8], 4
      %s55 = int_to_ptr.vmem [resolvable:$true] %s54
      %57 = dma.hbm_to_vmem [thread:$0]  %s4, 128, %s55, [#allocation9]
    $region21: #{tpu_custom_call.1} parent=1 // pred_fallthru
      _
    // Predicated region
    $region22: #{tpu_custom_call.1} parent=1 // pred_check
      _
    $region23: #{tpu_custom_call.1} parent=1 // pred_check_branch
      %59 = sbr.rel (0) target = $region25
    $region24: #{tpu_custom_call.1} parent=1 // pred_region
      %60 = dma.done [#allocation3], 256
    $region25: #{tpu_custom_call.1} parent=1 // pred_fallthru
      _
    // Predicated region
    $region26: #{tpu_custom_call.1} parent=1 // pred_check
      _
    $region27: #{tpu_custom_call.1} parent=1 // pred_check_branch
      %62 = sbr.rel (0) target = $region29
    $region28: #{tpu_custom_call.1} parent=1 // pred_region
      %63 = dma.done [#allocation6], 256
    $region29: #{tpu_custom_call.1} parent=1 // pred_fallthru
      _
    // Predicated region
    $region30: #{tpu_custom_call.1} parent=1 // pred_check
      _
    $region31: #{tpu_custom_call.1} parent=1 // pred_check_branch
      %65 = sbr.rel (0) target = $region33
    $region32: #{tpu_custom_call.1} parent=1 // pred_region
      %66 = dma.done [#allocation6], 65536
    $region33: #{tpu_custom_call.1} parent=1 // pred_fallthru
      _
    // Predicated region
    $region34: #{tpu_custom_call.1} parent=1 // pred_check
      _
    $region35: #{tpu_custom_call.1} parent=1 // pred_check_branch
      %68 = sbr.rel (0) target = $region37
    $region36: #{tpu_custom_call.1} parent=1 // pred_region
      %69 = dma.done [#allocation9], 128
    $region37: #{tpu_custom_call.1} parent=1 // pred_fallthru
      _
    %v70 = vld [vmem:[%s2] sm:$0x3]
    %v71 = vmul.f32 %v70, %v70
    %v72 = vadd.f32 %v71, 1.0
    %v73 = vrsqrt.pop %v72
    %v74 = vsub.f32 0.0, %v70
    %v75 = vadd.f32 %v71, 1.0
    %v76 = vlog2.pop %v75
    %v77 = vmul.f32 %v76, 0.6931472
    %v78 = vmul.f32 -0.5, %v71
    %v79 = vadd.f32 %v78, 1.0
    %v80 = vmul.f32 %v79, %v71
    %v81 = vand.u32 2147483647, %v71
    %vm82 = vcmp.lt.f32.partialorder %v81, 0.0004427343
    %v83 = vsel %vm82, %v80, %v77
    %v84 = vmul.f32 %v83, 39.8
    %v85 = vadd.f32 %v84, 0.01
    %v86 = vrsqrt.pop %v85
    %v87 = vmul.f32 %v85, %v86
    %vm88 = vcmp.eq.f32.partialorder %v85, inf
    %v89 = vsel %vm88, %v85, %v87
    %vm90 = vcmp.eq.f32.partialorder %v85, 0.0
    %v91 = vand.u32 %v85, 2147483648
    %v92 = vsel %vm90, %v91, %v89
    %v93 = vsub.f32 %v92, 0.1
    %v94 = vrcp.pop 19.9
    %v95 = vmul.f32 %v93, %v94
    %v96 = vmul.f32 %v95, 999.0
    %v97 = vld [vmem:[#allocation2] sm:$0xff]
    %v98 = vld [vmem:[#allocation2 + $0x8] sm:$0xff]
    %100 = vset.pattern.permute.xlu0 0
    %101 = vperm.xlu0 %100, %v73
    %v102 = vpop.permute.xlu0 %101
    %v104 = vunpack.c.l.s4 269488144
    %v105 = vunpack.c.0.s8 %v104
    %v106 = vlaneseq
    %v107 = vshrl.u32 %v106, 7
    %v108 = vsub.s32 %v105, %v107
    %v109 = vrot.slane %v102, %v108
    %v111 = vmul.f32 %v97, %v109
    %v112 = vmul.f32 %v98, %v109
    %v115 = vcombine.high %v111, %v111
    %v117 = vunpack.c.l.s4 1983009808
    %v118 = vunpack.c.0.s8 %v117
    %v119 = vlaneseq
    %v120 = vshrl.u32 %v119, 7
    %v121 = vsub.s32 %v118, %v120
    %v122 = vrot.slane %v111, %v121
    %v124 = vunpack.c.l.s4 1983009808
    %v125 = vunpack.c.0.s8 %v124
    %v126 = vlaneseq
    %v127 = vshrl.u32 %v126, 7
    %v128 = vsub.s32 %v125, %v127
    %v129 = vrot.slane %v115, %v128
    %v130 = vcombine.high %v122, %v122
    %v131 = vcombine.high %v129, %v129
    %v132 = vcombine.high %v112, %v112
    %v134 = vunpack.c.l.s4 1983009808
    %v135 = vunpack.c.0.s8 %v134
    %v136 = vlaneseq
    %v137 = vshrl.u32 %v136, 7
    %v138 = vsub.s32 %v135, %v137
    %v139 = vrot.slane %v112, %v138
    %v141 = vunpack.c.l.s4 1983009808
    %v142 = vunpack.c.0.s8 %v141
    %v143 = vlaneseq
    %v144 = vshrl.u32 %v143, 7
    %v145 = vsub.s32 %v142, %v144
    %v146 = vrot.slane %v132, %v145
    %v147 = vcombine.high %v139, %v139
    %v148 = vcombine.high %v146, %v146
    %v157 = vpack.c.bf16 %v122, %v122
    %v158 = vpack.c.bf16 %v130, %v130
    %v159 = vpack.c.bf16 %v129, %v129
    %v160 = vpack.c.bf16 %v131, %v131
    %v161 = vpack.c.bf16 %v139, %v139
    %v162 = vpack.c.bf16 %v147, %v147
    %v163 = vpack.c.bf16 %v146, %v146
    %v164 = vpack.c.bf16 %v148, %v148
    %v165 = vld [vmem:[#allocation7] sm:$0xff]
    %v166 = vld [vmem:[#allocation7 + $0x8] sm:$0xff]
    %v167 = vld [vmem:[#allocation7 + $0x10] sm:$0xff]
    %v168 = vld [vmem:[#allocation7 + $0x18] sm:$0xff]
    %v169 = vld [vmem:[#allocation7 + $0x20] sm:$0xff]
    %v170 = vld [vmem:[#allocation7 + $0x28] sm:$0xff]
    %v171 = vld [vmem:[#allocation7 + $0x30] sm:$0xff]
    %v172 = vld [vmem:[#allocation7 + $0x38] sm:$0xff]
    %v173 = vld [vmem:[#allocation7 + $0x40] sm:$0xff]
    %v174 = vld [vmem:[#allocation7 + $0x48] sm:$0xff]
    %v175 = vld [vmem:[#allocation7 + $0x50] sm:$0xff]
    %v176 = vld [vmem:[#allocation7 + $0x58] sm:$0xff]
    %v177 = vld [vmem:[#allocation7 + $0x60] sm:$0xff]
    %v178 = vld [vmem:[#allocation7 + $0x68] sm:$0xff]
    %v179 = vld [vmem:[#allocation7 + $0x70] sm:$0xff]
    %v180 = vld [vmem:[#allocation7 + $0x78] sm:$0xff]
    %v181 = vld [vmem:[#allocation7 + $0x80] sm:$0xff]
    %v182 = vld [vmem:[#allocation7 + $0x88] sm:$0xff]
    %v183 = vld [vmem:[#allocation7 + $0x90] sm:$0xff]
    %v184 = vld [vmem:[#allocation7 + $0x98] sm:$0xff]
    %v185 = vld [vmem:[#allocation7 + $0xa0] sm:$0xff]
    %v186 = vld [vmem:[#allocation7 + $0xa8] sm:$0xff]
    %v187 = vld [vmem:[#allocation7 + $0xb0] sm:$0xff]
    %v188 = vld [vmem:[#allocation7 + $0xb8] sm:$0xff]
    %v189 = vld [vmem:[#allocation7 + $0xc0] sm:$0xff]
    %v190 = vld [vmem:[#allocation7 + $0xc8] sm:$0xff]
    %v191 = vld [vmem:[#allocation7 + $0xd0] sm:$0xff]
    %v192 = vld [vmem:[#allocation7 + $0xd8] sm:$0xff]
    %v193 = vld [vmem:[#allocation7 + $0xe0] sm:$0xff]
    %v194 = vld [vmem:[#allocation7 + $0xe8] sm:$0xff]
    %v195 = vld [vmem:[#allocation7 + $0xf0] sm:$0xff]
    %v196 = vld [vmem:[#allocation7 + $0xf8] sm:$0xff]
    %v197 = vld [vmem:[#allocation7 + $0x100] sm:$0xff]
    %v198 = vld [vmem:[#allocation7 + $0x108] sm:$0xff]
    %v199 = vld [vmem:[#allocation7 + $0x110] sm:$0xff]
    %v200 = vld [vmem:[#allocation7 + $0x118] sm:$0xff]
    %v201 = vld [vmem:[#allocation7 + $0x120] sm:$0xff]
    %v202 = vld [vmem:[#allocation7 + $0x128] sm:$0xff]
    %v203 = vld [vmem:[#allocation7 + $0x130] sm:$0xff]
    %v204 = vld [vmem:[#allocation7 + $0x138] sm:$0xff]
    %v205 = vld [vmem:[#allocation7 + $0x140] sm:$0xff]
    %v206 = vld [vmem:[#allocation7 + $0x148] sm:$0xff]
    %v207 = vld [vmem:[#allocation7 + $0x150] sm:$0xff]
    %v208 = vld [vmem:[#allocation7 + $0x158] sm:$0xff]
    %v209 = vld [vmem:[#allocation7 + $0x160] sm:$0xff]
    %v210 = vld [vmem:[#allocation7 + $0x168] sm:$0xff]
    %v211 = vld [vmem:[#allocation7 + $0x170] sm:$0xff]
    %v212 = vld [vmem:[#allocation7 + $0x178] sm:$0xff]
    %v213 = vld [vmem:[#allocation7 + $0x180] sm:$0xff]
    %v214 = vld [vmem:[#allocation7 + $0x188] sm:$0xff]
    %v215 = vld [vmem:[#allocation7 + $0x190] sm:$0xff]
    %v216 = vld [vmem:[#allocation7 + $0x198] sm:$0xff]
    %v217 = vld [vmem:[#allocation7 + $0x1a0] sm:$0xff]
    %v218 = vld [vmem:[#allocation7 + $0x1a8] sm:$0xff]
    %v219 = vld [vmem:[#allocation7 + $0x1b0] sm:$0xff]
    %v220 = vld [vmem:[#allocation7 + $0x1b8] sm:$0xff]
    %v221 = vld [vmem:[#allocation7 + $0x1c0] sm:$0xff]
    %v222 = vld [vmem:[#allocation7 + $0x1c8] sm:$0xff]
    %v223 = vld [vmem:[#allocation7 + $0x1d0] sm:$0xff]
    %v224 = vld [vmem:[#allocation7 + $0x1d8] sm:$0xff]
    %v225 = vld [vmem:[#allocation7 + $0x1e0] sm:$0xff]
    %v226 = vld [vmem:[#allocation7 + $0x1e8] sm:$0xff]
    %v227 = vld [vmem:[#allocation7 + $0x1f0] sm:$0xff]
    %v228 = vld [vmem:[#allocation7 + $0x1f8] sm:$0xff]
    %v229 = vld [vmem:[#allocation7 + $0x200] sm:$0xff]
    %v230 = vld [vmem:[#allocation7 + $0x208] sm:$0xff]
    %v231 = vld [vmem:[#allocation7 + $0x210] sm:$0xff]
    %v232 = vld [vmem:[#allocation7 + $0x218] sm:$0xff]
    %v233 = vld [vmem:[#allocation7 + $0x220] sm:$0xff]
    %v234 = vld [vmem:[#allocation7 + $0x228] sm:$0xff]
    %v235 = vld [vmem:[#allocation7 + $0x230] sm:$0xff]
    %v236 = vld [vmem:[#allocation7 + $0x238] sm:$0xff]
    %v237 = vld [vmem:[#allocation7 + $0x240] sm:$0xff]
    %v238 = vld [vmem:[#allocation7 + $0x248] sm:$0xff]
    %v239 = vld [vmem:[#allocation7 + $0x250] sm:$0xff]
    %v240 = vld [vmem:[#allocation7 + $0x258] sm:$0xff]
    %v241 = vld [vmem:[#allocation7 + $0x260] sm:$0xff]
    %v242 = vld [vmem:[#allocation7 + $0x268] sm:$0xff]
    %v243 = vld [vmem:[#allocation7 + $0x270] sm:$0xff]
    %v244 = vld [vmem:[#allocation7 + $0x278] sm:$0xff]
    %v245 = vld [vmem:[#allocation7 + $0x280] sm:$0xff]
    %v246 = vld [vmem:[#allocation7 + $0x288] sm:$0xff]
    %v247 = vld [vmem:[#allocation7 + $0x290] sm:$0xff]
    %v248 = vld [vmem:[#allocation7 + $0x298] sm:$0xff]
    %v249 = vld [vmem:[#allocation7 + $0x2a0] sm:$0xff]
    %v250 = vld [vmem:[#allocation7 + $0x2a8] sm:$0xff]
    %v251 = vld [vmem:[#allocation7 + $0x2b0] sm:$0xff]
    %v252 = vld [vmem:[#allocation7 + $0x2b8] sm:$0xff]
    %v253 = vld [vmem:[#allocation7 + $0x2c0] sm:$0xff]
    %v254 = vld [vmem:[#allocation7 + $0x2c8] sm:$0xff]
    %v255 = vld [vmem:[#allocation7 + $0x2d0] sm:$0xff]
    %v256 = vld [vmem:[#allocation7 + $0x2d8] sm:$0xff]
    %v257 = vld [vmem:[#allocation7 + $0x2e0] sm:$0xff]
    %v258 = vld [vmem:[#allocation7 + $0x2e8] sm:$0xff]
    %v259 = vld [vmem:[#allocation7 + $0x2f0] sm:$0xff]
    %v260 = vld [vmem:[#allocation7 + $0x2f8] sm:$0xff]
    %v261 = vld [vmem:[#allocation7 + $0x300] sm:$0xff]
    %v262 = vld [vmem:[#allocation7 + $0x308] sm:$0xff]
    %v263 = vld [vmem:[#allocation7 + $0x310] sm:$0xff]
    %v264 = vld [vmem:[#allocation7 + $0x318] sm:$0xff]
    %v265 = vld [vmem:[#allocation7 + $0x320] sm:$0xff]
    %v266 = vld [vmem:[#allocation7 + $0x328] sm:$0xff]
    %v267 = vld [vmem:[#allocation7 + $0x330] sm:$0xff]
    %v268 = vld [vmem:[#allocation7 + $0x338] sm:$0xff]
    %v269 = vld [vmem:[#allocation7 + $0x340] sm:$0xff]
    %v270 = vld [vmem:[#allocation7 + $0x348] sm:$0xff]
    %v271 = vld [vmem:[#allocation7 + $0x350] sm:$0xff]
    %v272 = vld [vmem:[#allocation7 + $0x358] sm:$0xff]
    %v273 = vld [vmem:[#allocation7 + $0x360] sm:$0xff]
    %v274 = vld [vmem:[#allocation7 + $0x368] sm:$0xff]
    %v275 = vld [vmem:[#allocation7 + $0x370] sm:$0xff]
    %v276 = vld [vmem:[#allocation7 + $0x378] sm:$0xff]
    %v277 = vld [vmem:[#allocation7 + $0x380] sm:$0xff]
    %v278 = vld [vmem:[#allocation7 + $0x388] sm:$0xff]
    %v279 = vld [vmem:[#allocation7 + $0x390] sm:$0xff]
    %v280 = vld [vmem:[#allocation7 + $0x398] sm:$0xff]
    %v281 = vld [vmem:[#allocation7 + $0x3a0] sm:$0xff]
    %v282 = vld [vmem:[#allocation7 + $0x3a8] sm:$0xff]
    %v283 = vld [vmem:[#allocation7 + $0x3b0] sm:$0xff]
    %v284 = vld [vmem:[#allocation7 + $0x3b8] sm:$0xff]
    %v285 = vld [vmem:[#allocation7 + $0x3c0] sm:$0xff]
    %v286 = vld [vmem:[#allocation7 + $0x3c8] sm:$0xff]
    %v287 = vld [vmem:[#allocation7 + $0x3d0] sm:$0xff]
    %v288 = vld [vmem:[#allocation7 + $0x3d8] sm:$0xff]
    %v289 = vld [vmem:[#allocation7 + $0x3e0] sm:$0xff]
    %v290 = vld [vmem:[#allocation7 + $0x3e8] sm:$0xff]
    %v291 = vld [vmem:[#allocation7 + $0x3f0] sm:$0xff]
    %v292 = vld [vmem:[#allocation7 + $0x3f8] sm:$0xff]
    %v293 = vld [vmem:[#allocation7 + $0x400] sm:$0xff]
    %v294 = vld [vmem:[#allocation7 + $0x408] sm:$0xff]
    %v295 = vld [vmem:[#allocation7 + $0x410] sm:$0xff]
    %v296 = vld [vmem:[#allocation7 + $0x418] sm:$0xff]
    %v297 = vld [vmem:[#allocation7 + $0x420] sm:$0xff]
    %v298 = vld [vmem:[#allocation7 + $0x428] sm:$0xff]
    %v299 = vld [vmem:[#allocation7 + $0x430] sm:$0xff]
    %v300 = vld [vmem:[#allocation7 + $0x438] sm:$0xff]
    %v301 = vld [vmem:[#allocation7 + $0x440] sm:$0xff]
    %v302 = vld [vmem:[#allocation7 + $0x448] sm:$0xff]
    %v303 = vld [vmem:[#allocation7 + $0x450] sm:$0xff]
    %v304 = vld [vmem:[#allocation7 + $0x458] sm:$0xff]
    %v305 = vld [vmem:[#allocation7 + $0x460] sm:$0xff]
    %v306 = vld [vmem:[#allocation7 + $0x468] sm:$0xff]
    %v307 = vld [vmem:[#allocation7 + $0x470] sm:$0xff]
    %v308 = vld [vmem:[#allocation7 + $0x478] sm:$0xff]
    %v309 = vld [vmem:[#allocation7 + $0x480] sm:$0xff]
    %v310 = vld [vmem:[#allocation7 + $0x488] sm:$0xff]
    %v311 = vld [vmem:[#allocation7 + $0x490] sm:$0xff]
    %v312 = vld [vmem:[#allocation7 + $0x498] sm:$0xff]
    %v313 = vld [vmem:[#allocation7 + $0x4a0] sm:$0xff]
    %v314 = vld [vmem:[#allocation7 + $0x4a8] sm:$0xff]
    %v315 = vld [vmem:[#allocation7 + $0x4b0] sm:$0xff]
    %v316 = vld [vmem:[#allocation7 + $0x4b8] sm:$0xff]
    %v317 = vld [vmem:[#allocation7 + $0x4c0] sm:$0xff]
    %v318 = vld [vmem:[#allocation7 + $0x4c8] sm:$0xff]
    %v319 = vld [vmem:[#allocation7 + $0x4d0] sm:$0xff]
    %v320 = vld [vmem:[#allocation7 + $0x4d8] sm:$0xff]
    %v321 = vld [vmem:[#allocation7 + $0x4e0] sm:$0xff]
    %v322 = vld [vmem:[#allocation7 + $0x4e8] sm:$0xff]
    %v323 = vld [vmem:[#allocation7 + $0x4f0] sm:$0xff]
    %v324 = vld [vmem:[#allocation7 + $0x4f8] sm:$0xff]
    %v325 = vld [vmem:[#allocation7 + $0x500] sm:$0xff]
    %v326 = vld [vmem:[#allocation7 + $0x508] sm:$0xff]
    %v327 = vld [vmem:[#allocation7 + $0x510] sm:$0xff]
    %v328 = vld [vmem:[#allocation7 + $0x518] sm:$0xff]
    %v329 = vld [vmem:[#allocation7 + $0x520] sm:$0xff]
    %v330 = vld [vmem:[#allocation7 + $0x528] sm:$0xff]
    %v331 = vld [vmem:[#allocation7 + $0x530] sm:$0xff]
    %v332 = vld [vmem:[#allocation7 + $0x538] sm:$0xff]
    %v333 = vld [vmem:[#allocation7 + $0x540] sm:$0xff]
    %v334 = vld [vmem:[#allocation7 + $0x548] sm:$0xff]
    %v335 = vld [vmem:[#allocation7 + $0x550] sm:$0xff]
    %v336 = vld [vmem:[#allocation7 + $0x558] sm:$0xff]
    %v337 = vld [vmem:[#allocation7 + $0x560] sm:$0xff]
    %v338 = vld [vmem:[#allocation7 + $0x568] sm:$0xff]
    %v339 = vld [vmem:[#allocation7 + $0x570] sm:$0xff]
    %v340 = vld [vmem:[#allocation7 + $0x578] sm:$0xff]
    %v341 = vld [vmem:[#allocation7 + $0x580] sm:$0xff]
    %v342 = vld [vmem:[#allocation7 + $0x588] sm:$0xff]
    %v343 = vld [vmem:[#allocation7 + $0x590] sm:$0xff]
    %v344 = vld [vmem:[#allocation7 + $0x598] sm:$0xff]
    %v345 = vld [vmem:[#allocation7 + $0x5a0] sm:$0xff]
    %v346 = vld [vmem:[#allocation7 + $0x5a8] sm:$0xff]
    %v347 = vld [vmem:[#allocation7 + $0x5b0] sm:$0xff]
    %v348 = vld [vmem:[#allocation7 + $0x5b8] sm:$0xff]
    %v349 = vld [vmem:[#allocation7 + $0x5c0] sm:$0xff]
    %v350 = vld [vmem:[#allocation7 + $0x5c8] sm:$0xff]
    %v351 = vld [vmem:[#allocation7 + $0x5d0] sm:$0xff]
    %v352 = vld [vmem:[#allocation7 + $0x5d8] sm:$0xff]
    %v353 = vld [vmem:[#allocation7 + $0x5e0] sm:$0xff]
    %v354 = vld [vmem:[#allocation7 + $0x5e8] sm:$0xff]
    %v355 = vld [vmem:[#allocation7 + $0x5f0] sm:$0xff]
    %v356 = vld [vmem:[#allocation7 + $0x5f8] sm:$0xff]
    %v357 = vld [vmem:[#allocation7 + $0x600] sm:$0xff]
    %v358 = vld [vmem:[#allocation7 + $0x608] sm:$0xff]
    %v359 = vld [vmem:[#allocation7 + $0x610] sm:$0xff]
    %v360 = vld [vmem:[#allocation7 + $0x618] sm:$0xff]
    %v361 = vld [vmem:[#allocation7 + $0x620] sm:$0xff]
    %v362 = vld [vmem:[#allocation7 + $0x628] sm:$0xff]
    %v363 = vld [vmem:[#allocation7 + $0x630] sm:$0xff]
    %v364 = vld [vmem:[#allocation7 + $0x638] sm:$0xff]
    %v365 = vld [vmem:[#allocation7 + $0x640] sm:$0xff]
    %v366 = vld [vmem:[#allocation7 + $0x648] sm:$0xff]
    %v367 = vld [vmem:[#allocation7 + $0x650] sm:$0xff]
    %v368 = vld [vmem:[#allocation7 + $0x658] sm:$0xff]
    %v369 = vld [vmem:[#allocation7 + $0x660] sm:$0xff]
    %v370 = vld [vmem:[#allocation7 + $0x668] sm:$0xff]
    %v371 = vld [vmem:[#allocation7 + $0x670] sm:$0xff]
    %v372 = vld [vmem:[#allocation7 + $0x678] sm:$0xff]
    %v373 = vld [vmem:[#allocation7 + $0x680] sm:$0xff]
    %v374 = vld [vmem:[#allocation7 + $0x688] sm:$0xff]
    %v375 = vld [vmem:[#allocation7 + $0x690] sm:$0xff]
    %v376 = vld [vmem:[#allocation7 + $0x698] sm:$0xff]
    %v377 = vld [vmem:[#allocation7 + $0x6a0] sm:$0xff]
    %v378 = vld [vmem:[#allocation7 + $0x6a8] sm:$0xff]
    %v379 = vld [vmem:[#allocation7 + $0x6b0] sm:$0xff]
    %v380 = vld [vmem:[#allocation7 + $0x6b8] sm:$0xff]
    %v381 = vld [vmem:[#allocation7 + $0x6c0] sm:$0xff]
    %v382 = vld [vmem:[#allocation7 + $0x6c8] sm:$0xff]
    %v383 = vld [vmem:[#allocation7 + $0x6d0] sm:$0xff]
    %v384 = vld [vmem:[#allocation7 + $0x6d8] sm:$0xff]
    %v385 = vld [vmem:[#allocation7 + $0x6e0] sm:$0xff]
    %v386 = vld [vmem:[#allocation7 + $0x6e8] sm:$0xff]
    %v387 = vld [vmem:[#allocation7 + $0x6f0] sm:$0xff]
    %v388 = vld [vmem:[#allocation7 + $0x6f8] sm:$0xff]
    %v389 = vld [vmem:[#allocation7 + $0x700] sm:$0xff]
    %v390 = vld [vmem:[#allocation7 + $0x708] sm:$0xff]
    %v391 = vld [vmem:[#allocation7 + $0x710] sm:$0xff]
    %v392 = vld [vmem:[#allocation7 + $0x718] sm:$0xff]
    %v393 = vld [vmem:[#allocation7 + $0x720] sm:$0xff]
    %v394 = vld [vmem:[#allocation7 + $0x728] sm:$0xff]
    %v395 = vld [vmem:[#allocation7 + $0x730] sm:$0xff]
    %v396 = vld [vmem:[#allocation7 + $0x738] sm:$0xff]
    %v397 = vld [vmem:[#allocation7 + $0x740] sm:$0xff]
    %v398 = vld [vmem:[#allocation7 + $0x748] sm:$0xff]
    %v399 = vld [vmem:[#allocation7 + $0x750] sm:$0xff]
    %v400 = vld [vmem:[#allocation7 + $0x758] sm:$0xff]
    %v401 = vld [vmem:[#allocation7 + $0x760] sm:$0xff]
    %v402 = vld [vmem:[#allocation7 + $0x768] sm:$0xff]
    %v403 = vld [vmem:[#allocation7 + $0x770] sm:$0xff]
    %v404 = vld [vmem:[#allocation7 + $0x778] sm:$0xff]
    %v405 = vld [vmem:[#allocation7 + $0x780] sm:$0xff]
    %v406 = vld [vmem:[#allocation7 + $0x788] sm:$0xff]
    %v407 = vld [vmem:[#allocation7 + $0x790] sm:$0xff]
    %v408 = vld [vmem:[#allocation7 + $0x798] sm:$0xff]
    %v409 = vld [vmem:[#allocation7 + $0x7a0] sm:$0xff]
    %v410 = vld [vmem:[#allocation7 + $0x7a8] sm:$0xff]
    %v411 = vld [vmem:[#allocation7 + $0x7b0] sm:$0xff]
    %v412 = vld [vmem:[#allocation7 + $0x7b8] sm:$0xff]
    %v413 = vld [vmem:[#allocation7 + $0x7c0] sm:$0xff]
    %v414 = vld [vmem:[#allocation7 + $0x7c8] sm:$0xff]
    %v415 = vld [vmem:[#allocation7 + $0x7d0] sm:$0xff]
    %v416 = vld [vmem:[#allocation7 + $0x7d8] sm:$0xff]
    %v417 = vld [vmem:[#allocation7 + $0x7e0] sm:$0xff]
    %v418 = vld [vmem:[#allocation7 + $0x7e8] sm:$0xff]
    %v419 = vld [vmem:[#allocation7 + $0x7f0] sm:$0xff]
    %v420 = vld [vmem:[#allocation7 + $0x7f8] sm:$0xff]
    %v421 = vld [vmem:[#allocation7 + $0x800] sm:$0xff]
    %v422 = vld [vmem:[#allocation7 + $0x808] sm:$0xff]
    %v423 = vld [vmem:[#allocation7 + $0x810] sm:$0xff]
    %v424 = vld [vmem:[#allocation7 + $0x818] sm:$0xff]
    %v425 = vld [vmem:[#allocation7 + $0x820] sm:$0xff]
    %v426 = vld [vmem:[#allocation7 + $0x828] sm:$0xff]
    %v427 = vld [vmem:[#allocation7 + $0x830] sm:$0xff]
    %v428 = vld [vmem:[#allocation7 + $0x838] sm:$0xff]
    %v429 = vld [vmem:[#allocation7 + $0x840] sm:$0xff]
    %v430 = vld [vmem:[#allocation7 + $0x848] sm:$0xff]
    %v431 = vld [vmem:[#allocation7 + $0x850] sm:$0xff]
    %v432 = vld [vmem:[#allocation7 + $0x858] sm:$0xff]
    %v433 = vld [vmem:[#allocation7 + $0x860] sm:$0xff]
    %v434 = vld [vmem:[#allocation7 + $0x868] sm:$0xff]
    %v435 = vld [vmem:[#allocation7 + $0x870] sm:$0xff]
    %v436 = vld [vmem:[#allocation7 + $0x878] sm:$0xff]
    %v437 = vld [vmem:[#allocation7 + $0x880] sm:$0xff]
    %v438 = vld [vmem:[#allocation7 + $0x888] sm:$0xff]
    %v439 = vld [vmem:[#allocation7 + $0x890] sm:$0xff]
    %v440 = vld [vmem:[#allocation7 + $0x898] sm:$0xff]
    %v441 = vld [vmem:[#allocation7 + $0x8a0] sm:$0xff]
    %v442 = vld [vmem:[#allocation7 + $0x8a8] sm:$0xff]
    %v443 = vld [vmem:[#allocation7 + $0x8b0] sm:$0xff]
    %v444 = vld [vmem:[#allocation7 + $0x8b8] sm:$0xff]
    %v445 = vld [vmem:[#allocation7 + $0x8c0] sm:$0xff]
    %v446 = vld [vmem:[#allocation7 + $0x8c8] sm:$0xff]
    %v447 = vld [vmem:[#allocation7 + $0x8d0] sm:$0xff]
    %v448 = vld [vmem:[#allocation7 + $0x8d8] sm:$0xff]
    %v449 = vld [vmem:[#allocation7 + $0x8e0] sm:$0xff]
    %v450 = vld [vmem:[#allocation7 + $0x8e8] sm:$0xff]
    %v451 = vld [vmem:[#allocation7 + $0x8f0] sm:$0xff]
    %v452 = vld [vmem:[#allocation7 + $0x8f8] sm:$0xff]
    %v453 = vld [vmem:[#allocation7 + $0x900] sm:$0xff]
    %v454 = vld [vmem:[#allocation7 + $0x908] sm:$0xff]
    %v455 = vld [vmem:[#allocation7 + $0x910] sm:$0xff]
    %v456 = vld [vmem:[#allocation7 + $0x918] sm:$0xff]
    %v457 = vld [vmem:[#allocation7 + $0x920] sm:$0xff]
    %v458 = vld [vmem:[#allocation7 + $0x928] sm:$0xff]
    %v459 = vld [vmem:[#allocation7 + $0x930] sm:$0xff]
    %v460 = vld [vmem:[#allocation7 + $0x938] sm:$0xff]
    %v461 = vld [vmem:[#allocation7 + $0x940] sm:$0xff]
    %v462 = vld [vmem:[#allocation7 + $0x948] sm:$0xff]
    %v463 = vld [vmem:[#allocation7 + $0x950] sm:$0xff]
    %v464 = vld [vmem:[#allocation7 + $0x958] sm:$0xff]
    %v465 = vld [vmem:[#allocation7 + $0x960] sm:$0xff]
    %v466 = vld [vmem:[#allocation7 + $0x968] sm:$0xff]
    %v467 = vld [vmem:[#allocation7 + $0x970] sm:$0xff]
    %v468 = vld [vmem:[#allocation7 + $0x978] sm:$0xff]
    %v469 = vld [vmem:[#allocation7 + $0x980] sm:$0xff]
    %v470 = vld [vmem:[#allocation7 + $0x988] sm:$0xff]
    %v471 = vld [vmem:[#allocation7 + $0x990] sm:$0xff]
    %v472 = vld [vmem:[#allocation7 + $0x998] sm:$0xff]
    %v473 = vld [vmem:[#allocation7 + $0x9a0] sm:$0xff]
    %v474 = vld [vmem:[#allocation7 + $0x9a8] sm:$0xff]
    %v475 = vld [vmem:[#allocation7 + $0x9b0] sm:$0xff]
    %v476 = vld [vmem:[#allocation7 + $0x9b8] sm:$0xff]
    %v477 = vld [vmem:[#allocation7 + $0x9c0] sm:$0xff]
    %v478 = vld [vmem:[#allocation7 + $0x9c8] sm:$0xff]
    %v479 = vld [vmem:[#allocation7 + $0x9d0] sm:$0xff]
    %v480 = vld [vmem:[#allocation7 + $0x9d8] sm:$0xff]
    %v481 = vld [vmem:[#allocation7 + $0x9e0] sm:$0xff]
    %v482 = vld [vmem:[#allocation7 + $0x9e8] sm:$0xff]
    %v483 = vld [vmem:[#allocation7 + $0x9f0] sm:$0xff]
    %v484 = vld [vmem:[#allocation7 + $0x9f8] sm:$0xff]
    %v485 = vld [vmem:[#allocation7 + $0xa00] sm:$0xff]
    %v486 = vld [vmem:[#allocation7 + $0xa08] sm:$0xff]
    %v487 = vld [vmem:[#allocation7 + $0xa10] sm:$0xff]
    %v488 = vld [vmem:[#allocation7 + $0xa18] sm:$0xff]
    %v489 = vld [vmem:[#allocation7 + $0xa20] sm:$0xff]
    %v490 = vld [vmem:[#allocation7 + $0xa28] sm:$0xff]
    %v491 = vld [vmem:[#allocation7 + $0xa30] sm:$0xff]
    %v492 = vld [vmem:[#allocation7 + $0xa38] sm:$0xff]
    %v493 = vld [vmem:[#allocation7 + $0xa40] sm:$0xff]
    %v494 = vld [vmem:[#allocation7 + $0xa48] sm:$0xff]
    %v495 = vld [vmem:[#allocation7 + $0xa50] sm:$0xff]
    %v496 = vld [vmem:[#allocation7 + $0xa58] sm:$0xff]
    %v497 = vld [vmem:[#allocation7 + $0xa60] sm:$0xff]
    %v498 = vld [vmem:[#allocation7 + $0xa68] sm:$0xff]
    %v499 = vld [vmem:[#allocation7 + $0xa70] sm:$0xff]
    %v500 = vld [vmem:[#allocation7 + $0xa78] sm:$0xff]
    %v501 = vld [vmem:[#allocation7 + $0xa80] sm:$0xff]
    %v502 = vld [vmem:[#allocation7 + $0xa88] sm:$0xff]
    %v503 = vld [vmem:[#allocation7 + $0xa90] sm:$0xff]
    %v504 = vld [vmem:[#allocation7 + $0xa98] sm:$0xff]
    %v505 = vld [vmem:[#allocation7 + $0xaa0] sm:$0xff]
    %v506 = vld [vmem:[#allocation7 + $0xaa8] sm:$0xff]
    %v507 = vld [vmem:[#allocation7 + $0xab0] sm:$0xff]
    %v508 = vld [vmem:[#allocation7 + $0xab8] sm:$0xff]
    %v509 = vld [vmem:[#allocation7 + $0xac0] sm:$0xff]
    %v510 = vld [vmem:[#allocation7 + $0xac8] sm:$0xff]
    %v511 = vld [vmem:[#allocation7 + $0xad0] sm:$0xff]
    %v512 = vld [vmem:[#allocation7 + $0xad8] sm:$0xff]
    %v513 = vld [vmem:[#allocation7 + $0xae0] sm:$0xff]
    %v514 = vld [vmem:[#allocation7 + $0xae8] sm:$0xff]
    %v515 = vld [vmem:[#allocation7 + $0xaf0] sm:$0xff]
    %v516 = vld [vmem:[#allocation7 + $0xaf8] sm:$0xff]
    %v517 = vld [vmem:[#allocation7 + $0xb00] sm:$0xff]
    %v518 = vld [vmem:[#allocation7 + $0xb08] sm:$0xff]
    %v519 = vld [vmem:[#allocation7 + $0xb10] sm:$0xff]
    %v520 = vld [vmem:[#allocation7 + $0xb18] sm:$0xff]
    %v521 = vld [vmem:[#allocation7 + $0xb20] sm:$0xff]
    %v522 = vld [vmem:[#allocation7 + $0xb28] sm:$0xff]
    %v523 = vld [vmem:[#allocation7 + $0xb30] sm:$0xff]
    %v524 = vld [vmem:[#allocation7 + $0xb38] sm:$0xff]
    %v525 = vld [vmem:[#allocation7 + $0xb40] sm:$0xff]
    %v526 = vld [vmem:[#allocation7 + $0xb48] sm:$0xff]
    %v527 = vld [vmem:[#allocation7 + $0xb50] sm:$0xff]
    %v528 = vld [vmem:[#allocation7 + $0xb58] sm:$0xff]
    %v529 = vld [vmem:[#allocation7 + $0xb60] sm:$0xff]
    %v530 = vld [vmem:[#allocation7 + $0xb68] sm:$0xff]
    %v531 = vld [vmem:[#allocation7 + $0xb70] sm:$0xff]
    %v532 = vld [vmem:[#allocation7 + $0xb78] sm:$0xff]
    %v533 = vld [vmem:[#allocation7 + $0xb80] sm:$0xff]
    %v534 = vld [vmem:[#allocation7 + $0xb88] sm:$0xff]
    %v535 = vld [vmem:[#allocation7 + $0xb90] sm:$0xff]
    %v536 = vld [vmem:[#allocation7 + $0xb98] sm:$0xff]
    %v537 = vld [vmem:[#allocation7 + $0xba0] sm:$0xff]
    %v538 = vld [vmem:[#allocation7 + $0xba8] sm:$0xff]
    %v539 = vld [vmem:[#allocation7 + $0xbb0] sm:$0xff]
    %v540 = vld [vmem:[#allocation7 + $0xbb8] sm:$0xff]
    %v541 = vld [vmem:[#allocation7 + $0xbc0] sm:$0xff]
    %v542 = vld [vmem:[#allocation7 + $0xbc8] sm:$0xff]
    %v543 = vld [vmem:[#allocation7 + $0xbd0] sm:$0xff]
    %v544 = vld [vmem:[#allocation7 + $0xbd8] sm:$0xff]
    %v545 = vld [vmem:[#allocation7 + $0xbe0] sm:$0xff]
    %v546 = vld [vmem:[#allocation7 + $0xbe8] sm:$0xff]
    %v547 = vld [vmem:[#allocation7 + $0xbf0] sm:$0xff]
    %v548 = vld [vmem:[#allocation7 + $0xbf8] sm:$0xff]
    %v549 = vld [vmem:[#allocation7 + $0xc00] sm:$0xff]
    %v550 = vld [vmem:[#allocation7 + $0xc08] sm:$0xff]
    %v551 = vld [vmem:[#allocation7 + $0xc10] sm:$0xff]
    %v552 = vld [vmem:[#allocation7 + $0xc18] sm:$0xff]
    %v553 = vld [vmem:[#allocation7 + $0xc20] sm:$0xff]
    %v554 = vld [vmem:[#allocation7 + $0xc28] sm:$0xff]
    %v555 = vld [vmem:[#allocation7 + $0xc30] sm:$0xff]
    %v556 = vld [vmem:[#allocation7 + $0xc38] sm:$0xff]
    %v557 = vld [vmem:[#allocation7 + $0xc40] sm:$0xff]
    %v558 = vld [vmem:[#allocation7 + $0xc48] sm:$0xff]
    %v559 = vld [vmem:[#allocation7 + $0xc50] sm:$0xff]
    %v560 = vld [vmem:[#allocation7 + $0xc58] sm:$0xff]
    %v561 = vld [vmem:[#allocation7 + $0xc60] sm:$0xff]
    %v562 = vld [vmem:[#allocation7 + $0xc68] sm:$0xff]
    %v563 = vld [vmem:[#allocation7 + $0xc70] sm:$0xff]
    %v564 = vld [vmem:[#allocation7 + $0xc78] sm:$0xff]
    %v565 = vld [vmem:[#allocation7 + $0xc80] sm:$0xff]
    %v566 = vld [vmem:[#allocation7 + $0xc88] sm:$0xff]
    %v567 = vld [vmem:[#allocation7 + $0xc90] sm:$0xff]
    %v568 = vld [vmem:[#allocation7 + $0xc98] sm:$0xff]
    %v569 = vld [vmem:[#allocation7 + $0xca0] sm:$0xff]
    %v570 = vld [vmem:[#allocation7 + $0xca8] sm:$0xff]
    %v571 = vld [vmem:[#allocation7 + $0xcb0] sm:$0xff]
    %v572 = vld [vmem:[#allocation7 + $0xcb8] sm:$0xff]
    %v573 = vld [vmem:[#allocation7 + $0xcc0] sm:$0xff]
    %v574 = vld [vmem:[#allocation7 + $0xcc8] sm:$0xff]
    %v575 = vld [vmem:[#allocation7 + $0xcd0] sm:$0xff]
    %v576 = vld [vmem:[#allocation7 + $0xcd8] sm:$0xff]
    %v577 = vld [vmem:[#allocation7 + $0xce0] sm:$0xff]
    %v578 = vld [vmem:[#allocation7 + $0xce8] sm:$0xff]
    %v579 = vld [vmem:[#allocation7 + $0xcf0] sm:$0xff]
    %v580 = vld [vmem:[#allocation7 + $0xcf8] sm:$0xff]
    %v581 = vld [vmem:[#allocation7 + $0xd00] sm:$0xff]
    %v582 = vld [vmem:[#allocation7 + $0xd08] sm:$0xff]
    %v583 = vld [vmem:[#allocation7 + $0xd10] sm:$0xff]
    %v584 = vld [vmem:[#allocation7 + $0xd18] sm:$0xff]
    %v585 = vld [vmem:[#allocation7 + $0xd20] sm:$0xff]
    %v586 = vld [vmem:[#allocation7 + $0xd28] sm:$0xff]
    %v587 = vld [vmem:[#allocation7 + $0xd30] sm:$0xff]
    %v588 = vld [vmem:[#allocation7 + $0xd38] sm:$0xff]
    %v589 = vld [vmem:[#allocation7 + $0xd40] sm:$0xff]
    %v590 = vld [vmem:[#allocation7 + $0xd48] sm:$0xff]
    %v591 = vld [vmem:[#allocation7 + $0xd50] sm:$0xff]
    %v592 = vld [vmem:[#allocation7 + $0xd58] sm:$0xff]
    %v593 = vld [vmem:[#allocation7 + $0xd60] sm:$0xff]
    %v594 = vld [vmem:[#allocation7 + $0xd68] sm:$0xff]
    %v595 = vld [vmem:[#allocation7 + $0xd70] sm:$0xff]
    %v596 = vld [vmem:[#allocation7 + $0xd78] sm:$0xff]
    %v597 = vld [vmem:[#allocation7 + $0xd80] sm:$0xff]
    %v598 = vld [vmem:[#allocation7 + $0xd88] sm:$0xff]
    %v599 = vld [vmem:[#allocation7 + $0xd90] sm:$0xff]
    %v600 = vld [vmem:[#allocation7 + $0xd98] sm:$0xff]
    %v601 = vld [vmem:[#allocation7 + $0xda0] sm:$0xff]
    %v602 = vld [vmem:[#allocation7 + $0xda8] sm:$0xff]
    %v603 = vld [vmem:[#allocation7 + $0xdb0] sm:$0xff]
    %v604 = vld [vmem:[#allocation7 + $0xdb8] sm:$0xff]
    %v605 = vld [vmem:[#allocation7 + $0xdc0] sm:$0xff]
    %v606 = vld [vmem:[#allocation7 + $0xdc8] sm:$0xff]
    %v607 = vld [vmem:[#allocation7 + $0xdd0] sm:$0xff]
    %v608 = vld [vmem:[#allocation7 + $0xdd8] sm:$0xff]
    %v609 = vld [vmem:[#allocation7 + $0xde0] sm:$0xff]
    %v610 = vld [vmem:[#allocation7 + $0xde8] sm:$0xff]
    %v611 = vld [vmem:[#allocation7 + $0xdf0] sm:$0xff]
    %v612 = vld [vmem:[#allocation7 + $0xdf8] sm:$0xff]
    %v613 = vld [vmem:[#allocation7 + $0xe00] sm:$0xff]
    %v614 = vld [vmem:[#allocation7 + $0xe08] sm:$0xff]
    %v615 = vld [vmem:[#allocation7 + $0xe10] sm:$0xff]
    %v616 = vld [vmem:[#allocation7 + $0xe18] sm:$0xff]
    %v617 = vld [vmem:[#allocation7 + $0xe20] sm:$0xff]
    %v618 = vld [vmem:[#allocation7 + $0xe28] sm:$0xff]
    %v619 = vld [vmem:[#allocation7 + $0xe30] sm:$0xff]
    %v620 = vld [vmem:[#allocation7 + $0xe38] sm:$0xff]
    %v621 = vld [vmem:[#allocation7 + $0xe40] sm:$0xff]
    %v622 = vld [vmem:[#allocation7 + $0xe48] sm:$0xff]
    %v623 = vld [vmem:[#allocation7 + $0xe50] sm:$0xff]
    %v624 = vld [vmem:[#allocation7 + $0xe58] sm:$0xff]
    %v625 = vld [vmem:[#allocation7 + $0xe60] sm:$0xff]
    %v626 = vld [vmem:[#allocation7 + $0xe68] sm:$0xff]
    %v627 = vld [vmem:[#allocation7 + $0xe70] sm:$0xff]
    %v628 = vld [vmem:[#allocation7 + $0xe78] sm:$0xff]
    %v629 = vld [vmem:[#allocation7 + $0xe80] sm:$0xff]
    %v630 = vld [vmem:[#allocation7 + $0xe88] sm:$0xff]
    %v631 = vld [vmem:[#allocation7 + $0xe90] sm:$0xff]
    %v632 = vld [vmem:[#allocation7 + $0xe98] sm:$0xff]
    %v633 = vld [vmem:[#allocation7 + $0xea0] sm:$0xff]
    %v634 = vld [vmem:[#allocation7 + $0xea8] sm:$0xff]
    %v635 = vld [vmem:[#allocation7 + $0xeb0] sm:$0xff]
    %v636 = vld [vmem:[#allocation7 + $0xeb8] sm:$0xff]
    %v637 = vld [vmem:[#allocation7 + $0xec0] sm:$0xff]
    %v638 = vld [vmem:[#allocation7 + $0xec8] sm:$0xff]
    %v639 = vld [vmem:[#allocation7 + $0xed0] sm:$0xff]
    %v640 = vld [vmem:[#allocation7 + $0xed8] sm:$0xff]
    %v641 = vld [vmem:[#allocation7 + $0xee0] sm:$0xff]
    %v642 = vld [vmem:[#allocation7 + $0xee8] sm:$0xff]
    %v643 = vld [vmem:[#allocation7 + $0xef0] sm:$0xff]
    %v644 = vld [vmem:[#allocation7 + $0xef8] sm:$0xff]
    %v645 = vld [vmem:[#allocation7 + $0xf00] sm:$0xff]
    %v646 = vld [vmem:[#allocation7 + $0xf08] sm:$0xff]
    %v647 = vld [vmem:[#allocation7 + $0xf10] sm:$0xff]
    %v648 = vld [vmem:[#allocation7 + $0xf18] sm:$0xff]
    %v649 = vld [vmem:[#allocation7 + $0xf20] sm:$0xff]
    %v650 = vld [vmem:[#allocation7 + $0xf28] sm:$0xff]
    %v651 = vld [vmem:[#allocation7 + $0xf30] sm:$0xff]
    %v652 = vld [vmem:[#allocation7 + $0xf38] sm:$0xff]
    %v653 = vld [vmem:[#allocation7 + $0xf40] sm:$0xff]
    %v654 = vld [vmem:[#allocation7 + $0xf48] sm:$0xff]
    %v655 = vld [vmem:[#allocation7 + $0xf50] sm:$0xff]
    %v656 = vld [vmem:[#allocation7 + $0xf58] sm:$0xff]
    %v657 = vld [vmem:[#allocation7 + $0xf60] sm:$0xff]
    %v658 = vld [vmem:[#allocation7 + $0xf68] sm:$0xff]
    %v659 = vld [vmem:[#allocation7 + $0xf70] sm:$0xff]
    %v660 = vld [vmem:[#allocation7 + $0xf78] sm:$0xff]
    %v661 = vld [vmem:[#allocation7 + $0xf80] sm:$0xff]
    %v662 = vld [vmem:[#allocation7 + $0xf88] sm:$0xff]
    %v663 = vld [vmem:[#allocation7 + $0xf90] sm:$0xff]
    %v664 = vld [vmem:[#allocation7 + $0xf98] sm:$0xff]
    %v665 = vld [vmem:[#allocation7 + $0xfa0] sm:$0xff]
    %v666 = vld [vmem:[#allocation7 + $0xfa8] sm:$0xff]
    %v667 = vld [vmem:[#allocation7 + $0xfb0] sm:$0xff]
    %v668 = vld [vmem:[#allocation7 + $0xfb8] sm:$0xff]
    %v669 = vld [vmem:[#allocation7 + $0xfc0] sm:$0xff]
    %v670 = vld [vmem:[#allocation7 + $0xfc8] sm:$0xff]
    %v671 = vld [vmem:[#allocation7 + $0xfd0] sm:$0xff]
    %v672 = vld [vmem:[#allocation7 + $0xfd8] sm:$0xff]
    %v673 = vld [vmem:[#allocation7 + $0xfe0] sm:$0xff]
    %v674 = vld [vmem:[#allocation7 + $0xfe8] sm:$0xff]
    %v675 = vld [vmem:[#allocation7 + $0xff0] sm:$0xff]
    %v676 = vld [vmem:[#allocation7 + $0xff8] sm:$0xff]
    %v677 = vld [vmem:[#allocation8] sm:$0xff]
    %679 = vset.pattern.permute.xlu0 0
    %680 = vperm.xlu0 %679, %v96
    %v681 = vpop.permute.xlu0 %680
    %v684 = vlaneseq
    %v685 = vshrl.u32 %v684, 7
    %v686 = vsub.s32 0, %v685
    %v687 = vrot.slane %v677, %v686
    %v688 = vlaneseq
    %v689 = vshrl.u32 %v688, 7
    %v690 = vsub.s32 1, %v689
    %v691 = vrot.slane %v677, %v690
    %v692 = vlaneseq
    %v693 = vshrl.u32 %v692, 7
    %v694 = vsub.s32 2, %v693
    %v695 = vrot.slane %v677, %v694
    %v696 = vlaneseq
    %v697 = vshrl.u32 %v696, 7
    %v698 = vsub.s32 3, %v697
    %v699 = vrot.slane %v677, %v698
    %v700 = vlaneseq
    %v701 = vshrl.u32 %v700, 7
    %v702 = vsub.s32 4, %v701
    %v703 = vrot.slane %v677, %v702
    %v704 = vlaneseq
    %v705 = vshrl.u32 %v704, 7
    %v706 = vsub.s32 5, %v705
    %v707 = vrot.slane %v677, %v706
    %v708 = vlaneseq
    %v709 = vshrl.u32 %v708, 7
    %v710 = vsub.s32 6, %v709
    %v711 = vrot.slane %v677, %v710
    %v712 = vlaneseq
    %v713 = vshrl.u32 %v712, 7
    %v714 = vsub.s32 7, %v713
    %v715 = vrot.slane %v677, %v714
    %v724 = vmul.f32 %v681, %v687
    %v725 = vmul.f32 %v681, %v691
    %v726 = vmul.f32 %v681, %v695
    %v727 = vmul.f32 %v681, %v699
    %v728 = vmul.f32 %v681, %v703
    %v729 = vmul.f32 %v681, %v707
    %v730 = vmul.f32 %v681, %v711
    %v731 = vmul.f32 %v681, %v715
    %v1244 = vunpack.c.l.b16 %v165
    %v1245 = vunpack.c.h.b16 %v165
    %v1246 = vunpack.c.l.b16 %v166
    %v1247 = vunpack.c.h.b16 %v166
    %v1248 = vunpack.c.l.b16 %v167
    %v1249 = vunpack.c.h.b16 %v167
    %v1250 = vunpack.c.l.b16 %v168
    %v1251 = vunpack.c.h.b16 %v168
    %v1252 = vunpack.c.l.b16 %v169
    %v1253 = vunpack.c.h.b16 %v169
    %v1254 = vunpack.c.l.b16 %v170
    %v1255 = vunpack.c.h.b16 %v170
    %v1256 = vunpack.c.l.b16 %v171
    %v1257 = vunpack.c.h.b16 %v171
    %v1258 = vunpack.c.l.b16 %v172
    %v1259 = vunpack.c.h.b16 %v172
    %v1260 = vunpack.c.l.b16 %v173
    %v1261 = vunpack.c.h.b16 %v173
    %v1262 = vunpack.c.l.b16 %v174
    %v1263 = vunpack.c.h.b16 %v174
    %v1264 = vunpack.c.l.b16 %v175
    %v1265 = vunpack.c.h.b16 %v175
    %v1266 = vunpack.c.l.b16 %v176
    %v1267 = vunpack.c.h.b16 %v176
    %v1268 = vunpack.c.l.b16 %v177
    %v1269 = vunpack.c.h.b16 %v177
    %v1270 = vunpack.c.l.b16 %v178
    %v1271 = vunpack.c.h.b16 %v178
    %v1272 = vunpack.c.l.b16 %v179
    %v1273 = vunpack.c.h.b16 %v179
    %v1274 = vunpack.c.l.b16 %v180
    %v1275 = vunpack.c.h.b16 %v180
    %v1276 = vunpack.c.l.b16 %v181
    %v1277 = vunpack.c.h.b16 %v181
    %v1278 = vunpack.c.l.b16 %v182
    %v1279 = vunpack.c.h.b16 %v182
    %v1280 = vunpack.c.l.b16 %v183
    %v1281 = vunpack.c.h.b16 %v183
    %v1282 = vunpack.c.l.b16 %v184
    %v1283 = vunpack.c.h.b16 %v184
    %v1284 = vunpack.c.l.b16 %v185
    %v1285 = vunpack.c.h.b16 %v185
    %v1286 = vunpack.c.l.b16 %v186
    %v1287 = vunpack.c.h.b16 %v186
    %v1288 = vunpack.c.l.b16 %v187
    %v1289 = vunpack.c.h.b16 %v187
    %v1290 = vunpack.c.l.b16 %v188
    %v1291 = vunpack.c.h.b16 %v188
    %v1292 = vunpack.c.l.b16 %v189
    %v1293 = vunpack.c.h.b16 %v189
    %v1294 = vunpack.c.l.b16 %v190
    %v1295 = vunpack.c.h.b16 %v190
    %v1296 = vunpack.c.l.b16 %v191
    %v1297 = vunpack.c.h.b16 %v191
    %v1298 = vunpack.c.l.b16 %v192
    %v1299 = vunpack.c.h.b16 %v192
    %v1300 = vunpack.c.l.b16 %v193
    %v1301 = vunpack.c.h.b16 %v193
    %v1302 = vunpack.c.l.b16 %v194
    %v1303 = vunpack.c.h.b16 %v194
    %v1304 = vunpack.c.l.b16 %v195
    %v1305 = vunpack.c.h.b16 %v195
    %v1306 = vunpack.c.l.b16 %v196
    %v1307 = vunpack.c.h.b16 %v196
    %v1308 = vunpack.c.l.b16 %v197
    %v1309 = vunpack.c.h.b16 %v197
    %v1310 = vunpack.c.l.b16 %v198
    %v1311 = vunpack.c.h.b16 %v198
    %v1312 = vunpack.c.l.b16 %v199
    %v1313 = vunpack.c.h.b16 %v199
    %v1314 = vunpack.c.l.b16 %v200
    %v1315 = vunpack.c.h.b16 %v200
    %v1316 = vunpack.c.l.b16 %v201
    %v1317 = vunpack.c.h.b16 %v201
    %v1318 = vunpack.c.l.b16 %v202
    %v1319 = vunpack.c.h.b16 %v202
    %v1320 = vunpack.c.l.b16 %v203
    %v1321 = vunpack.c.h.b16 %v203
    %v1322 = vunpack.c.l.b16 %v204
    %v1323 = vunpack.c.h.b16 %v204
    %v1324 = vunpack.c.l.b16 %v205
    %v1325 = vunpack.c.h.b16 %v205
    %v1326 = vunpack.c.l.b16 %v206
    %v1327 = vunpack.c.h.b16 %v206
    %v1328 = vunpack.c.l.b16 %v207
    %v1329 = vunpack.c.h.b16 %v207
    %v1330 = vunpack.c.l.b16 %v208
    %v1331 = vunpack.c.h.b16 %v208
    %v1332 = vunpack.c.l.b16 %v209
    %v1333 = vunpack.c.h.b16 %v209
    %v1334 = vunpack.c.l.b16 %v210
    %v1335 = vunpack.c.h.b16 %v210
    %v1336 = vunpack.c.l.b16 %v211
    %v1337 = vunpack.c.h.b16 %v211
    %v1338 = vunpack.c.l.b16 %v212
    %v1339 = vunpack.c.h.b16 %v212
    %v1340 = vunpack.c.l.b16 %v213
    %v1341 = vunpack.c.h.b16 %v213
    %v1342 = vunpack.c.l.b16 %v214
    %v1343 = vunpack.c.h.b16 %v214
    %v1344 = vunpack.c.l.b16 %v215
    %v1345 = vunpack.c.h.b16 %v215
    %v1346 = vunpack.c.l.b16 %v216
    %v1347 = vunpack.c.h.b16 %v216
    %v1348 = vunpack.c.l.b16 %v217
    %v1349 = vunpack.c.h.b16 %v217
    %v1350 = vunpack.c.l.b16 %v218
    %v1351 = vunpack.c.h.b16 %v218
    %v1352 = vunpack.c.l.b16 %v219
    %v1353 = vunpack.c.h.b16 %v219
    %v1354 = vunpack.c.l.b16 %v220
    %v1355 = vunpack.c.h.b16 %v220
    %v1356 = vunpack.c.l.b16 %v221
    %v1357 = vunpack.c.h.b16 %v221
    %v1358 = vunpack.c.l.b16 %v222
    %v1359 = vunpack.c.h.b16 %v222
    %v1360 = vunpack.c.l.b16 %v223
    %v1361 = vunpack.c.h.b16 %v223
    %v1362 = vunpack.c.l.b16 %v224
    %v1363 = vunpack.c.h.b16 %v224
    %v1364 = vunpack.c.l.b16 %v225
    %v1365 = vunpack.c.h.b16 %v225
    %v1366 = vunpack.c.l.b16 %v226
    %v1367 = vunpack.c.h.b16 %v226
    %v1368 = vunpack.c.l.b16 %v227
    %v1369 = vunpack.c.h.b16 %v227
    %v1370 = vunpack.c.l.b16 %v228
    %v1371 = vunpack.c.h.b16 %v228
    %v1372 = vunpack.c.l.b16 %v229
    %v1373 = vunpack.c.h.b16 %v229
    %v1374 = vunpack.c.l.b16 %v230
    %v1375 = vunpack.c.h.b16 %v230
    %v1376 = vunpack.c.l.b16 %v231
    %v1377 = vunpack.c.h.b16 %v231
    %v1378 = vunpack.c.l.b16 %v232
    %v1379 = vunpack.c.h.b16 %v232
    %v1380 = vunpack.c.l.b16 %v233
    %v1381 = vunpack.c.h.b16 %v233
    %v1382 = vunpack.c.l.b16 %v234
    %v1383 = vunpack.c.h.b16 %v234
    %v1384 = vunpack.c.l.b16 %v235
    %v1385 = vunpack.c.h.b16 %v235
    %v1386 = vunpack.c.l.b16 %v236
    %v1387 = vunpack.c.h.b16 %v236
    %v1388 = vunpack.c.l.b16 %v237
    %v1389 = vunpack.c.h.b16 %v237
    %v1390 = vunpack.c.l.b16 %v238
    %v1391 = vunpack.c.h.b16 %v238
    %v1392 = vunpack.c.l.b16 %v239
    %v1393 = vunpack.c.h.b16 %v239
    %v1394 = vunpack.c.l.b16 %v240
    %v1395 = vunpack.c.h.b16 %v240
    %v1396 = vunpack.c.l.b16 %v241
    %v1397 = vunpack.c.h.b16 %v241
    %v1398 = vunpack.c.l.b16 %v242
    %v1399 = vunpack.c.h.b16 %v242
    %v1400 = vunpack.c.l.b16 %v243
    %v1401 = vunpack.c.h.b16 %v243
    %v1402 = vunpack.c.l.b16 %v244
    %v1403 = vunpack.c.h.b16 %v244
    %v1404 = vunpack.c.l.b16 %v245
    %v1405 = vunpack.c.h.b16 %v245
    %v1406 = vunpack.c.l.b16 %v246
    %v1407 = vunpack.c.h.b16 %v246
    %v1408 = vunpack.c.l.b16 %v247
    %v1409 = vunpack.c.h.b16 %v247
    %v1410 = vunpack.c.l.b16 %v248
    %v1411 = vunpack.c.h.b16 %v248
    %v1412 = vunpack.c.l.b16 %v249
    %v1413 = vunpack.c.h.b16 %v249
    %v1414 = vunpack.c.l.b16 %v250
    %v1415 = vunpack.c.h.b16 %v250
    %v1416 = vunpack.c.l.b16 %v251
    %v1417 = vunpack.c.h.b16 %v251
    %v1418 = vunpack.c.l.b16 %v252
    %v1419 = vunpack.c.h.b16 %v252
    %v1420 = vunpack.c.l.b16 %v253
    %v1421 = vunpack.c.h.b16 %v253
    %v1422 = vunpack.c.l.b16 %v254
    %v1423 = vunpack.c.h.b16 %v254
    %v1424 = vunpack.c.l.b16 %v255
    %v1425 = vunpack.c.h.b16 %v255
    %v1426 = vunpack.c.l.b16 %v256
    %v1427 = vunpack.c.h.b16 %v256
    %v1428 = vunpack.c.l.b16 %v257
    %v1429 = vunpack.c.h.b16 %v257
    %v1430 = vunpack.c.l.b16 %v258
    %v1431 = vunpack.c.h.b16 %v258
    %v1432 = vunpack.c.l.b16 %v259
    %v1433 = vunpack.c.h.b16 %v259
    %v1434 = vunpack.c.l.b16 %v260
    %v1435 = vunpack.c.h.b16 %v260
    %v1436 = vunpack.c.l.b16 %v261
    %v1437 = vunpack.c.h.b16 %v261
    %v1438 = vunpack.c.l.b16 %v262
    %v1439 = vunpack.c.h.b16 %v262
    %v1440 = vunpack.c.l.b16 %v263
    %v1441 = vunpack.c.h.b16 %v263
    %v1442 = vunpack.c.l.b16 %v264
    %v1443 = vunpack.c.h.b16 %v264
    %v1444 = vunpack.c.l.b16 %v265
    %v1445 = vunpack.c.h.b16 %v265
    %v1446 = vunpack.c.l.b16 %v266
    %v1447 = vunpack.c.h.b16 %v266
    %v1448 = vunpack.c.l.b16 %v267
    %v1449 = vunpack.c.h.b16 %v267
    %v1450 = vunpack.c.l.b16 %v268
    %v1451 = vunpack.c.h.b16 %v268
    %v1452 = vunpack.c.l.b16 %v269
    %v1453 = vunpack.c.h.b16 %v269
    %v1454 = vunpack.c.l.b16 %v270
    %v1455 = vunpack.c.h.b16 %v270
    %v1456 = vunpack.c.l.b16 %v271
    %v1457 = vunpack.c.h.b16 %v271
    %v1458 = vunpack.c.l.b16 %v272
    %v1459 = vunpack.c.h.b16 %v272
    %v1460 = vunpack.c.l.b16 %v273
    %v1461 = vunpack.c.h.b16 %v273
    %v1462 = vunpack.c.l.b16 %v274
    %v1463 = vunpack.c.h.b16 %v274
    %v1464 = vunpack.c.l.b16 %v275
    %v1465 = vunpack.c.h.b16 %v275
    %v1466 = vunpack.c.l.b16 %v276
    %v1467 = vunpack.c.h.b16 %v276
    %v1468 = vunpack.c.l.b16 %v277
    %v1469 = vunpack.c.h.b16 %v277
    %v1470 = vunpack.c.l.b16 %v278
    %v1471 = vunpack.c.h.b16 %v278
    %v1472 = vunpack.c.l.b16 %v279
    %v1473 = vunpack.c.h.b16 %v279
    %v1474 = vunpack.c.l.b16 %v280
    %v1475 = vunpack.c.h.b16 %v280
    %v1476 = vunpack.c.l.b16 %v281
    %v1477 = vunpack.c.h.b16 %v281
    %v1478 = vunpack.c.l.b16 %v282
    %v1479 = vunpack.c.h.b16 %v282
    %v1480 = vunpack.c.l.b16 %v283
    %v1481 = vunpack.c.h.b16 %v283
    %v1482 = vunpack.c.l.b16 %v284
    %v1483 = vunpack.c.h.b16 %v284
    %v1484 = vunpack.c.l.b16 %v285
    %v1485 = vunpack.c.h.b16 %v285
    %v1486 = vunpack.c.l.b16 %v286
    %v1487 = vunpack.c.h.b16 %v286
    %v1488 = vunpack.c.l.b16 %v287
    %v1489 = vunpack.c.h.b16 %v287
    %v1490 = vunpack.c.l.b16 %v288
    %v1491 = vunpack.c.h.b16 %v288
    %v1492 = vunpack.c.l.b16 %v289
    %v1493 = vunpack.c.h.b16 %v289
    %v1494 = vunpack.c.l.b16 %v290
    %v1495 = vunpack.c.h.b16 %v290
    %v1496 = vunpack.c.l.b16 %v291
    %v1497 = vunpack.c.h.b16 %v291
    %v1498 = vunpack.c.l.b16 %v292
    %v1499 = vunpack.c.h.b16 %v292
    %v1500 = vunpack.c.l.b16 %v293
    %v1501 = vunpack.c.h.b16 %v293
    %v1502 = vunpack.c.l.b16 %v294
    %v1503 = vunpack.c.h.b16 %v294
    %v1504 = vunpack.c.l.b16 %v295
    %v1505 = vunpack.c.h.b16 %v295
    %v1506 = vunpack.c.l.b16 %v296
    %v1507 = vunpack.c.h.b16 %v296
    %v1508 = vunpack.c.l.b16 %v297
    %v1509 = vunpack.c.h.b16 %v297
    %v1510 = vunpack.c.l.b16 %v298
    %v1511 = vunpack.c.h.b16 %v298
    %v1512 = vunpack.c.l.b16 %v299
    %v1513 = vunpack.c.h.b16 %v299
    %v1514 = vunpack.c.l.b16 %v300
    %v1515 = vunpack.c.h.b16 %v300
    %v1516 = vunpack.c.l.b16 %v301
    %v1517 = vunpack.c.h.b16 %v301
    %v1518 = vunpack.c.l.b16 %v302
    %v1519 = vunpack.c.h.b16 %v302
    %v1520 = vunpack.c.l.b16 %v303
    %v1521 = vunpack.c.h.b16 %v303
    %v1522 = vunpack.c.l.b16 %v304
    %v1523 = vunpack.c.h.b16 %v304
    %v1524 = vunpack.c.l.b16 %v305
    %v1525 = vunpack.c.h.b16 %v305
    %v1526 = vunpack.c.l.b16 %v306
    %v1527 = vunpack.c.h.b16 %v306
    %v1528 = vunpack.c.l.b16 %v307
    %v1529 = vunpack.c.h.b16 %v307
    %v1530 = vunpack.c.l.b16 %v308
    %v1531 = vunpack.c.h.b16 %v308
    %v1532 = vunpack.c.l.b16 %v309
    %v1533 = vunpack.c.h.b16 %v309
    %v1534 = vunpack.c.l.b16 %v310
    %v1535 = vunpack.c.h.b16 %v310
    %v1536 = vunpack.c.l.b16 %v311
    %v1537 = vunpack.c.h.b16 %v311
    %v1538 = vunpack.c.l.b16 %v312
    %v1539 = vunpack.c.h.b16 %v312
    %v1540 = vunpack.c.l.b16 %v313
    %v1541 = vunpack.c.h.b16 %v313
    %v1542 = vunpack.c.l.b16 %v314
    %v1543 = vunpack.c.h.b16 %v314
    %v1544 = vunpack.c.l.b16 %v315
    %v1545 = vunpack.c.h.b16 %v315
    %v1546 = vunpack.c.l.b16 %v316
    %v1547 = vunpack.c.h.b16 %v316
    %v1548 = vunpack.c.l.b16 %v317
    %v1549 = vunpack.c.h.b16 %v317
    %v1550 = vunpack.c.l.b16 %v318
    %v1551 = vunpack.c.h.b16 %v318
    %v1552 = vunpack.c.l.b16 %v319
    %v1553 = vunpack.c.h.b16 %v319
    %v1554 = vunpack.c.l.b16 %v320
    %v1555 = vunpack.c.h.b16 %v320
    %v1556 = vunpack.c.l.b16 %v321
    %v1557 = vunpack.c.h.b16 %v321
    %v1558 = vunpack.c.l.b16 %v322
    %v1559 = vunpack.c.h.b16 %v322
    %v1560 = vunpack.c.l.b16 %v323
    %v1561 = vunpack.c.h.b16 %v323
    %v1562 = vunpack.c.l.b16 %v324
    %v1563 = vunpack.c.h.b16 %v324
    %v1564 = vunpack.c.l.b16 %v325
    %v1565 = vunpack.c.h.b16 %v325
    %v1566 = vunpack.c.l.b16 %v326
    %v1567 = vunpack.c.h.b16 %v326
    %v1568 = vunpack.c.l.b16 %v327
    %v1569 = vunpack.c.h.b16 %v327
    %v1570 = vunpack.c.l.b16 %v328
    %v1571 = vunpack.c.h.b16 %v328
    %v1572 = vunpack.c.l.b16 %v329
    %v1573 = vunpack.c.h.b16 %v329
    %v1574 = vunpack.c.l.b16 %v330
    %v1575 = vunpack.c.h.b16 %v330
    %v1576 = vunpack.c.l.b16 %v331
    %v1577 = vunpack.c.h.b16 %v331
    %v1578 = vunpack.c.l.b16 %v332
    %v1579 = vunpack.c.h.b16 %v332
    %v1580 = vunpack.c.l.b16 %v333
    %v1581 = vunpack.c.h.b16 %v333
    %v1582 = vunpack.c.l.b16 %v334
    %v1583 = vunpack.c.h.b16 %v334
    %v1584 = vunpack.c.l.b16 %v335
    %v1585 = vunpack.c.h.b16 %v335
    %v1586 = vunpack.c.l.b16 %v336
    %v1587 = vunpack.c.h.b16 %v336
    %v1588 = vunpack.c.l.b16 %v337
    %v1589 = vunpack.c.h.b16 %v337
    %v1590 = vunpack.c.l.b16 %v338
    %v1591 = vunpack.c.h.b16 %v338
    %v1592 = vunpack.c.l.b16 %v339
    %v1593 = vunpack.c.h.b16 %v339
    %v1594 = vunpack.c.l.b16 %v340
    %v1595 = vunpack.c.h.b16 %v340
    %v1596 = vunpack.c.l.b16 %v341
    %v1597 = vunpack.c.h.b16 %v341
    %v1598 = vunpack.c.l.b16 %v342
    %v1599 = vunpack.c.h.b16 %v342
    %v1600 = vunpack.c.l.b16 %v343
    %v1601 = vunpack.c.h.b16 %v343
    %v1602 = vunpack.c.l.b16 %v344
    %v1603 = vunpack.c.h.b16 %v344
    %v1604 = vunpack.c.l.b16 %v345
    %v1605 = vunpack.c.h.b16 %v345
    %v1606 = vunpack.c.l.b16 %v346
    %v1607 = vunpack.c.h.b16 %v346
    %v1608 = vunpack.c.l.b16 %v347
    %v1609 = vunpack.c.h.b16 %v347
    %v1610 = vunpack.c.l.b16 %v348
    %v1611 = vunpack.c.h.b16 %v348
    %v1612 = vunpack.c.l.b16 %v349
    %v1613 = vunpack.c.h.b16 %v349
    %v1614 = vunpack.c.l.b16 %v350
    %v1615 = vunpack.c.h.b16 %v350
    %v1616 = vunpack.c.l.b16 %v351
    %v1617 = vunpack.c.h.b16 %v351
    %v1618 = vunpack.c.l.b16 %v352
    %v1619 = vunpack.c.h.b16 %v352
    %v1620 = vunpack.c.l.b16 %v353
    %v1621 = vunpack.c.h.b16 %v353
    %v1622 = vunpack.c.l.b16 %v354
    %v1623 = vunpack.c.h.b16 %v354
    %v1624 = vunpack.c.l.b16 %v355
    %v1625 = vunpack.c.h.b16 %v355
    %v1626 = vunpack.c.l.b16 %v356
    %v1627 = vunpack.c.h.b16 %v356
    %v1628 = vunpack.c.l.b16 %v357
    %v1629 = vunpack.c.h.b16 %v357
    %v1630 = vunpack.c.l.b16 %v358
    %v1631 = vunpack.c.h.b16 %v358
    %v1632 = vunpack.c.l.b16 %v359
    %v1633 = vunpack.c.h.b16 %v359
    %v1634 = vunpack.c.l.b16 %v360
    %v1635 = vunpack.c.h.b16 %v360
    %v1636 = vunpack.c.l.b16 %v361
    %v1637 = vunpack.c.h.b16 %v361
    %v1638 = vunpack.c.l.b16 %v362
    %v1639 = vunpack.c.h.b16 %v362
    %v1640 = vunpack.c.l.b16 %v363
    %v1641 = vunpack.c.h.b16 %v363
    %v1642 = vunpack.c.l.b16 %v364
    %v1643 = vunpack.c.h.b16 %v364
    %v1644 = vunpack.c.l.b16 %v365
    %v1645 = vunpack.c.h.b16 %v365
    %v1646 = vunpack.c.l.b16 %v366
    %v1647 = vunpack.c.h.b16 %v366
    %v1648 = vunpack.c.l.b16 %v367
    %v1649 = vunpack.c.h.b16 %v367
    %v1650 = vunpack.c.l.b16 %v368
    %v1651 = vunpack.c.h.b16 %v368
    %v1652 = vunpack.c.l.b16 %v369
    %v1653 = vunpack.c.h.b16 %v369
    %v1654 = vunpack.c.l.b16 %v370
    %v1655 = vunpack.c.h.b16 %v370
    %v1656 = vunpack.c.l.b16 %v371
    %v1657 = vunpack.c.h.b16 %v371
    %v1658 = vunpack.c.l.b16 %v372
    %v1659 = vunpack.c.h.b16 %v372
    %v1660 = vunpack.c.l.b16 %v373
    %v1661 = vunpack.c.h.b16 %v373
    %v1662 = vunpack.c.l.b16 %v374
    %v1663 = vunpack.c.h.b16 %v374
    %v1664 = vunpack.c.l.b16 %v375
    %v1665 = vunpack.c.h.b16 %v375
    %v1666 = vunpack.c.l.b16 %v376
    %v1667 = vunpack.c.h.b16 %v376
    %v1668 = vunpack.c.l.b16 %v377
    %v1669 = vunpack.c.h.b16 %v377
    %v1670 = vunpack.c.l.b16 %v378
    %v1671 = vunpack.c.h.b16 %v378
    %v1672 = vunpack.c.l.b16 %v379
    %v1673 = vunpack.c.h.b16 %v379
    %v1674 = vunpack.c.l.b16 %v380
    %v1675 = vunpack.c.h.b16 %v380
    %v1676 = vunpack.c.l.b16 %v381
    %v1677 = vunpack.c.h.b16 %v381
    %v1678 = vunpack.c.l.b16 %v382
    %v1679 = vunpack.c.h.b16 %v382
    %v1680 = vunpack.c.l.b16 %v383
    %v1681 = vunpack.c.h.b16 %v383
    %v1682 = vunpack.c.l.b16 %v384
    %v1683 = vunpack.c.h.b16 %v384
    %v1684 = vunpack.c.l.b16 %v385
    %v1685 = vunpack.c.h.b16 %v385
    %v1686 = vunpack.c.l.b16 %v386
    %v1687 = vunpack.c.h.b16 %v386
    %v1688 = vunpack.c.l.b16 %v387
    %v1689 = vunpack.c.h.b16 %v387
    %v1690 = vunpack.c.l.b16 %v388
    %v1691 = vunpack.c.h.b16 %v388
    %v1692 = vunpack.c.l.b16 %v389
    %v1693 = vunpack.c.h.b16 %v389
    %v1694 = vunpack.c.l.b16 %v390
    %v1695 = vunpack.c.h.b16 %v390
    %v1696 = vunpack.c.l.b16 %v391
    %v1697 = vunpack.c.h.b16 %v391
    %v1698 = vunpack.c.l.b16 %v392
    %v1699 = vunpack.c.h.b16 %v392
    %v1700 = vunpack.c.l.b16 %v393
    %v1701 = vunpack.c.h.b16 %v393
    %v1702 = vunpack.c.l.b16 %v394
    %v1703 = vunpack.c.h.b16 %v394
    %v1704 = vunpack.c.l.b16 %v395
    %v1705 = vunpack.c.h.b16 %v395
    %v1706 = vunpack.c.l.b16 %v396
    %v1707 = vunpack.c.h.b16 %v396
    %v1708 = vunpack.c.l.b16 %v397
    %v1709 = vunpack.c.h.b16 %v397
    %v1710 = vunpack.c.l.b16 %v398
    %v1711 = vunpack.c.h.b16 %v398
    %v1712 = vunpack.c.l.b16 %v399
    %v1713 = vunpack.c.h.b16 %v399
    %v1714 = vunpack.c.l.b16 %v400
    %v1715 = vunpack.c.h.b16 %v400
    %v1716 = vunpack.c.l.b16 %v401
    %v1717 = vunpack.c.h.b16 %v401
    %v1718 = vunpack.c.l.b16 %v402
    %v1719 = vunpack.c.h.b16 %v402
    %v1720 = vunpack.c.l.b16 %v403
    %v1721 = vunpack.c.h.b16 %v403
    %v1722 = vunpack.c.l.b16 %v404
    %v1723 = vunpack.c.h.b16 %v404
    %v1724 = vunpack.c.l.b16 %v405
    %v1725 = vunpack.c.h.b16 %v405
    %v1726 = vunpack.c.l.b16 %v406
    %v1727 = vunpack.c.h.b16 %v406
    %v1728 = vunpack.c.l.b16 %v407
    %v1729 = vunpack.c.h.b16 %v407
    %v1730 = vunpack.c.l.b16 %v408
    %v1731 = vunpack.c.h.b16 %v408
    %v1732 = vunpack.c.l.b16 %v409
    %v1733 = vunpack.c.h.b16 %v409
    %v1734 = vunpack.c.l.b16 %v410
    %v1735 = vunpack.c.h.b16 %v410
    %v1736 = vunpack.c.l.b16 %v411
    %v1737 = vunpack.c.h.b16 %v411
    %v1738 = vunpack.c.l.b16 %v412
    %v1739 = vunpack.c.h.b16 %v412
    %v1740 = vunpack.c.l.b16 %v413
    %v1741 = vunpack.c.h.b16 %v413
    %v1742 = vunpack.c.l.b16 %v414
    %v1743 = vunpack.c.h.b16 %v414
    %v1744 = vunpack.c.l.b16 %v415
    %v1745 = vunpack.c.h.b16 %v415
    %v1746 = vunpack.c.l.b16 %v416
    %v1747 = vunpack.c.h.b16 %v416
    %v1748 = vunpack.c.l.b16 %v417
    %v1749 = vunpack.c.h.b16 %v417
    %v1750 = vunpack.c.l.b16 %v418
    %v1751 = vunpack.c.h.b16 %v418
    %v1752 = vunpack.c.l.b16 %v419
    %v1753 = vunpack.c.h.b16 %v419
    %v1754 = vunpack.c.l.b16 %v420
    %v1755 = vunpack.c.h.b16 %v420
    %v1756 = vunpack.c.l.b16 %v421
    %v1757 = vunpack.c.h.b16 %v421
    %v1758 = vunpack.c.l.b16 %v422
    %v1759 = vunpack.c.h.b16 %v422
    %v1760 = vunpack.c.l.b16 %v423
    %v1761 = vunpack.c.h.b16 %v423
    %v1762 = vunpack.c.l.b16 %v424
    %v1763 = vunpack.c.h.b16 %v424
    %v1764 = vunpack.c.l.b16 %v425
    %v1765 = vunpack.c.h.b16 %v425
    %v1766 = vunpack.c.l.b16 %v426
    %v1767 = vunpack.c.h.b16 %v426
    %v1768 = vunpack.c.l.b16 %v427
    %v1769 = vunpack.c.h.b16 %v427
    %v1770 = vunpack.c.l.b16 %v428
    %v1771 = vunpack.c.h.b16 %v428
    %v1772 = vunpack.c.l.b16 %v429
    %v1773 = vunpack.c.h.b16 %v429
    %v1774 = vunpack.c.l.b16 %v430
    %v1775 = vunpack.c.h.b16 %v430
    %v1776 = vunpack.c.l.b16 %v431
    %v1777 = vunpack.c.h.b16 %v431
    %v1778 = vunpack.c.l.b16 %v432
    %v1779 = vunpack.c.h.b16 %v432
    %v1780 = vunpack.c.l.b16 %v433
    %v1781 = vunpack.c.h.b16 %v433
    %v1782 = vunpack.c.l.b16 %v434
    %v1783 = vunpack.c.h.b16 %v434
    %v1784 = vunpack.c.l.b16 %v435
    %v1785 = vunpack.c.h.b16 %v435
    %v1786 = vunpack.c.l.b16 %v436
    %v1787 = vunpack.c.h.b16 %v436
    %v1788 = vunpack.c.l.b16 %v437
    %v1789 = vunpack.c.h.b16 %v437
    %v1790 = vunpack.c.l.b16 %v438
    %v1791 = vunpack.c.h.b16 %v438
    %v1792 = vunpack.c.l.b16 %v439
    %v1793 = vunpack.c.h.b16 %v439
    %v1794 = vunpack.c.l.b16 %v440
    %v1795 = vunpack.c.h.b16 %v440
    %v1796 = vunpack.c.l.b16 %v441
    %v1797 = vunpack.c.h.b16 %v441
    %v1798 = vunpack.c.l.b16 %v442
    %v1799 = vunpack.c.h.b16 %v442
    %v1800 = vunpack.c.l.b16 %v443
    %v1801 = vunpack.c.h.b16 %v443
    %v1802 = vunpack.c.l.b16 %v444
    %v1803 = vunpack.c.h.b16 %v444
    %v1804 = vunpack.c.l.b16 %v445
    %v1805 = vunpack.c.h.b16 %v445
    %v1806 = vunpack.c.l.b16 %v446
    %v1807 = vunpack.c.h.b16 %v446
    %v1808 = vunpack.c.l.b16 %v447
    %v1809 = vunpack.c.h.b16 %v447
    %v1810 = vunpack.c.l.b16 %v448
    %v1811 = vunpack.c.h.b16 %v448
    %v1812 = vunpack.c.l.b16 %v449
    %v1813 = vunpack.c.h.b16 %v449
    %v1814 = vunpack.c.l.b16 %v450
    %v1815 = vunpack.c.h.b16 %v450
    %v1816 = vunpack.c.l.b16 %v451
    %v1817 = vunpack.c.h.b16 %v451
    %v1818 = vunpack.c.l.b16 %v452
    %v1819 = vunpack.c.h.b16 %v452
    %v1820 = vunpack.c.l.b16 %v453
    %v1821 = vunpack.c.h.b16 %v453
    %v1822 = vunpack.c.l.b16 %v454
    %v1823 = vunpack.c.h.b16 %v454
    %v1824 = vunpack.c.l.b16 %v455
    %v1825 = vunpack.c.h.b16 %v455
    %v1826 = vunpack.c.l.b16 %v456
    %v1827 = vunpack.c.h.b16 %v456
    %v1828 = vunpack.c.l.b16 %v457
    %v1829 = vunpack.c.h.b16 %v457
    %v1830 = vunpack.c.l.b16 %v458
    %v1831 = vunpack.c.h.b16 %v458
    %v1832 = vunpack.c.l.b16 %v459
    %v1833 = vunpack.c.h.b16 %v459
    %v1834 = vunpack.c.l.b16 %v460
    %v1835 = vunpack.c.h.b16 %v460
    %v1836 = vunpack.c.l.b16 %v461
    %v1837 = vunpack.c.h.b16 %v461
    %v1838 = vunpack.c.l.b16 %v462
    %v1839 = vunpack.c.h.b16 %v462
    %v1840 = vunpack.c.l.b16 %v463
    %v1841 = vunpack.c.h.b16 %v463
    %v1842 = vunpack.c.l.b16 %v464
    %v1843 = vunpack.c.h.b16 %v464
    %v1844 = vunpack.c.l.b16 %v465
    %v1845 = vunpack.c.h.b16 %v465
    %v1846 = vunpack.c.l.b16 %v466
    %v1847 = vunpack.c.h.b16 %v466
    %v1848 = vunpack.c.l.b16 %v467
    %v1849 = vunpack.c.h.b16 %v467
    %v1850 = vunpack.c.l.b16 %v468
    %v1851 = vunpack.c.h.b16 %v468
    %v1852 = vunpack.c.l.b16 %v469
    %v1853 = vunpack.c.h.b16 %v469
    %v1854 = vunpack.c.l.b16 %v470
    %v1855 = vunpack.c.h.b16 %v470
    %v1856 = vunpack.c.l.b16 %v471
    %v1857 = vunpack.c.h.b16 %v471
    %v1858 = vunpack.c.l.b16 %v472
    %v1859 = vunpack.c.h.b16 %v472
    %v1860 = vunpack.c.l.b16 %v473
    %v1861 = vunpack.c.h.b16 %v473
    %v1862 = vunpack.c.l.b16 %v474
    %v1863 = vunpack.c.h.b16 %v474
    %v1864 = vunpack.c.l.b16 %v475
    %v1865 = vunpack.c.h.b16 %v475
    %v1866 = vunpack.c.l.b16 %v476
    %v1867 = vunpack.c.h.b16 %v476
    %v1868 = vunpack.c.l.b16 %v477
    %v1869 = vunpack.c.h.b16 %v477
    %v1870 = vunpack.c.l.b16 %v478
    %v1871 = vunpack.c.h.b16 %v478
    %v1872 = vunpack.c.l.b16 %v479
    %v1873 = vunpack.c.h.b16 %v479
    %v1874 = vunpack.c.l.b16 %v480
    %v1875 = vunpack.c.h.b16 %v480
    %v1876 = vunpack.c.l.b16 %v481
    %v1877 = vunpack.c.h.b16 %v481
    %v1878 = vunpack.c.l.b16 %v482
    %v1879 = vunpack.c.h.b16 %v482
    %v1880 = vunpack.c.l.b16 %v483
    %v1881 = vunpack.c.h.b16 %v483
    %v1882 = vunpack.c.l.b16 %v484
    %v1883 = vunpack.c.h.b16 %v484
    %v1884 = vunpack.c.l.b16 %v485
    %v1885 = vunpack.c.h.b16 %v485
    %v1886 = vunpack.c.l.b16 %v486
    %v1887 = vunpack.c.h.b16 %v486
    %v1888 = vunpack.c.l.b16 %v487
    %v1889 = vunpack.c.h.b16 %v487
    %v1890 = vunpack.c.l.b16 %v488
    %v1891 = vunpack.c.h.b16 %v488
    %v1892 = vunpack.c.l.b16 %v489
    %v1893 = vunpack.c.h.b16 %v489
    %v1894 = vunpack.c.l.b16 %v490
    %v1895 = vunpack.c.h.b16 %v490
    %v1896 = vunpack.c.l.b16 %v491
    %v1897 = vunpack.c.h.b16 %v491
    %v1898 = vunpack.c.l.b16 %v492
    %v1899 = vunpack.c.h.b16 %v492
    %v1900 = vunpack.c.l.b16 %v493
    %v1901 = vunpack.c.h.b16 %v493
    %v1902 = vunpack.c.l.b16 %v494
    %v1903 = vunpack.c.h.b16 %v494
    %v1904 = vunpack.c.l.b16 %v495
    %v1905 = vunpack.c.h.b16 %v495
    %v1906 = vunpack.c.l.b16 %v496
    %v1907 = vunpack.c.h.b16 %v496
    %v1908 = vunpack.c.l.b16 %v497
    %v1909 = vunpack.c.h.b16 %v497
    %v1910 = vunpack.c.l.b16 %v498
    %v1911 = vunpack.c.h.b16 %v498
    %v1912 = vunpack.c.l.b16 %v499
    %v1913 = vunpack.c.h.b16 %v499
    %v1914 = vunpack.c.l.b16 %v500
    %v1915 = vunpack.c.h.b16 %v500
    %v1916 = vunpack.c.l.b16 %v501
    %v1917 = vunpack.c.h.b16 %v501
    %v1918 = vunpack.c.l.b16 %v502
    %v1919 = vunpack.c.h.b16 %v502
    %v1920 = vunpack.c.l.b16 %v503
    %v1921 = vunpack.c.h.b16 %v503
    %v1922 = vunpack.c.l.b16 %v504
    %v1923 = vunpack.c.h.b16 %v504
    %v1924 = vunpack.c.l.b16 %v505
    %v1925 = vunpack.c.h.b16 %v505
    %v1926 = vunpack.c.l.b16 %v506
    %v1927 = vunpack.c.h.b16 %v506
    %v1928 = vunpack.c.l.b16 %v507
    %v1929 = vunpack.c.h.b16 %v507
    %v1930 = vunpack.c.l.b16 %v508
    %v1931 = vunpack.c.h.b16 %v508
    %v1932 = vunpack.c.l.b16 %v509
    %v1933 = vunpack.c.h.b16 %v509
    %v1934 = vunpack.c.l.b16 %v510
    %v1935 = vunpack.c.h.b16 %v510
    %v1936 = vunpack.c.l.b16 %v511
    %v1937 = vunpack.c.h.b16 %v511
    %v1938 = vunpack.c.l.b16 %v512
    %v1939 = vunpack.c.h.b16 %v512
    %v1940 = vunpack.c.l.b16 %v513
    %v1941 = vunpack.c.h.b16 %v513
    %v1942 = vunpack.c.l.b16 %v514
    %v1943 = vunpack.c.h.b16 %v514
    %v1944 = vunpack.c.l.b16 %v515
    %v1945 = vunpack.c.h.b16 %v515
    %v1946 = vunpack.c.l.b16 %v516
    %v1947 = vunpack.c.h.b16 %v516
    %v1948 = vunpack.c.l.b16 %v517
    %v1949 = vunpack.c.h.b16 %v517
    %v1950 = vunpack.c.l.b16 %v518
    %v1951 = vunpack.c.h.b16 %v518
    %v1952 = vunpack.c.l.b16 %v519
    %v1953 = vunpack.c.h.b16 %v519
    %v1954 = vunpack.c.l.b16 %v520
    %v1955 = vunpack.c.h.b16 %v520
    %v1956 = vunpack.c.l.b16 %v521
    %v1957 = vunpack.c.h.b16 %v521
    %v1958 = vunpack.c.l.b16 %v522
    %v1959 = vunpack.c.h.b16 %v522
    %v1960 = vunpack.c.l.b16 %v523
    %v1961 = vunpack.c.h.b16 %v523
    %v1962 = vunpack.c.l.b16 %v524
    %v1963 = vunpack.c.h.b16 %v524
    %v1964 = vunpack.c.l.b16 %v525
    %v1965 = vunpack.c.h.b16 %v525
    %v1966 = vunpack.c.l.b16 %v526
    %v1967 = vunpack.c.h.b16 %v526
    %v1968 = vunpack.c.l.b16 %v527
    %v1969 = vunpack.c.h.b16 %v527
    %v1970 = vunpack.c.l.b16 %v528
    %v1971 = vunpack.c.h.b16 %v528
    %v1972 = vunpack.c.l.b16 %v529
    %v1973 = vunpack.c.h.b16 %v529
    %v1974 = vunpack.c.l.b16 %v530
    %v1975 = vunpack.c.h.b16 %v530
    %v1976 = vunpack.c.l.b16 %v531
    %v1977 = vunpack.c.h.b16 %v531
    %v1978 = vunpack.c.l.b16 %v532
    %v1979 = vunpack.c.h.b16 %v532
    %v1980 = vunpack.c.l.b16 %v533
    %v1981 = vunpack.c.h.b16 %v533
    %v1982 = vunpack.c.l.b16 %v534
    %v1983 = vunpack.c.h.b16 %v534
    %v1984 = vunpack.c.l.b16 %v535
    %v1985 = vunpack.c.h.b16 %v535
    %v1986 = vunpack.c.l.b16 %v536
    %v1987 = vunpack.c.h.b16 %v536
    %v1988 = vunpack.c.l.b16 %v537
    %v1989 = vunpack.c.h.b16 %v537
    %v1990 = vunpack.c.l.b16 %v538
    %v1991 = vunpack.c.h.b16 %v538
    %v1992 = vunpack.c.l.b16 %v539
    %v1993 = vunpack.c.h.b16 %v539
    %v1994 = vunpack.c.l.b16 %v540
    %v1995 = vunpack.c.h.b16 %v540
    %v1996 = vunpack.c.l.b16 %v541
    %v1997 = vunpack.c.h.b16 %v541
    %v1998 = vunpack.c.l.b16 %v542
    %v1999 = vunpack.c.h.b16 %v542
    %v2000 = vunpack.c.l.b16 %v543
    %v2001 = vunpack.c.h.b16 %v543
    %v2002 = vunpack.c.l.b16 %v544
    %v2003 = vunpack.c.h.b16 %v544
    %v2004 = vunpack.c.l.b16 %v545
    %v2005 = vunpack.c.h.b16 %v545
    %v2006 = vunpack.c.l.b16 %v546
    %v2007 = vunpack.c.h.b16 %v546
    %v2008 = vunpack.c.l.b16 %v547
    %v2009 = vunpack.c.h.b16 %v547
    %v2010 = vunpack.c.l.b16 %v548
    %v2011 = vunpack.c.h.b16 %v548
    %v2012 = vunpack.c.l.b16 %v549
    %v2013 = vunpack.c.h.b16 %v549
    %v2014 = vunpack.c.l.b16 %v550
    %v2015 = vunpack.c.h.b16 %v550
    %v2016 = vunpack.c.l.b16 %v551
    %v2017 = vunpack.c.h.b16 %v551
    %v2018 = vunpack.c.l.b16 %v552
    %v2019 = vunpack.c.h.b16 %v552
    %v2020 = vunpack.c.l.b16 %v553
    %v2021 = vunpack.c.h.b16 %v553
    %v2022 = vunpack.c.l.b16 %v554
    %v2023 = vunpack.c.h.b16 %v554
    %v2024 = vunpack.c.l.b16 %v555
    %v2025 = vunpack.c.h.b16 %v555
    %v2026 = vunpack.c.l.b16 %v556
    %v2027 = vunpack.c.h.b16 %v556
    %v2028 = vunpack.c.l.b16 %v557
    %v2029 = vunpack.c.h.b16 %v557
    %v2030 = vunpack.c.l.b16 %v558
    %v2031 = vunpack.c.h.b16 %v558
    %v2032 = vunpack.c.l.b16 %v559
    %v2033 = vunpack.c.h.b16 %v559
    %v2034 = vunpack.c.l.b16 %v560
    %v2035 = vunpack.c.h.b16 %v560
    %v2036 = vunpack.c.l.b16 %v561
    %v2037 = vunpack.c.h.b16 %v561
    %v2038 = vunpack.c.l.b16 %v562
    %v2039 = vunpack.c.h.b16 %v562
    %v2040 = vunpack.c.l.b16 %v563
    %v2041 = vunpack.c.h.b16 %v563
    %v2042 = vunpack.c.l.b16 %v564
    %v2043 = vunpack.c.h.b16 %v564
    %v2044 = vunpack.c.l.b16 %v565
    %v2045 = vunpack.c.h.b16 %v565
    %v2046 = vunpack.c.l.b16 %v566
    %v2047 = vunpack.c.h.b16 %v566
    %v2048 = vunpack.c.l.b16 %v567
    %v2049 = vunpack.c.h.b16 %v567
    %v2050 = vunpack.c.l.b16 %v568
    %v2051 = vunpack.c.h.b16 %v568
    %v2052 = vunpack.c.l.b16 %v569
    %v2053 = vunpack.c.h.b16 %v569
    %v2054 = vunpack.c.l.b16 %v570
    %v2055 = vunpack.c.h.b16 %v570
    %v2056 = vunpack.c.l.b16 %v571
    %v2057 = vunpack.c.h.b16 %v571
    %v2058 = vunpack.c.l.b16 %v572
    %v2059 = vunpack.c.h.b16 %v572
    %v2060 = vunpack.c.l.b16 %v573
    %v2061 = vunpack.c.h.b16 %v573
    %v2062 = vunpack.c.l.b16 %v574
    %v2063 = vunpack.c.h.b16 %v574
    %v2064 = vunpack.c.l.b16 %v575
    %v2065 = vunpack.c.h.b16 %v575
    %v2066 = vunpack.c.l.b16 %v576
    %v2067 = vunpack.c.h.b16 %v576
    %v2068 = vunpack.c.l.b16 %v577
    %v2069 = vunpack.c.h.b16 %v577
    %v2070 = vunpack.c.l.b16 %v578
    %v2071 = vunpack.c.h.b16 %v578
    %v2072 = vunpack.c.l.b16 %v579
    %v2073 = vunpack.c.h.b16 %v579
    %v2074 = vunpack.c.l.b16 %v580
    %v2075 = vunpack.c.h.b16 %v580
    %v2076 = vunpack.c.l.b16 %v581
    %v2077 = vunpack.c.h.b16 %v581
    %v2078 = vunpack.c.l.b16 %v582
    %v2079 = vunpack.c.h.b16 %v582
    %v2080 = vunpack.c.l.b16 %v583
    %v2081 = vunpack.c.h.b16 %v583
    %v2082 = vunpack.c.l.b16 %v584
    %v2083 = vunpack.c.h.b16 %v584
    %v2084 = vunpack.c.l.b16 %v585
    %v2085 = vunpack.c.h.b16 %v585
    %v2086 = vunpack.c.l.b16 %v586
    %v2087 = vunpack.c.h.b16 %v586
    %v2088 = vunpack.c.l.b16 %v587
    %v2089 = vunpack.c.h.b16 %v587
    %v2090 = vunpack.c.l.b16 %v588
    %v2091 = vunpack.c.h.b16 %v588
    %v2092 = vunpack.c.l.b16 %v589
    %v2093 = vunpack.c.h.b16 %v589
    %v2094 = vunpack.c.l.b16 %v590
    %v2095 = vunpack.c.h.b16 %v590
    %v2096 = vunpack.c.l.b16 %v591
    %v2097 = vunpack.c.h.b16 %v591
    %v2098 = vunpack.c.l.b16 %v592
    %v2099 = vunpack.c.h.b16 %v592
    %v2100 = vunpack.c.l.b16 %v593
    %v2101 = vunpack.c.h.b16 %v593
    %v2102 = vunpack.c.l.b16 %v594
    %v2103 = vunpack.c.h.b16 %v594
    %v2104 = vunpack.c.l.b16 %v595
    %v2105 = vunpack.c.h.b16 %v595
    %v2106 = vunpack.c.l.b16 %v596
    %v2107 = vunpack.c.h.b16 %v596
    %v2108 = vunpack.c.l.b16 %v597
    %v2109 = vunpack.c.h.b16 %v597
    %v2110 = vunpack.c.l.b16 %v598
    %v2111 = vunpack.c.h.b16 %v598
    %v2112 = vunpack.c.l.b16 %v599
    %v2113 = vunpack.c.h.b16 %v599
    %v2114 = vunpack.c.l.b16 %v600
    %v2115 = vunpack.c.h.b16 %v600
    %v2116 = vunpack.c.l.b16 %v601
    %v2117 = vunpack.c.h.b16 %v601
    %v2118 = vunpack.c.l.b16 %v602
    %v2119 = vunpack.c.h.b16 %v602
    %v2120 = vunpack.c.l.b16 %v603
    %v2121 = vunpack.c.h.b16 %v603
    %v2122 = vunpack.c.l.b16 %v604
    %v2123 = vunpack.c.h.b16 %v604
    %v2124 = vunpack.c.l.b16 %v605
    %v2125 = vunpack.c.h.b16 %v605
    %v2126 = vunpack.c.l.b16 %v606
    %v2127 = vunpack.c.h.b16 %v606
    %v2128 = vunpack.c.l.b16 %v607
    %v2129 = vunpack.c.h.b16 %v607
    %v2130 = vunpack.c.l.b16 %v608
    %v2131 = vunpack.c.h.b16 %v608
    %v2132 = vunpack.c.l.b16 %v609
    %v2133 = vunpack.c.h.b16 %v609
    %v2134 = vunpack.c.l.b16 %v610
    %v2135 = vunpack.c.h.b16 %v610
    %v2136 = vunpack.c.l.b16 %v611
    %v2137 = vunpack.c.h.b16 %v611
    %v2138 = vunpack.c.l.b16 %v612
    %v2139 = vunpack.c.h.b16 %v612
    %v2140 = vunpack.c.l.b16 %v613
    %v2141 = vunpack.c.h.b16 %v613
    %v2142 = vunpack.c.l.b16 %v614
    %v2143 = vunpack.c.h.b16 %v614
    %v2144 = vunpack.c.l.b16 %v615
    %v2145 = vunpack.c.h.b16 %v615
    %v2146 = vunpack.c.l.b16 %v616
    %v2147 = vunpack.c.h.b16 %v616
    %v2148 = vunpack.c.l.b16 %v617
    %v2149 = vunpack.c.h.b16 %v617
    %v2150 = vunpack.c.l.b16 %v618
    %v2151 = vunpack.c.h.b16 %v618
    %v2152 = vunpack.c.l.b16 %v619
    %v2153 = vunpack.c.h.b16 %v619
    %v2154 = vunpack.c.l.b16 %v620
    %v2155 = vunpack.c.h.b16 %v620
    %v2156 = vunpack.c.l.b16 %v621
    %v2157 = vunpack.c.h.b16 %v621
    %v2158 = vunpack.c.l.b16 %v622
    %v2159 = vunpack.c.h.b16 %v622
    %v2160 = vunpack.c.l.b16 %v623
    %v2161 = vunpack.c.h.b16 %v623
    %v2162 = vunpack.c.l.b16 %v624
    %v2163 = vunpack.c.h.b16 %v624
    %v2164 = vunpack.c.l.b16 %v625
    %v2165 = vunpack.c.h.b16 %v625
    %v2166 = vunpack.c.l.b16 %v626
    %v2167 = vunpack.c.h.b16 %v626
    %v2168 = vunpack.c.l.b16 %v627
    %v2169 = vunpack.c.h.b16 %v627
    %v2170 = vunpack.c.l.b16 %v628
    %v2171 = vunpack.c.h.b16 %v628
    %v2172 = vunpack.c.l.b16 %v629
    %v2173 = vunpack.c.h.b16 %v629
    %v2174 = vunpack.c.l.b16 %v630
    %v2175 = vunpack.c.h.b16 %v630
    %v2176 = vunpack.c.l.b16 %v631
    %v2177 = vunpack.c.h.b16 %v631
    %v2178 = vunpack.c.l.b16 %v632
    %v2179 = vunpack.c.h.b16 %v632
    %v2180 = vunpack.c.l.b16 %v633
    %v2181 = vunpack.c.h.b16 %v633
    %v2182 = vunpack.c.l.b16 %v634
    %v2183 = vunpack.c.h.b16 %v634
    %v2184 = vunpack.c.l.b16 %v635
    %v2185 = vunpack.c.h.b16 %v635
    %v2186 = vunpack.c.l.b16 %v636
    %v2187 = vunpack.c.h.b16 %v636
    %v2188 = vunpack.c.l.b16 %v637
    %v2189 = vunpack.c.h.b16 %v637
    %v2190 = vunpack.c.l.b16 %v638
    %v2191 = vunpack.c.h.b16 %v638
    %v2192 = vunpack.c.l.b16 %v639
    %v2193 = vunpack.c.h.b16 %v639
    %v2194 = vunpack.c.l.b16 %v640
    %v2195 = vunpack.c.h.b16 %v640
    %v2196 = vunpack.c.l.b16 %v641
    %v2197 = vunpack.c.h.b16 %v641
    %v2198 = vunpack.c.l.b16 %v642
    %v2199 = vunpack.c.h.b16 %v642
    %v2200 = vunpack.c.l.b16 %v643
    %v2201 = vunpack.c.h.b16 %v643
    %v2202 = vunpack.c.l.b16 %v644
    %v2203 = vunpack.c.h.b16 %v644
    %v2204 = vunpack.c.l.b16 %v645
    %v2205 = vunpack.c.h.b16 %v645
    %v2206 = vunpack.c.l.b16 %v646
    %v2207 = vunpack.c.h.b16 %v646
    %v2208 = vunpack.c.l.b16 %v647
    %v2209 = vunpack.c.h.b16 %v647
    %v2210 = vunpack.c.l.b16 %v648
    %v2211 = vunpack.c.h.b16 %v648
    %v2212 = vunpack.c.l.b16 %v649
    %v2213 = vunpack.c.h.b16 %v649
    %v2214 = vunpack.c.l.b16 %v650
    %v2215 = vunpack.c.h.b16 %v650
    %v2216 = vunpack.c.l.b16 %v651
    %v2217 = vunpack.c.h.b16 %v651
    %v2218 = vunpack.c.l.b16 %v652
    %v2219 = vunpack.c.h.b16 %v652
    %v2220 = vunpack.c.l.b16 %v653
    %v2221 = vunpack.c.h.b16 %v653
    %v2222 = vunpack.c.l.b16 %v654
    %v2223 = vunpack.c.h.b16 %v654
    %v2224 = vunpack.c.l.b16 %v655
    %v2225 = vunpack.c.h.b16 %v655
    %v2226 = vunpack.c.l.b16 %v656
    %v2227 = vunpack.c.h.b16 %v656
    %v2228 = vunpack.c.l.b16 %v657
    %v2229 = vunpack.c.h.b16 %v657
    %v2230 = vunpack.c.l.b16 %v658
    %v2231 = vunpack.c.h.b16 %v658
    %v2232 = vunpack.c.l.b16 %v659
    %v2233 = vunpack.c.h.b16 %v659
    %v2234 = vunpack.c.l.b16 %v660
    %v2235 = vunpack.c.h.b16 %v660
    %v2236 = vunpack.c.l.b16 %v661
    %v2237 = vunpack.c.h.b16 %v661
    %v2238 = vunpack.c.l.b16 %v662
    %v2239 = vunpack.c.h.b16 %v662
    %v2240 = vunpack.c.l.b16 %v663
    %v2241 = vunpack.c.h.b16 %v663
    %v2242 = vunpack.c.l.b16 %v664
    %v2243 = vunpack.c.h.b16 %v664
    %v2244 = vunpack.c.l.b16 %v665
    %v2245 = vunpack.c.h.b16 %v665
    %v2246 = vunpack.c.l.b16 %v666
    %v2247 = vunpack.c.h.b16 %v666
    %v2248 = vunpack.c.l.b16 %v667
    %v2249 = vunpack.c.h.b16 %v667
    %v2250 = vunpack.c.l.b16 %v668
    %v2251 = vunpack.c.h.b16 %v668
    %v2252 = vunpack.c.l.b16 %v669
    %v2253 = vunpack.c.h.b16 %v669
    %v2254 = vunpack.c.l.b16 %v670
    %v2255 = vunpack.c.h.b16 %v670
    %v2256 = vunpack.c.l.b16 %v671
    %v2257 = vunpack.c.h.b16 %v671
    %v2258 = vunpack.c.l.b16 %v672
    %v2259 = vunpack.c.h.b16 %v672
    %v2260 = vunpack.c.l.b16 %v673
    %v2261 = vunpack.c.h.b16 %v673
    %v2262 = vunpack.c.l.b16 %v674
    %v2263 = vunpack.c.h.b16 %v674
    %v2264 = vunpack.c.l.b16 %v675
    %v2265 = vunpack.c.h.b16 %v675
    %v2266 = vunpack.c.l.b16 %v676
    %v2267 = vunpack.c.h.b16 %v676
    %v2268 = vpack.c.b16 %v1252, %v1244
    %v2269 = vpack.c.b16 %v1253, %v1245
    %v2270 = vpack.c.b16 %v1254, %v1246
    %v2271 = vpack.c.b16 %v1255, %v1247
    %v2272 = vpack.c.b16 %v1256, %v1248
    %v2273 = vpack.c.b16 %v1257, %v1249
    %v2274 = vpack.c.b16 %v1258, %v1250
    %v2275 = vpack.c.b16 %v1259, %v1251
    %v2276 = vpack.c.b16 %v1268, %v1260
    %v2277 = vpack.c.b16 %v1269, %v1261
    %v2278 = vpack.c.b16 %v1270, %v1262
    %v2279 = vpack.c.b16 %v1271, %v1263
    %v2280 = vpack.c.b16 %v1272, %v1264
    %v2281 = vpack.c.b16 %v1273, %v1265
    %v2282 = vpack.c.b16 %v1274, %v1266
    %v2283 = vpack.c.b16 %v1275, %v1267
    %v2284 = vpack.c.b16 %v1284, %v1276
    %v2285 = vpack.c.b16 %v1285, %v1277
    %v2286 = vpack.c.b16 %v1286, %v1278
    %v2287 = vpack.c.b16 %v1287, %v1279
    %v2288 = vpack.c.b16 %v1288, %v1280
    %v2289 = vpack.c.b16 %v1289, %v1281
    %v2290 = vpack.c.b16 %v1290, %v1282
    %v2291 = vpack.c.b16 %v1291, %v1283
    %v2292 = vpack.c.b16 %v1300, %v1292
    %v2293 = vpack.c.b16 %v1301, %v1293
    %v2294 = vpack.c.b16 %v1302, %v1294
    %v2295 = vpack.c.b16 %v1303, %v1295
    %v2296 = vpack.c.b16 %v1304, %v1296
    %v2297 = vpack.c.b16 %v1305, %v1297
    %v2298 = vpack.c.b16 %v1306, %v1298
    %v2299 = vpack.c.b16 %v1307, %v1299
    %v2300 = vpack.c.b16 %v1316, %v1308
    %v2301 = vpack.c.b16 %v1317, %v1309
    %v2302 = vpack.c.b16 %v1318, %v1310
    %v2303 = vpack.c.b16 %v1319, %v1311
    %v2304 = vpack.c.b16 %v1320, %v1312
    %v2305 = vpack.c.b16 %v1321, %v1313
    %v2306 = vpack.c.b16 %v1322, %v1314
    %v2307 = vpack.c.b16 %v1323, %v1315
    %v2308 = vpack.c.b16 %v1332, %v1324
    %v2309 = vpack.c.b16 %v1333, %v1325
    %v2310 = vpack.c.b16 %v1334, %v1326
    %v2311 = vpack.c.b16 %v1335, %v1327
    %v2312 = vpack.c.b16 %v1336, %v1328
    %v2313 = vpack.c.b16 %v1337, %v1329
    %v2314 = vpack.c.b16 %v1338, %v1330
    %v2315 = vpack.c.b16 %v1339, %v1331
    %v2316 = vpack.c.b16 %v1348, %v1340
    %v2317 = vpack.c.b16 %v1349, %v1341
    %v2318 = vpack.c.b16 %v1350, %v1342
    %v2319 = vpack.c.b16 %v1351, %v1343
    %v2320 = vpack.c.b16 %v1352, %v1344
    %v2321 = vpack.c.b16 %v1353, %v1345
    %v2322 = vpack.c.b16 %v1354, %v1346
    %v2323 = vpack.c.b16 %v1355, %v1347
    %v2324 = vpack.c.b16 %v1364, %v1356
    %v2325 = vpack.c.b16 %v1365, %v1357
    %v2326 = vpack.c.b16 %v1366, %v1358
    %v2327 = vpack.c.b16 %v1367, %v1359
    %v2328 = vpack.c.b16 %v1368, %v1360
    %v2329 = vpack.c.b16 %v1369, %v1361
    %v2330 = vpack.c.b16 %v1370, %v1362
    %v2331 = vpack.c.b16 %v1371, %v1363
    %v2332 = vpack.c.b16 %v1380, %v1372
    %v2333 = vpack.c.b16 %v1381, %v1373
    %v2334 = vpack.c.b16 %v1382, %v1374
    %v2335 = vpack.c.b16 %v1383, %v1375
    %v2336 = vpack.c.b16 %v1384, %v1376
    %v2337 = vpack.c.b16 %v1385, %v1377
    %v2338 = vpack.c.b16 %v1386, %v1378
    %v2339 = vpack.c.b16 %v1387, %v1379
    %v2340 = vpack.c.b16 %v1396, %v1388
    %v2341 = vpack.c.b16 %v1397, %v1389
    %v2342 = vpack.c.b16 %v1398, %v1390
    %v2343 = vpack.c.b16 %v1399, %v1391
    %v2344 = vpack.c.b16 %v1400, %v1392
    %v2345 = vpack.c.b16 %v1401, %v1393
    %v2346 = vpack.c.b16 %v1402, %v1394
    %v2347 = vpack.c.b16 %v1403, %v1395
    %v2348 = vpack.c.b16 %v1412, %v1404
    %v2349 = vpack.c.b16 %v1413, %v1405
    %v2350 = vpack.c.b16 %v1414, %v1406
    %v2351 = vpack.c.b16 %v1415, %v1407
    %v2352 = vpack.c.b16 %v1416, %v1408
    %v2353 = vpack.c.b16 %v1417, %v1409
    %v2354 = vpack.c.b16 %v1418, %v1410
    %v2355 = vpack.c.b16 %v1419, %v1411
    %v2356 = vpack.c.b16 %v1428, %v1420
    %v2357 = vpack.c.b16 %v1429, %v1421
    %v2358 = vpack.c.b16 %v1430, %v1422
    %v2359 = vpack.c.b16 %v1431, %v1423
    %v2360 = vpack.c.b16 %v1432, %v1424
    %v2361 = vpack.c.b16 %v1433, %v1425
    %v2362 = vpack.c.b16 %v1434, %v1426
    %v2363 = vpack.c.b16 %v1435, %v1427
    %v2364 = vpack.c.b16 %v1444, %v1436
    %v2365 = vpack.c.b16 %v1445, %v1437
    %v2366 = vpack.c.b16 %v1446, %v1438
    %v2367 = vpack.c.b16 %v1447, %v1439
    %v2368 = vpack.c.b16 %v1448, %v1440
    %v2369 = vpack.c.b16 %v1449, %v1441
    %v2370 = vpack.c.b16 %v1450, %v1442
    %v2371 = vpack.c.b16 %v1451, %v1443
    %v2372 = vpack.c.b16 %v1460, %v1452
    %v2373 = vpack.c.b16 %v1461, %v1453
    %v2374 = vpack.c.b16 %v1462, %v1454
    %v2375 = vpack.c.b16 %v1463, %v1455
    %v2376 = vpack.c.b16 %v1464, %v1456
    %v2377 = vpack.c.b16 %v1465, %v1457
    %v2378 = vpack.c.b16 %v1466, %v1458
    %v2379 = vpack.c.b16 %v1467, %v1459
    %v2380 = vpack.c.b16 %v1476, %v1468
    %v2381 = vpack.c.b16 %v1477, %v1469
    %v2382 = vpack.c.b16 %v1478, %v1470
    %v2383 = vpack.c.b16 %v1479, %v1471
    %v2384 = vpack.c.b16 %v1480, %v1472
    %v2385 = vpack.c.b16 %v1481, %v1473
    %v2386 = vpack.c.b16 %v1482, %v1474
    %v2387 = vpack.c.b16 %v1483, %v1475
    %v2388 = vpack.c.b16 %v1492, %v1484
    %v2389 = vpack.c.b16 %v1493, %v1485
    %v2390 = vpack.c.b16 %v1494, %v1486
    %v2391 = vpack.c.b16 %v1495, %v1487
    %v2392 = vpack.c.b16 %v1496, %v1488
    %v2393 = vpack.c.b16 %v1497, %v1489
    %v2394 = vpack.c.b16 %v1498, %v1490
    %v2395 = vpack.c.b16 %v1499, %v1491
    %v2396 = vpack.c.b16 %v1508, %v1500
    %v2397 = vpack.c.b16 %v1509, %v1501
    %v2398 = vpack.c.b16 %v1510, %v1502
    %v2399 = vpack.c.b16 %v1511, %v1503
    %v2400 = vpack.c.b16 %v1512, %v1504
    %v2401 = vpack.c.b16 %v1513, %v1505
    %v2402 = vpack.c.b16 %v1514, %v1506
    %v2403 = vpack.c.b16 %v1515, %v1507
    %v2404 = vpack.c.b16 %v1524, %v1516
    %v2405 = vpack.c.b16 %v1525, %v1517
    %v2406 = vpack.c.b16 %v1526, %v1518
    %v2407 = vpack.c.b16 %v1527, %v1519
    %v2408 = vpack.c.b16 %v1528, %v1520
    %v2409 = vpack.c.b16 %v1529, %v1521
    %v2410 = vpack.c.b16 %v1530, %v1522
    %v2411 = vpack.c.b16 %v1531, %v1523
    %v2412 = vpack.c.b16 %v1540, %v1532
    %v2413 = vpack.c.b16 %v1541, %v1533
    %v2414 = vpack.c.b16 %v1542, %v1534
    %v2415 = vpack.c.b16 %v1543, %v1535
    %v2416 = vpack.c.b16 %v1544, %v1536
    %v2417 = vpack.c.b16 %v1545, %v1537
    %v2418 = vpack.c.b16 %v1546, %v1538
    %v2419 = vpack.c.b16 %v1547, %v1539
    %v2420 = vpack.c.b16 %v1556, %v1548
    %v2421 = vpack.c.b16 %v1557, %v1549
    %v2422 = vpack.c.b16 %v1558, %v1550
    %v2423 = vpack.c.b16 %v1559, %v1551
    %v2424 = vpack.c.b16 %v1560, %v1552
    %v2425 = vpack.c.b16 %v1561, %v1553
    %v2426 = vpack.c.b16 %v1562, %v1554
    %v2427 = vpack.c.b16 %v1563, %v1555
    %v2428 = vpack.c.b16 %v1572, %v1564
    %v2429 = vpack.c.b16 %v1573, %v1565
    %v2430 = vpack.c.b16 %v1574, %v1566
    %v2431 = vpack.c.b16 %v1575, %v1567
    %v2432 = vpack.c.b16 %v1576, %v1568
    %v2433 = vpack.c.b16 %v1577, %v1569
    %v2434 = vpack.c.b16 %v1578, %v1570
    %v2435 = vpack.c.b16 %v1579, %v1571
    %v2436 = vpack.c.b16 %v1588, %v1580
    %v2437 = vpack.c.b16 %v1589, %v1581
    %v2438 = vpack.c.b16 %v1590, %v1582
    %v2439 = vpack.c.b16 %v1591, %v1583
    %v2440 = vpack.c.b16 %v1592, %v1584
    %v2441 = vpack.c.b16 %v1593, %v1585
    %v2442 = vpack.c.b16 %v1594, %v1586
    %v2443 = vpack.c.b16 %v1595, %v1587
    %v2444 = vpack.c.b16 %v1604, %v1596
    %v2445 = vpack.c.b16 %v1605, %v1597
    %v2446 = vpack.c.b16 %v1606, %v1598
    %v2447 = vpack.c.b16 %v1607, %v1599
    %v2448 = vpack.c.b16 %v1608, %v1600
    %v2449 = vpack.c.b16 %v1609, %v1601
    %v2450 = vpack.c.b16 %v1610, %v1602
    %v2451 = vpack.c.b16 %v1611, %v1603
    %v2452 = vpack.c.b16 %v1620, %v1612
    %v2453 = vpack.c.b16 %v1621, %v1613
    %v2454 = vpack.c.b16 %v1622, %v1614
    %v2455 = vpack.c.b16 %v1623, %v1615
    %v2456 = vpack.c.b16 %v1624, %v1616
    %v2457 = vpack.c.b16 %v1625, %v1617
    %v2458 = vpack.c.b16 %v1626, %v1618
    %v2459 = vpack.c.b16 %v1627, %v1619
    %v2460 = vpack.c.b16 %v1636, %v1628
    %v2461 = vpack.c.b16 %v1637, %v1629
    %v2462 = vpack.c.b16 %v1638, %v1630
    %v2463 = vpack.c.b16 %v1639, %v1631
    %v2464 = vpack.c.b16 %v1640, %v1632
    %v2465 = vpack.c.b16 %v1641, %v1633
    %v2466 = vpack.c.b16 %v1642, %v1634
    %v2467 = vpack.c.b16 %v1643, %v1635
    %v2468 = vpack.c.b16 %v1652, %v1644
    %v2469 = vpack.c.b16 %v1653, %v1645
    %v2470 = vpack.c.b16 %v1654, %v1646
    %v2471 = vpack.c.b16 %v1655, %v1647
    %v2472 = vpack.c.b16 %v1656, %v1648
    %v2473 = vpack.c.b16 %v1657, %v1649
    %v2474 = vpack.c.b16 %v1658, %v1650
    %v2475 = vpack.c.b16 %v1659, %v1651
    %v2476 = vpack.c.b16 %v1668, %v1660
    %v2477 = vpack.c.b16 %v1669, %v1661
    %v2478 = vpack.c.b16 %v1670, %v1662
    %v2479 = vpack.c.b16 %v1671, %v1663
    %v2480 = vpack.c.b16 %v1672, %v1664
    %v2481 = vpack.c.b16 %v1673, %v1665
    %v2482 = vpack.c.b16 %v1674, %v1666
    %v2483 = vpack.c.b16 %v1675, %v1667
    %v2484 = vpack.c.b16 %v1684, %v1676
    %v2485 = vpack.c.b16 %v1685, %v1677
    %v2486 = vpack.c.b16 %v1686, %v1678
    %v2487 = vpack.c.b16 %v1687, %v1679
    %v2488 = vpack.c.b16 %v1688, %v1680
    %v2489 = vpack.c.b16 %v1689, %v1681
    %v2490 = vpack.c.b16 %v1690, %v1682
    %v2491 = vpack.c.b16 %v1691, %v1683
    %v2492 = vpack.c.b16 %v1700, %v1692
    %v2493 = vpack.c.b16 %v1701, %v1693
    %v2494 = vpack.c.b16 %v1702, %v1694
    %v2495 = vpack.c.b16 %v1703, %v1695
    %v2496 = vpack.c.b16 %v1704, %v1696
    %v2497 = vpack.c.b16 %v1705, %v1697
    %v2498 = vpack.c.b16 %v1706, %v1698
    %v2499 = vpack.c.b16 %v1707, %v1699
    %v2500 = vpack.c.b16 %v1716, %v1708
    %v2501 = vpack.c.b16 %v1717, %v1709
    %v2502 = vpack.c.b16 %v1718, %v1710
    %v2503 = vpack.c.b16 %v1719, %v1711
    %v2504 = vpack.c.b16 %v1720, %v1712
    %v2505 = vpack.c.b16 %v1721, %v1713
    %v2506 = vpack.c.b16 %v1722, %v1714
    %v2507 = vpack.c.b16 %v1723, %v1715
    %v2508 = vpack.c.b16 %v1732, %v1724
    %v2509 = vpack.c.b16 %v1733, %v1725
    %v2510 = vpack.c.b16 %v1734, %v1726
    %v2511 = vpack.c.b16 %v1735, %v1727
    %v2512 = vpack.c.b16 %v1736, %v1728
    %v2513 = vpack.c.b16 %v1737, %v1729
    %v2514 = vpack.c.b16 %v1738, %v1730
    %v2515 = vpack.c.b16 %v1739, %v1731
    %v2516 = vpack.c.b16 %v1748, %v1740
    %v2517 = vpack.c.b16 %v1749, %v1741
    %v2518 = vpack.c.b16 %v1750, %v1742
    %v2519 = vpack.c.b16 %v1751, %v1743
    %v2520 = vpack.c.b16 %v1752, %v1744
    %v2521 = vpack.c.b16 %v1753, %v1745
    %v2522 = vpack.c.b16 %v1754, %v1746
    %v2523 = vpack.c.b16 %v1755, %v1747
    %v2524 = vpack.c.b16 %v1764, %v1756
    %v2525 = vpack.c.b16 %v1765, %v1757
    %v2526 = vpack.c.b16 %v1766, %v1758
    %v2527 = vpack.c.b16 %v1767, %v1759
    %v2528 = vpack.c.b16 %v1768, %v1760
    %v2529 = vpack.c.b16 %v1769, %v1761
    %v2530 = vpack.c.b16 %v1770, %v1762
    %v2531 = vpack.c.b16 %v1771, %v1763
    %v2532 = vpack.c.b16 %v1780, %v1772
    %v2533 = vpack.c.b16 %v1781, %v1773
    %v2534 = vpack.c.b16 %v1782, %v1774
    %v2535 = vpack.c.b16 %v1783, %v1775
    %v2536 = vpack.c.b16 %v1784, %v1776
    %v2537 = vpack.c.b16 %v1785, %v1777
    %v2538 = vpack.c.b16 %v1786, %v1778
    %v2539 = vpack.c.b16 %v1787, %v1779
    %v2540 = vpack.c.b16 %v1796, %v1788
    %v2541 = vpack.c.b16 %v1797, %v1789
    %v2542 = vpack.c.b16 %v1798, %v1790
    %v2543 = vpack.c.b16 %v1799, %v1791
    %v2544 = vpack.c.b16 %v1800, %v1792
    %v2545 = vpack.c.b16 %v1801, %v1793
    %v2546 = vpack.c.b16 %v1802, %v1794
    %v2547 = vpack.c.b16 %v1803, %v1795
    %v2548 = vpack.c.b16 %v1812, %v1804
    %v2549 = vpack.c.b16 %v1813, %v1805
    %v2550 = vpack.c.b16 %v1814, %v1806
    %v2551 = vpack.c.b16 %v1815, %v1807
    %v2552 = vpack.c.b16 %v1816, %v1808
    %v2553 = vpack.c.b16 %v1817, %v1809
    %v2554 = vpack.c.b16 %v1818, %v1810
    %v2555 = vpack.c.b16 %v1819, %v1811
    %v2556 = vpack.c.b16 %v1828, %v1820
    %v2557 = vpack.c.b16 %v1829, %v1821
    %v2558 = vpack.c.b16 %v1830, %v1822
    %v2559 = vpack.c.b16 %v1831, %v1823
    %v2560 = vpack.c.b16 %v1832, %v1824
    %v2561 = vpack.c.b16 %v1833, %v1825
    %v2562 = vpack.c.b16 %v1834, %v1826
    %v2563 = vpack.c.b16 %v1835, %v1827
    %v2564 = vpack.c.b16 %v1844, %v1836
    %v2565 = vpack.c.b16 %v1845, %v1837
    %v2566 = vpack.c.b16 %v1846, %v1838
    %v2567 = vpack.c.b16 %v1847, %v1839
    %v2568 = vpack.c.b16 %v1848, %v1840
    %v2569 = vpack.c.b16 %v1849, %v1841
    %v2570 = vpack.c.b16 %v1850, %v1842
    %v2571 = vpack.c.b16 %v1851, %v1843
    %v2572 = vpack.c.b16 %v1860, %v1852
    %v2573 = vpack.c.b16 %v1861, %v1853
    %v2574 = vpack.c.b16 %v1862, %v1854
    %v2575 = vpack.c.b16 %v1863, %v1855
    %v2576 = vpack.c.b16 %v1864, %v1856
    %v2577 = vpack.c.b16 %v1865, %v1857
    %v2578 = vpack.c.b16 %v1866, %v1858
    %v2579 = vpack.c.b16 %v1867, %v1859
    %v2580 = vpack.c.b16 %v1876, %v1868
    %v2581 = vpack.c.b16 %v1877, %v1869
    %v2582 = vpack.c.b16 %v1878, %v1870
    %v2583 = vpack.c.b16 %v1879, %v1871
    %v2584 = vpack.c.b16 %v1880, %v1872
    %v2585 = vpack.c.b16 %v1881, %v1873
    %v2586 = vpack.c.b16 %v1882, %v1874
    %v2587 = vpack.c.b16 %v1883, %v1875
    %v2588 = vpack.c.b16 %v1892, %v1884
    %v2589 = vpack.c.b16 %v1893, %v1885
    %v2590 = vpack.c.b16 %v1894, %v1886
    %v2591 = vpack.c.b16 %v1895, %v1887
    %v2592 = vpack.c.b16 %v1896, %v1888
    %v2593 = vpack.c.b16 %v1897, %v1889
    %v2594 = vpack.c.b16 %v1898, %v1890
    %v2595 = vpack.c.b16 %v1899, %v1891
    %v2596 = vpack.c.b16 %v1908, %v1900
    %v2597 = vpack.c.b16 %v1909, %v1901
    %v2598 = vpack.c.b16 %v1910, %v1902
    %v2599 = vpack.c.b16 %v1911, %v1903
    %v2600 = vpack.c.b16 %v1912, %v1904
    %v2601 = vpack.c.b16 %v1913, %v1905
    %v2602 = vpack.c.b16 %v1914, %v1906
    %v2603 = vpack.c.b16 %v1915, %v1907
    %v2604 = vpack.c.b16 %v1924, %v1916
    %v2605 = vpack.c.b16 %v1925, %v1917
    %v2606 = vpack.c.b16 %v1926, %v1918
    %v2607 = vpack.c.b16 %v1927, %v1919
    %v2608 = vpack.c.b16 %v1928, %v1920
    %v2609 = vpack.c.b16 %v1929, %v1921
    %v2610 = vpack.c.b16 %v1930, %v1922
    %v2611 = vpack.c.b16 %v1931, %v1923
    %v2612 = vpack.c.b16 %v1940, %v1932
    %v2613 = vpack.c.b16 %v1941, %v1933
    %v2614 = vpack.c.b16 %v1942, %v1934
    %v2615 = vpack.c.b16 %v1943, %v1935
    %v2616 = vpack.c.b16 %v1944, %v1936
    %v2617 = vpack.c.b16 %v1945, %v1937
    %v2618 = vpack.c.b16 %v1946, %v1938
    %v2619 = vpack.c.b16 %v1947, %v1939
    %v2620 = vpack.c.b16 %v1956, %v1948
    %v2621 = vpack.c.b16 %v1957, %v1949
    %v2622 = vpack.c.b16 %v1958, %v1950
    %v2623 = vpack.c.b16 %v1959, %v1951
    %v2624 = vpack.c.b16 %v1960, %v1952
    %v2625 = vpack.c.b16 %v1961, %v1953
    %v2626 = vpack.c.b16 %v1962, %v1954
    %v2627 = vpack.c.b16 %v1963, %v1955
    %v2628 = vpack.c.b16 %v1972, %v1964
    %v2629 = vpack.c.b16 %v1973, %v1965
    %v2630 = vpack.c.b16 %v1974, %v1966
    %v2631 = vpack.c.b16 %v1975, %v1967
    %v2632 = vpack.c.b16 %v1976, %v1968
    %v2633 = vpack.c.b16 %v1977, %v1969
    %v2634 = vpack.c.b16 %v1978, %v1970
    %v2635 = vpack.c.b16 %v1979, %v1971
    %v2636 = vpack.c.b16 %v1988, %v1980
    %v2637 = vpack.c.b16 %v1989, %v1981
    %v2638 = vpack.c.b16 %v1990, %v1982
    %v2639 = vpack.c.b16 %v1991, %v1983
    %v2640 = vpack.c.b16 %v1992, %v1984
    %v2641 = vpack.c.b16 %v1993, %v1985
    %v2642 = vpack.c.b16 %v1994, %v1986
    %v2643 = vpack.c.b16 %v1995, %v1987
    %v2644 = vpack.c.b16 %v2004, %v1996
    %v2645 = vpack.c.b16 %v2005, %v1997
    %v2646 = vpack.c.b16 %v2006, %v1998
    %v2647 = vpack.c.b16 %v2007, %v1999
    %v2648 = vpack.c.b16 %v2008, %v2000
    %v2649 = vpack.c.b16 %v2009, %v2001
    %v2650 = vpack.c.b16 %v2010, %v2002
    %v2651 = vpack.c.b16 %v2011, %v2003
    %v2652 = vpack.c.b16 %v2020, %v2012
    %v2653 = vpack.c.b16 %v2021, %v2013
    %v2654 = vpack.c.b16 %v2022, %v2014
    %v2655 = vpack.c.b16 %v2023, %v2015
    %v2656 = vpack.c.b16 %v2024, %v2016
    %v2657 = vpack.c.b16 %v2025, %v2017
    %v2658 = vpack.c.b16 %v2026, %v2018
    %v2659 = vpack.c.b16 %v2027, %v2019
    %v2660 = vpack.c.b16 %v2036, %v2028
    %v2661 = vpack.c.b16 %v2037, %v2029
    %v2662 = vpack.c.b16 %v2038, %v2030
    %v2663 = vpack.c.b16 %v2039, %v2031
    %v2664 = vpack.c.b16 %v2040, %v2032
    %v2665 = vpack.c.b16 %v2041, %v2033
    %v2666 = vpack.c.b16 %v2042, %v2034
    %v2667 = vpack.c.b16 %v2043, %v2035
    %v2668 = vpack.c.b16 %v2052, %v2044
    %v2669 = vpack.c.b16 %v2053, %v2045
    %v2670 = vpack.c.b16 %v2054, %v2046
    %v2671 = vpack.c.b16 %v2055, %v2047
    %v2672 = vpack.c.b16 %v2056, %v2048
    %v2673 = vpack.c.b16 %v2057, %v2049
    %v2674 = vpack.c.b16 %v2058, %v2050
    %v2675 = vpack.c.b16 %v2059, %v2051
    %v2676 = vpack.c.b16 %v2068, %v2060
    %v2677 = vpack.c.b16 %v2069, %v2061
    %v2678 = vpack.c.b16 %v2070, %v2062
    %v2679 = vpack.c.b16 %v2071, %v2063
    %v2680 = vpack.c.b16 %v2072, %v2064
    %v2681 = vpack.c.b16 %v2073, %v2065
    %v2682 = vpack.c.b16 %v2074, %v2066
    %v2683 = vpack.c.b16 %v2075, %v2067
    %v2684 = vpack.c.b16 %v2084, %v2076
    %v2685 = vpack.c.b16 %v2085, %v2077
    %v2686 = vpack.c.b16 %v2086, %v2078
    %v2687 = vpack.c.b16 %v2087, %v2079
    %v2688 = vpack.c.b16 %v2088, %v2080
    %v2689 = vpack.c.b16 %v2089, %v2081
    %v2690 = vpack.c.b16 %v2090, %v2082
    %v2691 = vpack.c.b16 %v2091, %v2083
    %v2692 = vpack.c.b16 %v2100, %v2092
    %v2693 = vpack.c.b16 %v2101, %v2093
    %v2694 = vpack.c.b16 %v2102, %v2094
    %v2695 = vpack.c.b16 %v2103, %v2095
    %v2696 = vpack.c.b16 %v2104, %v2096
    %v2697 = vpack.c.b16 %v2105, %v2097
    %v2698 = vpack.c.b16 %v2106, %v2098
    %v2699 = vpack.c.b16 %v2107, %v2099
    %v2700 = vpack.c.b16 %v2116, %v2108
    %v2701 = vpack.c.b16 %v2117, %v2109
    %v2702 = vpack.c.b16 %v2118, %v2110
    %v2703 = vpack.c.b16 %v2119, %v2111
    %v2704 = vpack.c.b16 %v2120, %v2112
    %v2705 = vpack.c.b16 %v2121, %v2113
    %v2706 = vpack.c.b16 %v2122, %v2114
    %v2707 = vpack.c.b16 %v2123, %v2115
    %v2708 = vpack.c.b16 %v2132, %v2124
    %v2709 = vpack.c.b16 %v2133, %v2125
    %v2710 = vpack.c.b16 %v2134, %v2126
    %v2711 = vpack.c.b16 %v2135, %v2127
    %v2712 = vpack.c.b16 %v2136, %v2128
    %v2713 = vpack.c.b16 %v2137, %v2129
    %v2714 = vpack.c.b16 %v2138, %v2130
    %v2715 = vpack.c.b16 %v2139, %v2131
    %v2716 = vpack.c.b16 %v2148, %v2140
    %v2717 = vpack.c.b16 %v2149, %v2141
    %v2718 = vpack.c.b16 %v2150, %v2142
    %v2719 = vpack.c.b16 %v2151, %v2143
    %v2720 = vpack.c.b16 %v2152, %v2144
    %v2721 = vpack.c.b16 %v2153, %v2145
    %v2722 = vpack.c.b16 %v2154, %v2146
    %v2723 = vpack.c.b16 %v2155, %v2147
    %v2724 = vpack.c.b16 %v2164, %v2156
    %v2725 = vpack.c.b16 %v2165, %v2157
    %v2726 = vpack.c.b16 %v2166, %v2158
    %v2727 = vpack.c.b16 %v2167, %v2159
    %v2728 = vpack.c.b16 %v2168, %v2160
    %v2729 = vpack.c.b16 %v2169, %v2161
    %v2730 = vpack.c.b16 %v2170, %v2162
    %v2731 = vpack.c.b16 %v2171, %v2163
    %v2732 = vpack.c.b16 %v2180, %v2172
    %v2733 = vpack.c.b16 %v2181, %v2173
    %v2734 = vpack.c.b16 %v2182, %v2174
    %v2735 = vpack.c.b16 %v2183, %v2175
    %v2736 = vpack.c.b16 %v2184, %v2176
    %v2737 = vpack.c.b16 %v2185, %v2177
    %v2738 = vpack.c.b16 %v2186, %v2178
    %v2739 = vpack.c.b16 %v2187, %v2179
    %v2740 = vpack.c.b16 %v2196, %v2188
    %v2741 = vpack.c.b16 %v2197, %v2189
    %v2742 = vpack.c.b16 %v2198, %v2190
    %v2743 = vpack.c.b16 %v2199, %v2191
    %v2744 = vpack.c.b16 %v2200, %v2192
    %v2745 = vpack.c.b16 %v2201, %v2193
    %v2746 = vpack.c.b16 %v2202, %v2194
    %v2747 = vpack.c.b16 %v2203, %v2195
    %v2748 = vpack.c.b16 %v2212, %v2204
    %v2749 = vpack.c.b16 %v2213, %v2205
    %v2750 = vpack.c.b16 %v2214, %v2206
    %v2751 = vpack.c.b16 %v2215, %v2207
    %v2752 = vpack.c.b16 %v2216, %v2208
    %v2753 = vpack.c.b16 %v2217, %v2209
    %v2754 = vpack.c.b16 %v2218, %v2210
    %v2755 = vpack.c.b16 %v2219, %v2211
    %v2756 = vpack.c.b16 %v2228, %v2220
    %v2757 = vpack.c.b16 %v2229, %v2221
    %v2758 = vpack.c.b16 %v2230, %v2222
    %v2759 = vpack.c.b16 %v2231, %v2223
    %v2760 = vpack.c.b16 %v2232, %v2224
    %v2761 = vpack.c.b16 %v2233, %v2225
    %v2762 = vpack.c.b16 %v2234, %v2226
    %v2763 = vpack.c.b16 %v2235, %v2227
    %v2764 = vpack.c.b16 %v2244, %v2236
    %v2765 = vpack.c.b16 %v2245, %v2237
    %v2766 = vpack.c.b16 %v2246, %v2238
    %v2767 = vpack.c.b16 %v2247, %v2239
    %v2768 = vpack.c.b16 %v2248, %v2240
    %v2769 = vpack.c.b16 %v2249, %v2241
    %v2770 = vpack.c.b16 %v2250, %v2242
    %v2771 = vpack.c.b16 %v2251, %v2243
    %v2772 = vpack.c.b16 %v2260, %v2252
    %v2773 = vpack.c.b16 %v2261, %v2253
    %v2774 = vpack.c.b16 %v2262, %v2254
    %v2775 = vpack.c.b16 %v2263, %v2255
    %v2776 = vpack.c.b16 %v2264, %v2256
    %v2777 = vpack.c.b16 %v2265, %v2257
    %v2778 = vpack.c.b16 %v2266, %v2258
    %v2779 = vpack.c.b16 %v2267, %v2259
    %3292 = vmatprep.subr.bf16.mxu0 %v2325
    %3293 = vmatpush1.bf16.msra.mxu0 %v2324
    %3294 = vmatprep.subr.bf16.mxu0 %v2317
    %3295 = vmatpush1.bf16.msra.mxu0 %v2316
    %3296 = vmatprep.subr.bf16.mxu0 %v2309
    %3297 = vmatpush1.bf16.msra.mxu0 %v2308
    %3298 = vmatprep.subr.bf16.mxu0 %v2301
    %3299 = vmatpush1.bf16.msra.mxu0 %v2300
    %3300 = vmatprep.subr.bf16.mxu0 %v2293
    %3301 = vmatpush1.bf16.msra.mxu0 %v2292
    %3302 = vmatprep.subr.bf16.mxu0 %v2285
    %3303 = vmatpush1.bf16.msra.mxu0 %v2284
    %3304 = vmatprep.subr.bf16.mxu0 %v2277
    %3305 = vmatpush1.bf16.msra.mxu0 %v2276
    %3306 = vmatprep.subr.bf16.mxu0 %v2269
    %3307 = vmatpush1.bf16.msra.mxu0 %v2268
    %3308 = vmatprep.subr.bf16.mxu0 %v2389
    %3309 = vmatpush2.bf16.msra.mxu0 %v2388
    %3310 = vmatprep.subr.bf16.mxu0 %v2381
    %3311 = vmatpush2.bf16.msra.mxu0 %v2380
    %3312 = vmatprep.subr.bf16.mxu0 %v2373
    %3313 = vmatpush2.bf16.msra.mxu0 %v2372
    %3314 = vmatprep.subr.bf16.mxu0 %v2365
    %3315 = vmatpush2.bf16.msra.mxu0 %v2364
    %3316 = vmatprep.subr.bf16.mxu0 %v2357
    %3317 = vmatpush2.bf16.msra.mxu0 %v2356
    %3318 = vmatprep.subr.bf16.mxu0 %v2349
    %3319 = vmatpush2.bf16.msra.mxu0 %v2348
    %3320 = vmatprep.subr.bf16.mxu0 %v2341
    %3321 = vmatpush2.bf16.msra.mxu0 %v2340
    %3322 = vmatprep.subr.bf16.mxu0 %v2333
    %3323 = vmatpush2.bf16.msra.mxu0 %v2332
    %3324 = vmatprep.mubr.bf16.mxu0 %v158
    %3325 = vmatmul.mubr.bf16.gmra.mxu0 %v157
    %v3326 = vpop.f32.mrf.mxu0
    %v3327 = vadd.f32 %v724, %v3326
    %v3328 = vpop.f32.mrf.mxu0
    %v3329 = vadd.f32 %v725, %v3328
    %v3330 = vpop.f32.mrf.mxu0
    %v3331 = vpop.f32.mrf.mxu0
    %3332 = vdwg.mxu0
    %3333 = vmatprep.subr.bf16.mxu0 %v2453
    %3334 = vmatpush1.bf16.msra.mxu0 %v2452
    %3335 = vmatprep.subr.bf16.mxu0 %v2445
    %3336 = vmatpush1.bf16.msra.mxu0 %v2444
    %3337 = vmatprep.subr.bf16.mxu0 %v2437
    %3338 = vmatpush1.bf16.msra.mxu0 %v2436
    %3339 = vmatprep.subr.bf16.mxu0 %v2429
    %3340 = vmatpush1.bf16.msra.mxu0 %v2428
    %3341 = vmatprep.subr.bf16.mxu0 %v2421
    %3342 = vmatpush1.bf16.msra.mxu0 %v2420
    %3343 = vmatprep.subr.bf16.mxu0 %v2413
    %3344 = vmatpush1.bf16.msra.mxu0 %v2412
    %3345 = vmatprep.subr.bf16.mxu0 %v2405
    %3346 = vmatpush1.bf16.msra.mxu0 %v2404
    %3347 = vmatprep.subr.bf16.mxu0 %v2397
    %3348 = vmatpush1.bf16.msra.mxu0 %v2396
    %3349 = vmatprep.subr.bf16.mxu0 %v2517
    %3350 = vmatpush2.bf16.msra.mxu0 %v2516
    %3351 = vmatprep.subr.bf16.mxu0 %v2509
    %3352 = vmatpush2.bf16.msra.mxu0 %v2508
    %3353 = vmatprep.subr.bf16.mxu0 %v2501
    %3354 = vmatpush2.bf16.msra.mxu0 %v2500
    %3355 = vmatprep.subr.bf16.mxu0 %v2493
    %3356 = vmatpush2.bf16.msra.mxu0 %v2492
    %3357 = vmatprep.subr.bf16.mxu0 %v2485
    %3358 = vmatpush2.bf16.msra.mxu0 %v2484
    %3359 = vmatprep.subr.bf16.mxu0 %v2477
    %3360 = vmatpush2.bf16.msra.mxu0 %v2476
    %3361 = vmatprep.subr.bf16.mxu0 %v2469
    %3362 = vmatpush2.bf16.msra.mxu0 %v2468
    %3363 = vmatprep.subr.bf16.mxu0 %v2461
    %3364 = vmatpush2.bf16.msra.mxu0 %v2460
    %3365 = vmatprep.mubr.bf16.mxu0 %v160
    %3366 = vmatmul.mubr.bf16.gmra.mxu0 %v159
    %v3367 = vpop.f32.mrf.mxu0
    %v3368 = vadd.f32 %v3327, %v3367
    %v3369 = vpop.f32.mrf.mxu0
    %v3370 = vadd.f32 %v3329, %v3369
    %v3371 = vpop.f32.mrf.mxu0
    %v3372 = vpop.f32.mrf.mxu0
    %3373 = vdwg.mxu0
    %3374 = vmatprep.subr.bf16.mxu0 %v2581
    %3375 = vmatpush1.bf16.msra.mxu0 %v2580
    %3376 = vmatprep.subr.bf16.mxu0 %v2573
    %3377 = vmatpush1.bf16.msra.mxu0 %v2572
    %3378 = vmatprep.subr.bf16.mxu0 %v2565
    %3379 = vmatpush1.bf16.msra.mxu0 %v2564
    %3380 = vmatprep.subr.bf16.mxu0 %v2557
    %3381 = vmatpush1.bf16.msra.mxu0 %v2556
    %3382 = vmatprep.subr.bf16.mxu0 %v2549
    %3383 = vmatpush1.bf16.msra.mxu0 %v2548
    %3384 = vmatprep.subr.bf16.mxu0 %v2541
    %3385 = vmatpush1.bf16.msra.mxu0 %v2540
    %3386 = vmatprep.subr.bf16.mxu0 %v2533
    %3387 = vmatpush1.bf16.msra.mxu0 %v2532
    %3388 = vmatprep.subr.bf16.mxu0 %v2525
    %3389 = vmatpush1.bf16.msra.mxu0 %v2524
    %3390 = vmatprep.subr.bf16.mxu0 %v2645
    %3391 = vmatpush2.bf16.msra.mxu0 %v2644
    %3392 = vmatprep.subr.bf16.mxu0 %v2637
    %3393 = vmatpush2.bf16.msra.mxu0 %v2636
    %3394 = vmatprep.subr.bf16.mxu0 %v2629
    %3395 = vmatpush2.bf16.msra.mxu0 %v2628
    %3396 = vmatprep.subr.bf16.mxu0 %v2621
    %3397 = vmatpush2.bf16.msra.mxu0 %v2620
    %3398 = vmatprep.subr.bf16.mxu0 %v2613
    %3399 = vmatpush2.bf16.msra.mxu0 %v2612
    %3400 = vmatprep.subr.bf16.mxu0 %v2605
    %3401 = vmatpush2.bf16.msra.mxu0 %v2604
    %3402 = vmatprep.subr.bf16.mxu0 %v2597
    %3403 = vmatpush2.bf16.msra.mxu0 %v2596
    %3404 = vmatprep.subr.bf16.mxu0 %v2589
    %3405 = vmatpush2.bf16.msra.mxu0 %v2588
    %3406 = vmatprep.mubr.bf16.mxu0 %v162
    %3407 = vmatmul.mubr.bf16.gmra.mxu0 %v161
    %v3408 = vpop.f32.mrf.mxu0
    %v3409 = vadd.f32 %v3368, %v3408
    %v3410 = vpop.f32.mrf.mxu0
    %v3411 = vadd.f32 %v3370, %v3410
    %v3412 = vpop.f32.mrf.mxu0
    %v3413 = vpop.f32.mrf.mxu0
    %3414 = vdwg.mxu0
    %3415 = vmatprep.subr.bf16.mxu0 %v2709
    %3416 = vmatpush1.bf16.msra.mxu0 %v2708
    %3417 = vmatprep.subr.bf16.mxu0 %v2701
    %3418 = vmatpush1.bf16.msra.mxu0 %v2700
    %3419 = vmatprep.subr.bf16.mxu0 %v2693
    %3420 = vmatpush1.bf16.msra.mxu0 %v2692
    %3421 = vmatprep.subr.bf16.mxu0 %v2685
    %3422 = vmatpush1.bf16.msra.mxu0 %v2684
    %3423 = vmatprep.subr.bf16.mxu0 %v2677
    %3424 = vmatpush1.bf16.msra.mxu0 %v2676
    %3425 = vmatprep.subr.bf16.mxu0 %v2669
    %3426 = vmatpush1.bf16.msra.mxu0 %v2668
    %3427 = vmatprep.subr.bf16.mxu0 %v2661
    %3428 = vmatpush1.bf16.msra.mxu0 %v2660
    %3429 = vmatprep.subr.bf16.mxu0 %v2653
    %3430 = vmatpush1.bf16.msra.mxu0 %v2652
    %3431 = vmatprep.subr.bf16.mxu0 %v2773
    %3432 = vmatpush2.bf16.msra.mxu0 %v2772
    %3433 = vmatprep.subr.bf16.mxu0 %v2765
    %3434 = vmatpush2.bf16.msra.mxu0 %v2764
    %3435 = vmatprep.subr.bf16.mxu0 %v2757
    %3436 = vmatpush2.bf16.msra.mxu0 %v2756
    %3437 = vmatprep.subr.bf16.mxu0 %v2749
    %3438 = vmatpush2.bf16.msra.mxu0 %v2748
    %3439 = vmatprep.subr.bf16.mxu0 %v2741
    %3440 = vmatpush2.bf16.msra.mxu0 %v2740
    %3441 = vmatprep.subr.bf16.mxu0 %v2733
    %3442 = vmatpush2.bf16.msra.mxu0 %v2732
    %3443 = vmatprep.subr.bf16.mxu0 %v2725
    %3444 = vmatpush2.bf16.msra.mxu0 %v2724
    %3445 = vmatprep.subr.bf16.mxu0 %v2717
    %3446 = vmatpush2.bf16.msra.mxu0 %v2716
    %3447 = vmatprep.mubr.bf16.mxu0 %v164
    %3448 = vmatmul.mubr.bf16.gmra.mxu0 %v163
    %v3449 = vpop.f32.mrf.mxu0
    %v3450 = vadd.f32 %v3409, %v3449
    %v3451 = vpop.f32.mrf.mxu0
    %v3452 = vadd.f32 %v3411, %v3451
    %v3453 = vpop.f32.mrf.mxu0
    %v3454 = vpop.f32.mrf.mxu0
    %3455 = vdwg.mxu0
    %3456 = vmatprep.subr.bf16.mxu0 %v2327
    %3457 = vmatpush1.bf16.msra.mxu0 %v2326
    %3458 = vmatprep.subr.bf16.mxu0 %v2319
    %3459 = vmatpush1.bf16.msra.mxu0 %v2318
    %3460 = vmatprep.subr.bf16.mxu0 %v2311
    %3461 = vmatpush1.bf16.msra.mxu0 %v2310
    %3462 = vmatprep.subr.bf16.mxu0 %v2303
    %3463 = vmatpush1.bf16.msra.mxu0 %v2302
    %3464 = vmatprep.subr.bf16.mxu0 %v2295
    %3465 = vmatpush1.bf16.msra.mxu0 %v2294
    %3466 = vmatprep.subr.bf16.mxu0 %v2287
    %3467 = vmatpush1.bf16.msra.mxu0 %v2286
    %3468 = vmatprep.subr.bf16.mxu0 %v2279
    %3469 = vmatpush1.bf16.msra.mxu0 %v2278
    %3470 = vmatprep.subr.bf16.mxu0 %v2271
    %3471 = vmatpush1.bf16.msra.mxu0 %v2270
    %3472 = vmatprep.subr.bf16.mxu0 %v2391
    %3473 = vmatpush2.bf16.msra.mxu0 %v2390
    %3474 = vmatprep.subr.bf16.mxu0 %v2383
    %3475 = vmatpush2.bf16.msra.mxu0 %v2382
    %3476 = vmatprep.subr.bf16.mxu0 %v2375
    %3477 = vmatpush2.bf16.msra.mxu0 %v2374
    %3478 = vmatprep.subr.bf16.mxu0 %v2367
    %3479 = vmatpush2.bf16.msra.mxu0 %v2366
    %3480 = vmatprep.subr.bf16.mxu0 %v2359
    %3481 = vmatpush2.bf16.msra.mxu0 %v2358
    %3482 = vmatprep.subr.bf16.mxu0 %v2351
    %3483 = vmatpush2.bf16.msra.mxu0 %v2350
    %3484 = vmatprep.subr.bf16.mxu0 %v2343
    %3485 = vmatpush2.bf16.msra.mxu0 %v2342
    %3486 = vmatprep.subr.bf16.mxu0 %v2335
    %3487 = vmatpush2.bf16.msra.mxu0 %v2334
    %3488 = vmatprep.mubr.bf16.mxu0 %v158
    %3489 = vmatmul.mubr.bf16.gmra.mxu0 %v157
    %v3490 = vpop.f32.mrf.mxu0
    %v3491 = vadd.f32 %v726, %v3490
    %v3492 = vpop.f32.mrf.mxu0
    %v3493 = vadd.f32 %v727, %v3492
    %v3494 = vpop.f32.mrf.mxu0
    %v3495 = vpop.f32.mrf.mxu0
    %3496 = vdwg.mxu0
    %3497 = vmatprep.subr.bf16.mxu0 %v2455
    %3498 = vmatpush1.bf16.msra.mxu0 %v2454
    %3499 = vmatprep.subr.bf16.mxu0 %v2447
    %3500 = vmatpush1.bf16.msra.mxu0 %v2446
    %3501 = vmatprep.subr.bf16.mxu0 %v2439
    %3502 = vmatpush1.bf16.msra.mxu0 %v2438
    %3503 = vmatprep.subr.bf16.mxu0 %v2431
    %3504 = vmatpush1.bf16.msra.mxu0 %v2430
    %3505 = vmatprep.subr.bf16.mxu0 %v2423
    %3506 = vmatpush1.bf16.msra.mxu0 %v2422
    %3507 = vmatprep.subr.bf16.mxu0 %v2415
    %3508 = vmatpush1.bf16.msra.mxu0 %v2414
    %3509 = vmatprep.subr.bf16.mxu0 %v2407
    %3510 = vmatpush1.bf16.msra.mxu0 %v2406
    %3511 = vmatprep.subr.bf16.mxu0 %v2399
    %3512 = vmatpush1.bf16.msra.mxu0 %v2398
    %3513 = vmatprep.subr.bf16.mxu0 %v2519
    %3514 = vmatpush2.bf16.msra.mxu0 %v2518
    %3515 = vmatprep.subr.bf16.mxu0 %v2511
    %3516 = vmatpush2.bf16.msra.mxu0 %v2510
    %3517 = vmatprep.subr.bf16.mxu0 %v2503
    %3518 = vmatpush2.bf16.msra.mxu0 %v2502
    %3519 = vmatprep.subr.bf16.mxu0 %v2495
    %3520 = vmatpush2.bf16.msra.mxu0 %v2494
    %3521 = vmatprep.subr.bf16.mxu0 %v2487
    %3522 = vmatpush2.bf16.msra.mxu0 %v2486
    %3523 = vmatprep.subr.bf16.mxu0 %v2479
    %3524 = vmatpush2.bf16.msra.mxu0 %v2478
    %3525 = vmatprep.subr.bf16.mxu0 %v2471
    %3526 = vmatpush2.bf16.msra.mxu0 %v2470
    %3527 = vmatprep.subr.bf16.mxu0 %v2463
    %3528 = vmatpush2.bf16.msra.mxu0 %v2462
    %3529 = vmatprep.mubr.bf16.mxu0 %v160
    %3530 = vmatmul.mubr.bf16.gmra.mxu0 %v159
    %v3531 = vpop.f32.mrf.mxu0
    %v3532 = vadd.f32 %v3491, %v3531
    %v3533 = vpop.f32.mrf.mxu0
    %v3534 = vadd.f32 %v3493, %v3533
    %v3535 = vpop.f32.mrf.mxu0
    %v3536 = vpop.f32.mrf.mxu0
    %3537 = vdwg.mxu0
    %3538 = vmatprep.subr.bf16.mxu0 %v2583
    %3539 = vmatpush1.bf16.msra.mxu0 %v2582
    %3540 = vmatprep.subr.bf16.mxu0 %v2575
    %3541 = vmatpush1.bf16.msra.mxu0 %v2574
    %3542 = vmatprep.subr.bf16.mxu0 %v2567
    %3543 = vmatpush1.bf16.msra.mxu0 %v2566
    %3544 = vmatprep.subr.bf16.mxu0 %v2559
    %3545 = vmatpush1.bf16.msra.mxu0 %v2558
    %3546 = vmatprep.subr.bf16.mxu0 %v2551
    %3547 = vmatpush1.bf16.msra.mxu0 %v2550
    %3548 = vmatprep.subr.bf16.mxu0 %v2543
    %3549 = vmatpush1.bf16.msra.mxu0 %v2542
    %3550 = vmatprep.subr.bf16.mxu0 %v2535
    %3551 = vmatpush1.bf16.msra.mxu0 %v2534
    %3552 = vmatprep.subr.bf16.mxu0 %v2527
    %3553 = vmatpush1.bf16.msra.mxu0 %v2526
    %3554 = vmatprep.subr.bf16.mxu0 %v2647
    %3555 = vmatpush2.bf16.msra.mxu0 %v2646
    %3556 = vmatprep.subr.bf16.mxu0 %v2639
    %3557 = vmatpush2.bf16.msra.mxu0 %v2638
    %3558 = vmatprep.subr.bf16.mxu0 %v2631
    %3559 = vmatpush2.bf16.msra.mxu0 %v2630
    %3560 = vmatprep.subr.bf16.mxu0 %v2623
    %3561 = vmatpush2.bf16.msra.mxu0 %v2622
    %3562 = vmatprep.subr.bf16.mxu0 %v2615
    %3563 = vmatpush2.bf16.msra.mxu0 %v2614
    %3564 = vmatprep.subr.bf16.mxu0 %v2607
    %3565 = vmatpush2.bf16.msra.mxu0 %v2606
    %3566 = vmatprep.subr.bf16.mxu0 %v2599
    %3567 = vmatpush2.bf16.msra.mxu0 %v2598
    %3568 = vmatprep.subr.bf16.mxu0 %v2591
    %3569 = vmatpush2.bf16.msra.mxu0 %v2590
    %3570 = vmatprep.mubr.bf16.mxu0 %v162
    %3571 = vmatmul.mubr.bf16.gmra.mxu0 %v161
    %v3572 = vpop.f32.mrf.mxu0
    %v3573 = vadd.f32 %v3532, %v3572
    %v3574 = vpop.f32.mrf.mxu0
    %v3575 = vadd.f32 %v3534, %v3574
    %v3576 = vpop.f32.mrf.mxu0
    %v3577 = vpop.f32.mrf.mxu0
    %3578 = vdwg.mxu0
    %3579 = vmatprep.subr.bf16.mxu0 %v2711
    %3580 = vmatpush1.bf16.msra.mxu0 %v2710
    %3581 = vmatprep.subr.bf16.mxu0 %v2703
    %3582 = vmatpush1.bf16.msra.mxu0 %v2702
    %3583 = vmatprep.subr.bf16.mxu0 %v2695
    %3584 = vmatpush1.bf16.msra.mxu0 %v2694
    %3585 = vmatprep.subr.bf16.mxu0 %v2687
    %3586 = vmatpush1.bf16.msra.mxu0 %v2686
    %3587 = vmatprep.subr.bf16.mxu0 %v2679
    %3588 = vmatpush1.bf16.msra.mxu0 %v2678
    %3589 = vmatprep.subr.bf16.mxu0 %v2671
    %3590 = vmatpush1.bf16.msra.mxu0 %v2670
    %3591 = vmatprep.subr.bf16.mxu0 %v2663
    %3592 = vmatpush1.bf16.msra.mxu0 %v2662
    %3593 = vmatprep.subr.bf16.mxu0 %v2655
    %3594 = vmatpush1.bf16.msra.mxu0 %v2654
    %3595 = vmatprep.subr.bf16.mxu0 %v2775
    %3596 = vmatpush2.bf16.msra.mxu0 %v2774
    %3597 = vmatprep.subr.bf16.mxu0 %v2767
    %3598 = vmatpush2.bf16.msra.mxu0 %v2766
    %3599 = vmatprep.subr.bf16.mxu0 %v2759
    %3600 = vmatpush2.bf16.msra.mxu0 %v2758
    %3601 = vmatprep.subr.bf16.mxu0 %v2751
    %3602 = vmatpush2.bf16.msra.mxu0 %v2750
    %3603 = vmatprep.subr.bf16.mxu0 %v2743
    %3604 = vmatpush2.bf16.msra.mxu0 %v2742
    %3605 = vmatprep.subr.bf16.mxu0 %v2735
    %3606 = vmatpush2.bf16.msra.mxu0 %v2734
    %3607 = vmatprep.subr.bf16.mxu0 %v2727
    %3608 = vmatpush2.bf16.msra.mxu0 %v2726
    %3609 = vmatprep.subr.bf16.mxu0 %v2719
    %3610 = vmatpush2.bf16.msra.mxu0 %v2718
    %3611 = vmatprep.mubr.bf16.mxu0 %v164
    %3612 = vmatmul.mubr.bf16.gmra.mxu0 %v163
    %v3613 = vpop.f32.mrf.mxu0
    %v3614 = vadd.f32 %v3573, %v3613
    %v3615 = vpop.f32.mrf.mxu0
    %v3616 = vadd.f32 %v3575, %v3615
    %v3617 = vpop.f32.mrf.mxu0
    %v3618 = vpop.f32.mrf.mxu0
    %3619 = vdwg.mxu0
    %3620 = vmatprep.subr.bf16.mxu0 %v2329
    %3621 = vmatpush1.bf16.msra.mxu0 %v2328
    %3622 = vmatprep.subr.bf16.mxu0 %v2321
    %3623 = vmatpush1.bf16.msra.mxu0 %v2320
    %3624 = vmatprep.subr.bf16.mxu0 %v2313
    %3625 = vmatpush1.bf16.msra.mxu0 %v2312
    %3626 = vmatprep.subr.bf16.mxu0 %v2305
    %3627 = vmatpush1.bf16.msra.mxu0 %v2304
    %3628 = vmatprep.subr.bf16.mxu0 %v2297
    %3629 = vmatpush1.bf16.msra.mxu0 %v2296
    %3630 = vmatprep.subr.bf16.mxu0 %v2289
    %3631 = vmatpush1.bf16.msra.mxu0 %v2288
    %3632 = vmatprep.subr.bf16.mxu0 %v2281
    %3633 = vmatpush1.bf16.msra.mxu0 %v2280
    %3634 = vmatprep.subr.bf16.mxu0 %v2273
    %3635 = vmatpush1.bf16.msra.mxu0 %v2272
    %3636 = vmatprep.subr.bf16.mxu0 %v2393
    %3637 = vmatpush2.bf16.msra.mxu0 %v2392
    %3638 = vmatprep.subr.bf16.mxu0 %v2385
    %3639 = vmatpush2.bf16.msra.mxu0 %v2384
    %3640 = vmatprep.subr.bf16.mxu0 %v2377
    %3641 = vmatpush2.bf16.msra.mxu0 %v2376
    %3642 = vmatprep.subr.bf16.mxu0 %v2369
    %3643 = vmatpush2.bf16.msra.mxu0 %v2368
    %3644 = vmatprep.subr.bf16.mxu0 %v2361
    %3645 = vmatpush2.bf16.msra.mxu0 %v2360
    %3646 = vmatprep.subr.bf16.mxu0 %v2353
    %3647 = vmatpush2.bf16.msra.mxu0 %v2352
    %3648 = vmatprep.subr.bf16.mxu0 %v2345
    %3649 = vmatpush2.bf16.msra.mxu0 %v2344
    %3650 = vmatprep.subr.bf16.mxu0 %v2337
    %3651 = vmatpush2.bf16.msra.mxu0 %v2336
    %3652 = vmatprep.mubr.bf16.mxu0 %v158
    %3653 = vmatmul.mubr.bf16.gmra.mxu0 %v157
    %v3654 = vpop.f32.mrf.mxu0
    %v3655 = vadd.f32 %v728, %v3654
    %v3656 = vpop.f32.mrf.mxu0
    %v3657 = vadd.f32 %v729, %v3656
    %v3658 = vpop.f32.mrf.mxu0
    %v3659 = vpop.f32.mrf.mxu0
    %3660 = vdwg.mxu0
    %3661 = vmatprep.subr.bf16.mxu0 %v2457
    %3662 = vmatpush1.bf16.msra.mxu0 %v2456
    %3663 = vmatprep.subr.bf16.mxu0 %v2449
    %3664 = vmatpush1.bf16.msra.mxu0 %v2448
    %3665 = vmatprep.subr.bf16.mxu0 %v2441
    %3666 = vmatpush1.bf16.msra.mxu0 %v2440
    %3667 = vmatprep.subr.bf16.mxu0 %v2433
    %3668 = vmatpush1.bf16.msra.mxu0 %v2432
    %3669 = vmatprep.subr.bf16.mxu0 %v2425
    %3670 = vmatpush1.bf16.msra.mxu0 %v2424
    %3671 = vmatprep.subr.bf16.mxu0 %v2417
    %3672 = vmatpush1.bf16.msra.mxu0 %v2416
    %3673 = vmatprep.subr.bf16.mxu0 %v2409
    %3674 = vmatpush1.bf16.msra.mxu0 %v2408
    %3675 = vmatprep.subr.bf16.mxu0 %v2401
    %3676 = vmatpush1.bf16.msra.mxu0 %v2400
    %3677 = vmatprep.subr.bf16.mxu0 %v2521
    %3678 = vmatpush2.bf16.msra.mxu0 %v2520
    %3679 = vmatprep.subr.bf16.mxu0 %v2513
    %3680 = vmatpush2.bf16.msra.mxu0 %v2512
    %3681 = vmatprep.subr.bf16.mxu0 %v2505
    %3682 = vmatpush2.bf16.msra.mxu0 %v2504
    %3683 = vmatprep.subr.bf16.mxu0 %v2497
    %3684 = vmatpush2.bf16.msra.mxu0 %v2496
    %3685 = vmatprep.subr.bf16.mxu0 %v2489
    %3686 = vmatpush2.bf16.msra.mxu0 %v2488
    %3687 = vmatprep.subr.bf16.mxu0 %v2481
    %3688 = vmatpush2.bf16.msra.mxu0 %v2480
    %3689 = vmatprep.subr.bf16.mxu0 %v2473
    %3690 = vmatpush2.bf16.msra.mxu0 %v2472
    %3691 = vmatprep.subr.bf16.mxu0 %v2465
    %3692 = vmatpush2.bf16.msra.mxu0 %v2464
    %3693 = vmatprep.mubr.bf16.mxu0 %v160
    %3694 = vmatmul.mubr.bf16.gmra.mxu0 %v159
    %v3695 = vpop.f32.mrf.mxu0
    %v3696 = vadd.f32 %v3655, %v3695
    %v3697 = vpop.f32.mrf.mxu0
    %v3698 = vadd.f32 %v3657, %v3697
    %v3699 = vpop.f32.mrf.mxu0
    %v3700 = vpop.f32.mrf.mxu0
    %3701 = vdwg.mxu0
    %3702 = vmatprep.subr.bf16.mxu0 %v2585
    %3703 = vmatpush1.bf16.msra.mxu0 %v2584
    %3704 = vmatprep.subr.bf16.mxu0 %v2577
    %3705 = vmatpush1.bf16.msra.mxu0 %v2576
    %3706 = vmatprep.subr.bf16.mxu0 %v2569
    %3707 = vmatpush1.bf16.msra.mxu0 %v2568
    %3708 = vmatprep.subr.bf16.mxu0 %v2561
    %3709 = vmatpush1.bf16.msra.mxu0 %v2560
    %3710 = vmatprep.subr.bf16.mxu0 %v2553
    %3711 = vmatpush1.bf16.msra.mxu0 %v2552
    %3712 = vmatprep.subr.bf16.mxu0 %v2545
    %3713 = vmatpush1.bf16.msra.mxu0 %v2544
    %3714 = vmatprep.subr.bf16.mxu0 %v2537
    %3715 = vmatpush1.bf16.msra.mxu0 %v2536
    %3716 = vmatprep.subr.bf16.mxu0 %v2529
    %3717 = vmatpush1.bf16.msra.mxu0 %v2528
    %3718 = vmatprep.subr.bf16.mxu0 %v2649
    %3719 = vmatpush2.bf16.msra.mxu0 %v2648
    %3720 = vmatprep.subr.bf16.mxu0 %v2641
    %3721 = vmatpush2.bf16.msra.mxu0 %v2640
    %3722 = vmatprep.subr.bf16.mxu0 %v2633
    %3723 = vmatpush2.bf16.msra.mxu0 %v2632
    %3724 = vmatprep.subr.bf16.mxu0 %v2625
    %3725 = vmatpush2.bf16.msra.mxu0 %v2624
    %3726 = vmatprep.subr.bf16.mxu0 %v2617
    %3727 = vmatpush2.bf16.msra.mxu0 %v2616
    %3728 = vmatprep.subr.bf16.mxu0 %v2609
    %3729 = vmatpush2.bf16.msra.mxu0 %v2608
    %3730 = vmatprep.subr.bf16.mxu0 %v2601
    %3731 = vmatpush2.bf16.msra.mxu0 %v2600
    %3732 = vmatprep.subr.bf16.mxu0 %v2593
    %3733 = vmatpush2.bf16.msra.mxu0 %v2592
    %3734 = vmatprep.mubr.bf16.mxu0 %v162
    %3735 = vmatmul.mubr.bf16.gmra.mxu0 %v161
    %v3736 = vpop.f32.mrf.mxu0
    %v3737 = vadd.f32 %v3696, %v3736
    %v3738 = vpop.f32.mrf.mxu0
    %v3739 = vadd.f32 %v3698, %v3738
    %v3740 = vpop.f32.mrf.mxu0
    %v3741 = vpop.f32.mrf.mxu0
    %3742 = vdwg.mxu0
    %3743 = vmatprep.subr.bf16.mxu0 %v2713
    %3744 = vmatpush1.bf16.msra.mxu0 %v2712
    %3745 = vmatprep.subr.bf16.mxu0 %v2705
    %3746 = vmatpush1.bf16.msra.mxu0 %v2704
    %3747 = vmatprep.subr.bf16.mxu0 %v2697
    %3748 = vmatpush1.bf16.msra.mxu0 %v2696
    %3749 = vmatprep.subr.bf16.mxu0 %v2689
    %3750 = vmatpush1.bf16.msra.mxu0 %v2688
    %3751 = vmatprep.subr.bf16.mxu0 %v2681
    %3752 = vmatpush1.bf16.msra.mxu0 %v2680
    %3753 = vmatprep.subr.bf16.mxu0 %v2673
    %3754 = vmatpush1.bf16.msra.mxu0 %v2672
    %3755 = vmatprep.subr.bf16.mxu0 %v2665
    %3756 = vmatpush1.bf16.msra.mxu0 %v2664
    %3757 = vmatprep.subr.bf16.mxu0 %v2657
    %3758 = vmatpush1.bf16.msra.mxu0 %v2656
    %3759 = vmatprep.subr.bf16.mxu0 %v2777
    %3760 = vmatpush2.bf16.msra.mxu0 %v2776
    %3761 = vmatprep.subr.bf16.mxu0 %v2769
    %3762 = vmatpush2.bf16.msra.mxu0 %v2768
    %3763 = vmatprep.subr.bf16.mxu0 %v2761
    %3764 = vmatpush2.bf16.msra.mxu0 %v2760
    %3765 = vmatprep.subr.bf16.mxu0 %v2753
    %3766 = vmatpush2.bf16.msra.mxu0 %v2752
    %3767 = vmatprep.subr.bf16.mxu0 %v2745
    %3768 = vmatpush2.bf16.msra.mxu0 %v2744
    %3769 = vmatprep.subr.bf16.mxu0 %v2737
    %3770 = vmatpush2.bf16.msra.mxu0 %v2736
    %3771 = vmatprep.subr.bf16.mxu0 %v2729
    %3772 = vmatpush2.bf16.msra.mxu0 %v2728
    %3773 = vmatprep.subr.bf16.mxu0 %v2721
    %3774 = vmatpush2.bf16.msra.mxu0 %v2720
    %3775 = vmatprep.mubr.bf16.mxu0 %v164
    %3776 = vmatmul.mubr.bf16.gmra.mxu0 %v163
    %v3777 = vpop.f32.mrf.mxu0
    %v3778 = vadd.f32 %v3737, %v3777
    %v3779 = vpop.f32.mrf.mxu0
    %v3780 = vadd.f32 %v3739, %v3779
    %v3781 = vpop.f32.mrf.mxu0
    %v3782 = vpop.f32.mrf.mxu0
    %3783 = vdwg.mxu0
    %3784 = vmatprep.subr.bf16.mxu0 %v2331
    %3785 = vmatpush1.bf16.msra.mxu0 %v2330
    %3786 = vmatprep.subr.bf16.mxu0 %v2323
    %3787 = vmatpush1.bf16.msra.mxu0 %v2322
    %3788 = vmatprep.subr.bf16.mxu0 %v2315
    %3789 = vmatpush1.bf16.msra.mxu0 %v2314
    %3790 = vmatprep.subr.bf16.mxu0 %v2307
    %3791 = vmatpush1.bf16.msra.mxu0 %v2306
    %3792 = vmatprep.subr.bf16.mxu0 %v2299
    %3793 = vmatpush1.bf16.msra.mxu0 %v2298
    %3794 = vmatprep.subr.bf16.mxu0 %v2291
    %3795 = vmatpush1.bf16.msra.mxu0 %v2290
    %3796 = vmatprep.subr.bf16.mxu0 %v2283
    %3797 = vmatpush1.bf16.msra.mxu0 %v2282
    %3798 = vmatprep.subr.bf16.mxu0 %v2275
    %3799 = vmatpush1.bf16.msra.mxu0 %v2274
    %3800 = vmatprep.subr.bf16.mxu0 %v2395
    %3801 = vmatpush2.bf16.msra.mxu0 %v2394
    %3802 = vmatprep.subr.bf16.mxu0 %v2387
    %3803 = vmatpush2.bf16.msra.mxu0 %v2386
    %3804 = vmatprep.subr.bf16.mxu0 %v2379
    %3805 = vmatpush2.bf16.msra.mxu0 %v2378
    %3806 = vmatprep.subr.bf16.mxu0 %v2371
    %3807 = vmatpush2.bf16.msra.mxu0 %v2370
    %3808 = vmatprep.subr.bf16.mxu0 %v2363
    %3809 = vmatpush2.bf16.msra.mxu0 %v2362
    %3810 = vmatprep.subr.bf16.mxu0 %v2355
    %3811 = vmatpush2.bf16.msra.mxu0 %v2354
    %3812 = vmatprep.subr.bf16.mxu0 %v2347
    %3813 = vmatpush2.bf16.msra.mxu0 %v2346
    %3814 = vmatprep.subr.bf16.mxu0 %v2339
    %3815 = vmatpush2.bf16.msra.mxu0 %v2338
    %3816 = vmatprep.mubr.bf16.mxu0 %v158
    %3817 = vmatmul.mubr.bf16.gmra.mxu0 %v157
    %v3818 = vpop.f32.mrf.mxu0
    %v3819 = vadd.f32 %v730, %v3818
    %v3820 = vpop.f32.mrf.mxu0
    %v3821 = vadd.f32 %v731, %v3820
    %v3822 = vpop.f32.mrf.mxu0
    %v3823 = vpop.f32.mrf.mxu0
    %3824 = vdwg.mxu0
    %3825 = vmatprep.subr.bf16.mxu0 %v2459
    %3826 = vmatpush1.bf16.msra.mxu0 %v2458
    %3827 = vmatprep.subr.bf16.mxu0 %v2451
    %3828 = vmatpush1.bf16.msra.mxu0 %v2450
    %3829 = vmatprep.subr.bf16.mxu0 %v2443
    %3830 = vmatpush1.bf16.msra.mxu0 %v2442
    %3831 = vmatprep.subr.bf16.mxu0 %v2435
    %3832 = vmatpush1.bf16.msra.mxu0 %v2434
    %3833 = vmatprep.subr.bf16.mxu0 %v2427
    %3834 = vmatpush1.bf16.msra.mxu0 %v2426
    %3835 = vmatprep.subr.bf16.mxu0 %v2419
    %3836 = vmatpush1.bf16.msra.mxu0 %v2418
    %3837 = vmatprep.subr.bf16.mxu0 %v2411
    %3838 = vmatpush1.bf16.msra.mxu0 %v2410
    %3839 = vmatprep.subr.bf16.mxu0 %v2403
    %3840 = vmatpush1.bf16.msra.mxu0 %v2402
    %3841 = vmatprep.subr.bf16.mxu0 %v2523
    %3842 = vmatpush2.bf16.msra.mxu0 %v2522
    %3843 = vmatprep.subr.bf16.mxu0 %v2515
    %3844 = vmatpush2.bf16.msra.mxu0 %v2514
    %3845 = vmatprep.subr.bf16.mxu0 %v2507
    %3846 = vmatpush2.bf16.msra.mxu0 %v2506
    %3847 = vmatprep.subr.bf16.mxu0 %v2499
    %3848 = vmatpush2.bf16.msra.mxu0 %v2498
    %3849 = vmatprep.subr.bf16.mxu0 %v2491
    %3850 = vmatpush2.bf16.msra.mxu0 %v2490
    %3851 = vmatprep.subr.bf16.mxu0 %v2483
    %3852 = vmatpush2.bf16.msra.mxu0 %v2482
    %3853 = vmatprep.subr.bf16.mxu0 %v2475
    %3854 = vmatpush2.bf16.msra.mxu0 %v2474
    %3855 = vmatprep.subr.bf16.mxu0 %v2467
    %3856 = vmatpush2.bf16.msra.mxu0 %v2466
    %3857 = vmatprep.mubr.bf16.mxu0 %v160
    %3858 = vmatmul.mubr.bf16.gmra.mxu0 %v159
    %v3859 = vpop.f32.mrf.mxu0
    %v3860 = vadd.f32 %v3819, %v3859
    %v3861 = vpop.f32.mrf.mxu0
    %v3862 = vadd.f32 %v3821, %v3861
    %v3863 = vpop.f32.mrf.mxu0
    %v3864 = vpop.f32.mrf.mxu0
    %3865 = vdwg.mxu0
    %3866 = vmatprep.subr.bf16.mxu0 %v2587
    %3867 = vmatpush1.bf16.msra.mxu0 %v2586
    %3868 = vmatprep.subr.bf16.mxu0 %v2579
    %3869 = vmatpush1.bf16.msra.mxu0 %v2578
    %3870 = vmatprep.subr.bf16.mxu0 %v2571
    %3871 = vmatpush1.bf16.msra.mxu0 %v2570
    %3872 = vmatprep.subr.bf16.mxu0 %v2563
    %3873 = vmatpush1.bf16.msra.mxu0 %v2562
    %3874 = vmatprep.subr.bf16.mxu0 %v2555
    %3875 = vmatpush1.bf16.msra.mxu0 %v2554
    %3876 = vmatprep.subr.bf16.mxu0 %v2547
    %3877 = vmatpush1.bf16.msra.mxu0 %v2546
    %3878 = vmatprep.subr.bf16.mxu0 %v2539
    %3879 = vmatpush1.bf16.msra.mxu0 %v2538
    %3880 = vmatprep.subr.bf16.mxu0 %v2531
    %3881 = vmatpush1.bf16.msra.mxu0 %v2530
    %3882 = vmatprep.subr.bf16.mxu0 %v2651
    %3883 = vmatpush2.bf16.msra.mxu0 %v2650
    %3884 = vmatprep.subr.bf16.mxu0 %v2643
    %3885 = vmatpush2.bf16.msra.mxu0 %v2642
    %3886 = vmatprep.subr.bf16.mxu0 %v2635
    %3887 = vmatpush2.bf16.msra.mxu0 %v2634
    %3888 = vmatprep.subr.bf16.mxu0 %v2627
    %3889 = vmatpush2.bf16.msra.mxu0 %v2626
    %3890 = vmatprep.subr.bf16.mxu0 %v2619
    %3891 = vmatpush2.bf16.msra.mxu0 %v2618
    %3892 = vmatprep.subr.bf16.mxu0 %v2611
    %3893 = vmatpush2.bf16.msra.mxu0 %v2610
    %3894 = vmatprep.subr.bf16.mxu0 %v2603
    %3895 = vmatpush2.bf16.msra.mxu0 %v2602
    %3896 = vmatprep.subr.bf16.mxu0 %v2595
    %3897 = vmatpush2.bf16.msra.mxu0 %v2594
    %3898 = vmatprep.mubr.bf16.mxu0 %v162
    %3899 = vmatmul.mubr.bf16.gmra.mxu0 %v161
    %v3900 = vpop.f32.mrf.mxu0
    %v3901 = vadd.f32 %v3860, %v3900
    %v3902 = vpop.f32.mrf.mxu0
    %v3903 = vadd.f32 %v3862, %v3902
    %v3904 = vpop.f32.mrf.mxu0
    %v3905 = vpop.f32.mrf.mxu0
    %3906 = vdwg.mxu0
    %3907 = vmatprep.subr.bf16.mxu0 %v2715
    %3908 = vmatpush1.bf16.msra.mxu0 %v2714
    %3909 = vmatprep.subr.bf16.mxu0 %v2707
    %3910 = vmatpush1.bf16.msra.mxu0 %v2706
    %3911 = vmatprep.subr.bf16.mxu0 %v2699
    %3912 = vmatpush1.bf16.msra.mxu0 %v2698
    %3913 = vmatprep.subr.bf16.mxu0 %v2691
    %3914 = vmatpush1.bf16.msra.mxu0 %v2690
    %3915 = vmatprep.subr.bf16.mxu0 %v2683
    %3916 = vmatpush1.bf16.msra.mxu0 %v2682
    %3917 = vmatprep.subr.bf16.mxu0 %v2675
    %3918 = vmatpush1.bf16.msra.mxu0 %v2674
    %3919 = vmatprep.subr.bf16.mxu0 %v2667
    %3920 = vmatpush1.bf16.msra.mxu0 %v2666
    %3921 = vmatprep.subr.bf16.mxu0 %v2659
    %3922 = vmatpush1.bf16.msra.mxu0 %v2658
    %3923 = vmatprep.subr.bf16.mxu0 %v2779
    %3924 = vmatpush2.bf16.msra.mxu0 %v2778
    %3925 = vmatprep.subr.bf16.mxu0 %v2771
    %3926 = vmatpush2.bf16.msra.mxu0 %v2770
    %3927 = vmatprep.subr.bf16.mxu0 %v2763
    %3928 = vmatpush2.bf16.msra.mxu0 %v2762
    %3929 = vmatprep.subr.bf16.mxu0 %v2755
    %3930 = vmatpush2.bf16.msra.mxu0 %v2754
    %3931 = vmatprep.subr.bf16.mxu0 %v2747
    %3932 = vmatpush2.bf16.msra.mxu0 %v2746
    %3933 = vmatprep.subr.bf16.mxu0 %v2739
    %3934 = vmatpush2.bf16.msra.mxu0 %v2738
    %3935 = vmatprep.subr.bf16.mxu0 %v2731
    %3936 = vmatpush2.bf16.msra.mxu0 %v2730
    %3937 = vmatprep.subr.bf16.mxu0 %v2723
    %3938 = vmatpush2.bf16.msra.mxu0 %v2722
    %3939 = vmatprep.mubr.bf16.mxu0 %v164
    %3940 = vmatmul.mubr.bf16.gmra.mxu0 %v163
    %v3941 = vpop.f32.mrf.mxu0
    %v3942 = vadd.f32 %v3901, %v3941
    %v3943 = vpop.f32.mrf.mxu0
    %v3944 = vadd.f32 %v3903, %v3943
    %v3945 = vpop.f32.mrf.mxu0
    %v3946 = vpop.f32.mrf.mxu0
    %3947 = vdwg.mxu0
    %v3948 = vld [vmem:[#allocation5] sm:$0xff]
    %v3949 = vld [vmem:[#allocation5 + $0x8] sm:$0xff]
    %3951 = vset.pattern.permute.xlu0 0
    %3952 = vperm.xlu0 %3951, %v74
    %v3953 = vpop.permute.xlu0 %3952
    %v3955 = vmul.f32 %v3953, %v3450
    %v3956 = vmul.f32 %v3953, %v3452
    %v3957 = vmul.f32 %v3953, %v3614
    %v3958 = vmul.f32 %v3953, %v3616
    %v3959 = vmul.f32 %v3953, %v3778
    %v3960 = vmul.f32 %v3953, %v3780
    %v3961 = vmul.f32 %v3953, %v3942
    %v3962 = vmul.f32 %v3953, %v3944
    %v3971 = vcombine.low %v3955, %v3956
    %v3972 = vcombine.low %v3957, %v3958
    %v3974 = vunpack.c.l.s4 1983009808
    %v3975 = vunpack.c.0.s8 %v3974
    %v3976 = vlaneseq
    %v3977 = vshrl.u32 %v3976, 7
    %v3978 = vsub.s32 %v3975, %v3977
    %v3979 = vrot.slane %v3971, %v3978
    %v3981 = vunpack.c.l.s4 1983009808
    %v3982 = vunpack.c.0.s8 %v3981
    %v3983 = vlaneseq
    %v3984 = vshrl.u32 %v3983, 7
    %v3985 = vsub.s32 %v3982, %v3984
    %v3986 = vrot.slane %v3972, %v3985
    %v3987 = vcombine.low %v3979, %v3986
    %v3988 = vcombine.low %v3959, %v3960
    %v3989 = vcombine.low %v3961, %v3962
    %v3991 = vunpack.c.l.s4 1983009808
    %v3992 = vunpack.c.0.s8 %v3991
    %v3993 = vlaneseq
    %v3994 = vshrl.u32 %v3993, 7
    %v3995 = vsub.s32 %v3992, %v3994
    %v3996 = vrot.slane %v3988, %v3995
    %v3998 = vunpack.c.l.s4 1983009808
    %v3999 = vunpack.c.0.s8 %v3998
    %v4000 = vlaneseq
    %v4001 = vshrl.u32 %v4000, 7
    %v4002 = vsub.s32 %v3999, %v4001
    %v4003 = vrot.slane %v3989, %v4002
    %v4004 = vcombine.low %v3996, %v4003
    %v4007 = vadd.f32 %v3948, %v3987
    %v4008 = vadd.f32 %v3949, %v4004
    %4009 = vst [vmem:[#allocation10] sm:$0xff] %v4007
    %4010 = vst [vmem:[#allocation10 + $0x8] sm:$0xff] %v4008
    // Predicated region
    $region38: #{tpu_custom_call.1} parent=1 // pred_check
      _
    $region39: #{tpu_custom_call.1} parent=1 // pred_check_branch
      %4012 = sbr.rel (0) target = $region41
    $region40: #{tpu_custom_call.1} parent=1 // pred_region
      %s4014 = ssub.s32 256, 256
      %4015 = vsyncadd [#allocation4], %s4014
      %s4017 = sshll.u32 [#allocation10], 4
      %s4018 = int_to_ptr.vmem [resolvable:$true] %s4017
      %4020 = dma.vmem_to_hbm [thread:$0]  %s4018, 256, %s5, [#allocation4]
    $region41: #{tpu_custom_call.1} parent=1 // pred_fallthru
      _
    // Predicated region
    $region42: #{tpu_custom_call.1} parent=1 // pred_check
      _
    $region43: #{tpu_custom_call.1} parent=1 // pred_check_branch
      %4022 = sbr.rel (0) target = $region45
    $region44: #{tpu_custom_call.1} parent=1 // pred_region
      %4023 = dma.done [#allocation4], 256
    $region45: #{tpu_custom_call.1} parent=1 // pred_fallthru
      _
    %4024 = vsyncpa [#allocation3], 1
    %4025 = vsyncpa [#allocation6], 1
    %4026 = vsyncpa [#allocation9], 1
    %4027 = vsyncpa [#allocation4], 1

</llo_original>
